<compile_context>
chip_gen: v7x
topology: tpu7x:2x2x1
jax: 0.10.0
libtpu: 0.0.40
codegen_flags: <defaults>
</compile_context>

<pallas_src>
import jax
import jax.numpy as jnp
from jax.experimental import pallas as pl
from jax.experimental.pallas import tpu as pltpu


def _mat_gru_cell_kernel(
    ws_ref,   # (3D, D) bf16  stacked [W_u; W_r; W_h]
    us_ref,   # (2D, D) bf16  stacked [U_u; U_r]
    uh_ref,   # (D, D)  bf16  U_h
    bu_ref,   # (1, TN) f32
    br_ref,   # (1, TN) f32
    bh_ref,   # (1, TN) f32
    q_ref,    # (D, TN) f32   prev_Q column tile
    z_ref,    # (D, TN) bf16  prev_Z column tile
    out_ref,  # (D, TN) f32   new_Q column tile
):
    D = q_ref.shape[0]

    q_f32 = q_ref[...]                       # keep f32 for elementwise math
    q_b16 = q_f32.astype(jnp.bfloat16)       # bf16 copy for the MXU
    z_b16 = z_ref[...]

    # Fused gate matmuls: one (3D,D)x(D,TN) and one (2D,D)x(D,TN) MXU issue.
    pre_w = jnp.dot(ws_ref[...], z_b16, preferred_element_type=jnp.float32)  # (3D, TN)
    pre_u = jnp.dot(us_ref[...], q_b16, preferred_element_type=jnp.float32)  # (2D, TN)

    upd = jax.nn.sigmoid(pre_w[0:D, :] + pre_u[0:D, :] + bu_ref[...])
    rst = jax.nn.sigmoid(pre_w[D:2 * D, :] + pre_u[D:2 * D, :] + br_ref[...])

    hc_in = (rst * q_f32).astype(jnp.bfloat16)
    h_cap = jnp.tanh(
        pre_w[2 * D:3 * D, :]
        + jnp.dot(uh_ref[...], hc_in, preferred_element_type=jnp.float32)
        + bh_ref[...]
    )

    # (1 - upd) * Q + upd * h_cap  ==  Q + upd * (h_cap - Q)
    out_ref[...] = q_f32 + upd * (h_cap - q_f32)


def _pick_tn(D, tn):
    """Column-tile width: multiple of 128 dividing D, else fall back to D."""
    if D % 128 != 0:
        return D
    tn = min(max(tn, 128), D)
    tn -= tn % 128
    while D % tn != 0:
        tn -= 128
    return tn


def mat_gru_cell(params, prev_Q, prev_Z, *, tn=512):
    """Pallas forward of mat_GRU_cell. prev_Q, prev_Z: (D, D) float32."""
    D = prev_Q.shape[0]
    assert prev_Q.shape == (D, D) and prev_Z.shape == (D, D)

    tn = _pick_tn(D, tn)
    grid = (D // tn,)

    # Stack / cast weights once outside the kernel (in real use, pre-stack them
    # at parameter-creation time instead of per call).
    ws = jnp.concatenate(
        [params["W_u"], params["W_r"], params["W_h"]], axis=0
    ).astype(jnp.bfloat16)                                     # (3D, D)
    us = jnp.concatenate(
        [params["U_u"], params["U_r"]], axis=0
    ).astype(jnp.bfloat16)                                     # (2D, D)
    uh = params["U_h"].astype(jnp.bfloat16)                    # (D, D)
    z_b16 = prev_Z.astype(jnp.bfloat16)

    # Resident weight slabs (constant block index across the column grid).
    ws_spec = pl.BlockSpec((3 * D, D), lambda j: (0, 0))
    us_spec = pl.BlockSpec((2 * D, D), lambda j: (0, 0))
    uh_spec = pl.BlockSpec((D, D), lambda j: (0, 0))
    # Column-tiled activations / biases / output.
    bias_spec = pl.BlockSpec((1, tn), lambda j: (0, j))
    col_spec = pl.BlockSpec((D, tn), lambda j: (0, j))

    # VMEM budget: resident bf16 weights + double-buffered column tiles,
    # plus margin for the f32 intermediates; capped below v7x's 64 MiB.
    weight_bytes = (3 * D * D + 2 * D * D + D * D) * 2
    tile_bytes = 2 * (D * tn * 4 + D * tn * 2 + 3 * tn * 4 + D * tn * 4)
    vmem_limit = min(2 * weight_bytes + tile_bytes + (24 << 20), 64 << 20)

    return pl.pallas_call(
        _mat_gru_cell_kernel,
        out_shape=jax.ShapeDtypeStruct((D, D), jnp.float32),
        grid=grid,
        in_specs=[
            ws_spec, us_spec, uh_spec,
            bias_spec, bias_spec, bias_spec,
            col_spec,            # prev_Q (f32)
            col_spec,            # prev_Z (bf16)
        ],
        out_specs=col_spec,
        compiler_params=pltpu.CompilerParams(
            dimension_semantics=("parallel",),
            vmem_limit_bytes=int(vmem_limit),
        ),
    )(ws, us, uh,
      params["b_u"], params["b_r"], params["b_h"],
      prev_Q, z_b16)


def _xavier_normal(key, shape):
    # nn.init.xavier_normal_ for a (fan_out, fan_in) matrix.
    fan_in, fan_out = shape[1], shape[0]
    std = (2.0 / (fan_in + fan_out)) ** 0.5
    return std * jax.random.normal(key, shape, dtype=jnp.float32)


def init_params(key, dim):
    keys = jax.random.split(key, 6)
    zeros_b = jnp.zeros((1, dim), dtype=jnp.float32)  # PyTorch bias init: zeros
    return {
        "W_u": _xavier_normal(keys[0], (dim, dim)),
        "U_u": _xavier_normal(keys[1], (dim, dim)),
        "b_u": zeros_b,
        "W_r": _xavier_normal(keys[2], (dim, dim)),
        "U_r": _xavier_normal(keys[3], (dim, dim)),
        "b_r": zeros_b,
        "W_h": _xavier_normal(keys[4], (dim, dim)),
        "U_h": _xavier_normal(keys[5], (dim, dim)),
        "b_h": zeros_b,
    }


def _reference(params, prev_Q, prev_Z):
    """Pure-JAX reference with the same bf16 matmul-operand rounding."""
    def b16(x):
        return x.astype(jnp.bfloat16).astype(jnp.float32)

    Z = b16(prev_Z)
    Qb = b16(prev_Q)

    def gate(W, U, b, x, h, act):
        return act(b16(W) @ x + b16(U) @ h + b)   # b: (1, D) broadcasts over rows

    upd = gate(params["W_u"], params["U_u"], params["b_u"], Z, Qb,
               jax.nn.sigmoid)
    rst = gate(params["W_r"], params["U_r"], params["b_r"], Z, Qb,
               jax.nn.sigmoid)
    h_cap = gate(params["W_h"], params["U_h"], params["b_h"], Z,
                 b16(rst * prev_Q), jnp.tanh)
    return prev_Q + upd * (h_cap - prev_Q)


if __name__ == "__main__":
    Dim = 256          # lane-dense (>=128); small enough to run instantly
    key = jax.random.PRNGKey(0)
    kp, kq, kz, kb = jax.random.split(key, 4)

    params = init_params(kp, Dim)
    # Use non-zero biases so the bias path is actually exercised by the check.
    bkeys = jax.random.split(kb, 3)
    params["b_u"] = 0.1 * jax.random.normal(bkeys[0], (1, Dim), dtype=jnp.float32)
    params["b_r"] = 0.1 * jax.random.normal(bkeys[1], (1, Dim), dtype=jnp.float32)
    params["b_h"] = 0.1 * jax.random.normal(bkeys[2], (1, Dim), dtype=jnp.float32)

    prev_Q = jax.random.normal(kq, (Dim, Dim), dtype=jnp.float32)
    prev_Z = jax.random.normal(kz, (Dim, Dim), dtype=jnp.float32)

    # tn=128 -> grid=(2,): exercises the column-tiled / resident-weight path.
    new_Q = mat_gru_cell(params, prev_Q, prev_Z, tn=128)
    new_Q = jax.block_until_ready(new_Q)

    ref = _reference(params, prev_Q, prev_Z)
    assert new_Q.shape == (Dim, Dim)
    max_err = float(jnp.max(jnp.abs(new_Q - ref)))
    assert jnp.allclose(new_Q, ref, atol=2e-3, rtol=2e-3), max_err
    print("KERNEL_OK")
</pallas_src>

<mosaic_0001>
module attributes {stable_mosaic.version = 11 : i64} {
  func.func @_mat_gru_cell_kernel(%arg0: i32, %arg1: memref<768x256xbf16, #tpu.memory_space<vmem>>, %arg2: memref<512x256xbf16, #tpu.memory_space<vmem>>, %arg3: memref<256x256xbf16, #tpu.memory_space<vmem>>, %arg4: memref<1x128xf32, #tpu.memory_space<vmem>>, %arg5: memref<1x128xf32, #tpu.memory_space<vmem>>, %arg6: memref<1x128xf32, #tpu.memory_space<vmem>>, %arg7: memref<256x128xf32, #tpu.memory_space<vmem>>, %arg8: memref<256x128xbf16, #tpu.memory_space<vmem>>, %arg9: memref<256x128xf32, #tpu.memory_space<vmem>>) attributes {dimension_semantics = [#tpu.dimension_semantics<parallel>], iteration_bounds = array<i64: 2>, scalar_prefetch = 0 : i64, scratch_operands = 0 : i64, tpu.core_type = #tpu.core_type<tc>, window_params = [{pipeline_mode = #tpu.pipeline_mode<synchronous>, transform_indices = @transform_0, window_bounds = array<i64: 768, 256>}, {pipeline_mode = #tpu.pipeline_mode<synchronous>, transform_indices = @transform_1, window_bounds = array<i64: 512, 256>}, {pipeline_mode = #tpu.pipeline_mode<synchronous>, transform_indices = @transform_2, window_bounds = array<i64: 256, 256>}, {transform_indices = @transform_3, window_bounds = array<i64: 1, 128>}, {transform_indices = @transform_4, window_bounds = array<i64: 1, 128>}, {transform_indices = @transform_5, window_bounds = array<i64: 1, 128>}, {transform_indices = @transform_6, window_bounds = array<i64: 256, 128>}, {transform_indices = @transform_7, window_bounds = array<i64: 256, 128>}, {transform_indices = @transform_8, window_bounds = array<i64: 256, 128>}]} {
    %c0 = arith.constant 0 : index
    %c0_0 = arith.constant 0 : index
    %0 = vector.load %arg7[%c0, %c0_0] : memref<256x128xf32, #tpu.memory_space<vmem>>, vector<256x128xf32>
    %1 = arith.truncf %0 : vector<256x128xf32> to vector<256x128xbf16>
    %c0_1 = arith.constant 0 : index
    %c0_2 = arith.constant 0 : index
    %2 = vector.load %arg8[%c0_1, %c0_2] : memref<256x128xbf16, #tpu.memory_space<vmem>>, vector<256x128xbf16>
    %c0_3 = arith.constant 0 : index
    %c0_4 = arith.constant 0 : index
    %3 = vector.load %arg1[%c0_3, %c0_4] : memref<768x256xbf16, #tpu.memory_space<vmem>>, vector<768x256xbf16>
    %cst = arith.constant dense<0.000000e+00> : vector<768x128xf32>
    %4 = tpu.matmul %3, %2, %cst {dimension_numbers = #tpu.dot_dimension_numbers<[1], [0], [0], [1], [0, 0, 1, 1], [], []>} : vector<768x256xbf16>, vector<256x128xbf16>, vector<768x128xf32> -> vector<768x128xf32>
    %c0_5 = arith.constant 0 : index
    %c0_6 = arith.constant 0 : index
    %5 = vector.load %arg2[%c0_5, %c0_6] : memref<512x256xbf16, #tpu.memory_space<vmem>>, vector<512x256xbf16>
    %cst_7 = arith.constant dense<0.000000e+00> : vector<512x128xf32>
    %6 = tpu.matmul %5, %1, %cst_7 {dimension_numbers = #tpu.dot_dimension_numbers<[1], [0], [0], [1], [0, 0, 1, 1], [], []>} : vector<512x256xbf16>, vector<256x128xbf16>, vector<512x128xf32> -> vector<512x128xf32>
    %7 = vector.extract_strided_slice %4 {offsets = [0, 0], sizes = [256, 128], strides = [1, 1]} : vector<768x128xf32> to vector<256x128xf32>
    %8 = vector.extract_strided_slice %6 {offsets = [0, 0], sizes = [256, 128], strides = [1, 1]} : vector<512x128xf32> to vector<256x128xf32>
    %9 = arith.addf %7, %8 : vector<256x128xf32>
    %c0_8 = arith.constant 0 : index
    %c0_9 = arith.constant 0 : index
    %10 = vector.load %arg4[%c0_8, %c0_9] : memref<1x128xf32, #tpu.memory_space<vmem>>, vector<1x128xf32>
    %11 = vector.broadcast %10 : vector<1x128xf32> to vector<256x128xf32>
    %12 = arith.addf %9, %11 : vector<256x128xf32>
    %13 = arith.negf %12 : vector<256x128xf32>
    %14 = math.exp %13 : vector<256x128xf32>
    %cst_10 = arith.constant 1.000000e+00 : f32
    %15 = vector.broadcast %cst_10 : f32 to vector<256x128xf32>
    %16 = arith.addf %15, %14 : vector<256x128xf32>
    %17 = arith.divf %15, %16 : vector<256x128xf32>
    %18 = vector.extract_strided_slice %4 {offsets = [256, 0], sizes = [256, 128], strides = [1, 1]} : vector<768x128xf32> to vector<256x128xf32>
    %19 = vector.extract_strided_slice %6 {offsets = [256, 0], sizes = [256, 128], strides = [1, 1]} : vector<512x128xf32> to vector<256x128xf32>
    %20 = arith.addf %18, %19 : vector<256x128xf32>
    %c0_11 = arith.constant 0 : index
    %c0_12 = arith.constant 0 : index
    %21 = vector.load %arg5[%c0_11, %c0_12] : memref<1x128xf32, #tpu.memory_space<vmem>>, vector<1x128xf32>
    %22 = vector.broadcast %21 : vector<1x128xf32> to vector<256x128xf32>
    %23 = arith.addf %20, %22 : vector<256x128xf32>
    %24 = arith.negf %23 : vector<256x128xf32>
    %25 = math.exp %24 : vector<256x128xf32>
    %cst_13 = arith.constant 1.000000e+00 : f32
    %26 = vector.broadcast %cst_13 : f32 to vector<256x128xf32>
    %27 = arith.addf %26, %25 : vector<256x128xf32>
    %28 = arith.divf %26, %27 : vector<256x128xf32>
    %29 = arith.mulf %28, %0 : vector<256x128xf32>
    %30 = arith.truncf %29 : vector<256x128xf32> to vector<256x128xbf16>
    %31 = vector.extract_strided_slice %4 {offsets = [512, 0], sizes = [256, 128], strides = [1, 1]} : vector<768x128xf32> to vector<256x128xf32>
    %c0_14 = arith.constant 0 : index
    %c0_15 = arith.constant 0 : index
    %32 = vector.load %arg3[%c0_14, %c0_15] : memref<256x256xbf16, #tpu.memory_space<vmem>>, vector<256x256xbf16>
    %cst_16 = arith.constant dense<0.000000e+00> : vector<256x128xf32>
    %33 = tpu.matmul %32, %30, %cst_16 {dimension_numbers = #tpu.dot_dimension_numbers<[1], [0], [0], [1], [0, 0, 1, 1], [], []>} : vector<256x256xbf16>, vector<256x128xbf16>, vector<256x128xf32> -> vector<256x128xf32>
    %34 = arith.addf %31, %33 : vector<256x128xf32>
    %c0_17 = arith.constant 0 : index
    %c0_18 = arith.constant 0 : index
    %35 = vector.load %arg6[%c0_17, %c0_18] : memref<1x128xf32, #tpu.memory_space<vmem>>, vector<1x128xf32>
    %36 = vector.broadcast %35 : vector<1x128xf32> to vector<256x128xf32>
    %37 = arith.addf %34, %36 : vector<256x128xf32>
    %38 = math.tanh %37 : vector<256x128xf32>
    %39 = arith.subf %38, %0 : vector<256x128xf32>
    %40 = arith.mulf %17, %39 : vector<256x128xf32>
    %41 = arith.addf %0, %40 : vector<256x128xf32>
    %c0_19 = arith.constant 0 : index
    %c0_20 = arith.constant 0 : index
    %42 = vector.load %arg9[%c0_19, %c0_20] : memref<256x128xf32, #tpu.memory_space<vmem>>, vector<256x128xf32>
    tpu.vector_store %arg9[%c0_19, %c0_20], %41 {strides = array<i32>} : memref<256x128xf32, #tpu.memory_space<vmem>>, vector<256x128xf32>,
    return
  }
  func.func @transform_0(%arg0: i32) -> (i32, i32) {
    %c0_i32 = arith.constant 0 : i32
    %c0_i32_0 = arith.constant 0 : i32
    %c0_i32_1 = arith.constant 0 : i32
    return %c0_i32, %c0_i32_0 : i32, i32
  }
  func.func @transform_1(%arg0: i32) -> (i32, i32) {
    %c0_i32 = arith.constant 0 : i32
    %c0_i32_0 = arith.constant 0 : i32
    %c0_i32_1 = arith.constant 0 : i32
    return %c0_i32, %c0_i32_0 : i32, i32
  }
  func.func @transform_2(%arg0: i32) -> (i32, i32) {
    %c0_i32 = arith.constant 0 : i32
    %c0_i32_0 = arith.constant 0 : i32
    %c0_i32_1 = arith.constant 0 : i32
    return %c0_i32, %c0_i32_0 : i32, i32
  }
  func.func @transform_3(%arg0: i32) -> (i32, i32) {
    %c0_i32 = arith.constant 0 : i32
    %c0_i32_0 = arith.constant 0 : i32
    return %c0_i32, %arg0 : i32, i32
  }
  func.func @transform_4(%arg0: i32) -> (i32, i32) {
    %c0_i32 = arith.constant 0 : i32
    %c0_i32_0 = arith.constant 0 : i32
    return %c0_i32, %arg0 : i32, i32
  }
  func.func @transform_5(%arg0: i32) -> (i32, i32) {
    %c0_i32 = arith.constant 0 : i32
    %c0_i32_0 = arith.constant 0 : i32
    return %c0_i32, %arg0 : i32, i32
  }
  func.func @transform_6(%arg0: i32) -> (i32, i32) {
    %c0_i32 = arith.constant 0 : i32
    %c0_i32_0 = arith.constant 0 : i32
    return %c0_i32, %arg0 : i32, i32
  }
  func.func @transform_7(%arg0: i32) -> (i32, i32) {
    %c0_i32 = arith.constant 0 : i32
    %c0_i32_0 = arith.constant 0 : i32
    return %c0_i32, %arg0 : i32, i32
  }
  func.func @transform_8(%arg0: i32) -> (i32, i32) {
    %c0_i32 = arith.constant 0 : i32
    %c0_i32_0 = arith.constant 0 : i32
    return %c0_i32, %arg0 : i32, i32
  }
}

</mosaic_0001>

<llo_original>
// kernel: tpu_custom_call.1
$region0: #{tpu_custom_call.1}
  #allocation0 [shape = 'u32[]', space=smem, size = 0x4, offset = 0x4, fixed_abs, tag = 'smem constant byte address 0x4 - core index']
  #allocation1 [shape = 'u32[144,128]{1,0:T(1,128)}', space=vmem, size = 0x12000, scoped, tag = 'internal scratch']
  %s0 = inlined_call_operand.hbm [shape: bf16[768,256], index: 0, kind: input, shape index: {}]
  %s1 = inlined_call_operand.hbm [shape: bf16[512,256], index: 1, kind: input, shape index: {}]
  %s2 = inlined_call_operand.hbm [shape: bf16[256,256], index: 2, kind: input, shape index: {}]
  %s3 = inlined_call_operand.vmem [shape: f32[1,256], index: 3, kind: input, shape index: {}]
  %s4 = inlined_call_operand.vmem [shape: f32[1,256], index: 4, kind: input, shape index: {}]
  %s5 = inlined_call_operand.vmem [shape: f32[1,256], index: 5, kind: input, shape index: {}]
  %s6 = inlined_call_operand.hbm [shape: f32[256,256], index: 6, kind: input, shape index: {}]
  %s7 = inlined_call_operand.hbm [shape: bf16[256,256], index: 7, kind: input, shape index: {}]
  %s8 = inlined_call_operand.hbm [shape: f32[256,256], index: 8, kind: output, shape index: {}]
  %s9 = sld [smem:[#allocation0]]
  $region85: #{tpu_custom_call.1} parent=0
    _
  %s11 = ssub.s32 1, %s9
  %s12 = scalar_select 0, %s11, %s9
  $region1: #{tpu_custom_call.1} parent=0
    #allocation2 [shape = 'u8[393216]{0}', space=vmem, size = 0x60000, scoped, tag = 'input window, operand 0, single buffered']
    #allocation3 [shape = 's32[2]{0}', space=sflag, size = 0x8, scoped, tag = 'scoped memory for tpu_custom_call.1']
    #allocation4 [shape = 's32[2]{0}', space=sflag, size = 0x8, scoped, tag = 'scoped memory for tpu_custom_call.1']
    #allocation5 [shape = 'u8[262144]{0}', space=vmem, size = 0x40000, scoped, tag = 'input window, operand 1, single buffered']
    #allocation6 [shape = 's32[1]{0}', space=sflag, size = 0x4, scoped, tag = 'scoped memory for tpu_custom_call.1']
    #allocation7 [shape = 'u8[131072]{0}', space=vmem, size = 0x20000, scoped, tag = 'input window, operand 2, single buffered']
    #allocation8 [shape = 'u8[262144]{0}', space=vmem, size = 0x40000, scoped, tag = 'input window, operand 6']
    #allocation9 [shape = 's32[2]{0}', space=sflag, size = 0x8, scoped, tag = 'scoped memory for tpu_custom_call.1']
    #allocation10 [shape = 'u8[131072]{0}', space=vmem, size = 0x20000, scoped, tag = 'input window, operand 7']
    #allocation11 [shape = 'u8[262144]{0}', space=vmem, size = 0x40000, scoped, tag = 'output window, operand 0']
    %13 = vsyncpa [#allocation3], 0
    %14 = vsyncpa [#allocation6], 0
    %15 = vsyncpa [#allocation9], 0
    %s16 = scalar_lea.sflag [#allocation9], 1
    %17 = vsyncpa %s16, 0
    %18 = vsyncpa [#allocation4], 0
    %s19 = scalar_lea.sflag [#allocation4], 1
    %20 = vsyncpa %s19, 0
    loop: start=0, step=1, limit=4
    $region2: #{tpu_custom_call.1} parent=1 // loop_pre_header
      _
    $region3: #{tpu_custom_call.1} parent=1 // loop_header
      %s22 = sphi 0, %s26
      %p23 = scmp.ge.s32.totalorder %s22, 4
      %s30 = sphi 0, %s30
      %s32 = sphi 0, %s30
      %s33 = sphi 0, %s32
      %s47 = sphi 0, %s33
      %s51 = sphi 0, %s51
      %s53 = sphi 0, %s51
      %s54 = sphi 0, %s53
      %s68 = sphi 0, %s54
      %s72 = sphi 0, %s72
      %s74 = sphi 0, %s72
      %s75 = sphi 0, %s74
      %s89 = sphi 0, %s75
      %s95 = sphi 0, %s97
      %s98 = sphi 0, %s95
      %s99 = sphi 0, %s98
      %s115 = sphi 0, %s99
      %s121 = sphi 0, %s123
      %s124 = sphi 0, %s121
      %s125 = sphi 0, %s124
      %s141 = sphi 0, %s125
      %s147 = sphi 0, %s149
      %s150 = sphi 0, %s147
      %s151 = sphi 0, %s150
      %s167 = sphi 0, %s151
      %s173 = sphi 0, %s175
      %s176 = sphi 0, %s173
      %s177 = sphi 0, %s176
      %s193 = sphi 0, %s177
      %s199 = sphi 0, %s201
      %s202 = sphi 0, %s199
      %s203 = sphi 0, %s202
      %s219 = sphi 0, %s203
      %s225 = sphi 0, %s227
      %s228 = sphi 0, %s225
      %s229 = sphi 0, %s228
      %s245 = sphi 0, %s229
    $region4: #{tpu_custom_call.1} parent=1 // loop_header_branch
      %25 = sbr.rel (%p23) target = $region8
    $region5: #{tpu_custom_call.1} parent=1 // loop_body
      %s27 = ssub.s32 %s22, 1
      %s28 = ssub.s32 %s22, 2
      %s29 = sadd.s32 %s22, 1
      %s31 = sadd.s32 %s30, 1
      %p34 = scmp.eq.s32.totalorder %s22, 1
      %p35 = scmp.ne.s32.totalorder %s30, %s32
      %p36 = scmp.eq.s32.totalorder %s22, 0
      %p37 = por %p35, %p36
      %p38 = scmp.ne.s32.totalorder %s30, %s32
      %p39 = scmp.eq.s32.totalorder %s27, 1
      %p40 = por %p38, %p39
      %p41 = scmp.ne.s32.totalorder %s32, %s33
      %p42 = scmp.eq.s32.totalorder %s27, 0
      %p43 = por %p41, %p42
      %p44 = scmp.ne.s32.totalorder %s32, %s33
      %p45 = scmp.eq.s32.totalorder %s28, 1
      %p46 = por %p44, %p45
      %p48 = scmp.ne.s32.totalorder %s33, %s47
      %p49 = scmp.eq.s32.totalorder %s28, 0
      %p50 = por %p48, %p49
      %s52 = sadd.s32 %s51, 1
      %p55 = scmp.eq.s32.totalorder %s22, 1
      %p56 = scmp.ne.s32.totalorder %s51, %s53
      %p57 = scmp.eq.s32.totalorder %s22, 0
      %p58 = por %p56, %p57
      %p59 = scmp.ne.s32.totalorder %s51, %s53
      %p60 = scmp.eq.s32.totalorder %s27, 1
      %p61 = por %p59, %p60
      %p62 = scmp.ne.s32.totalorder %s53, %s54
      %p63 = scmp.eq.s32.totalorder %s27, 0
      %p64 = por %p62, %p63
      %p65 = scmp.ne.s32.totalorder %s53, %s54
      %p66 = scmp.eq.s32.totalorder %s28, 1
      %p67 = por %p65, %p66
      %p69 = scmp.ne.s32.totalorder %s54, %s68
      %p70 = scmp.eq.s32.totalorder %s28, 0
      %p71 = por %p69, %p70
      %s73 = sadd.s32 %s72, 1
      %p76 = scmp.eq.s32.totalorder %s22, 1
      %p77 = scmp.ne.s32.totalorder %s72, %s74
      %p78 = scmp.eq.s32.totalorder %s22, 0
      %p79 = por %p77, %p78
      %p80 = scmp.ne.s32.totalorder %s72, %s74
      %p81 = scmp.eq.s32.totalorder %s27, 1
      %p82 = por %p80, %p81
      %p83 = scmp.ne.s32.totalorder %s74, %s75
      %p84 = scmp.eq.s32.totalorder %s27, 0
      %p85 = por %p83, %p84
      %p86 = scmp.ne.s32.totalorder %s74, %s75
      %p87 = scmp.eq.s32.totalorder %s28, 1
      %p88 = por %p86, %p87
      %p90 = scmp.ne.s32.totalorder %s75, %s89
      %p91 = scmp.eq.s32.totalorder %s28, 0
      %p92 = por %p90, %p91
      %s93 = ssub.s32 %s22, %s29
      %p94 = scmp.eq.s32.totalorder %s93, 0
      %s96 = sadd.s32 %s95, 1
      %s97 = scalar_select %p94, %s95, %s96
      %p100 = pneg %p94
      %p101 = scmp.eq.s32.totalorder %s22, 1
      %p102 = por %p100, %p101
      %p103 = scmp.ne.s32.totalorder %s95, %s98
      %p104 = scmp.eq.s32.totalorder %s22, 0
      %p105 = por %p103, %p104
      %p106 = scmp.ne.s32.totalorder %s95, %s98
      %p107 = scmp.eq.s32.totalorder %s27, 1
      %p108 = por %p106, %p107
      %p109 = scmp.ne.s32.totalorder %s98, %s99
      %p110 = scmp.eq.s32.totalorder %s27, 0
      %p111 = por %p109, %p110
      %p112 = scmp.ne.s32.totalorder %s98, %s99
      %p113 = scmp.eq.s32.totalorder %s28, 1
      %p114 = por %p112, %p113
      %p116 = scmp.ne.s32.totalorder %s99, %s115
      %p117 = scmp.eq.s32.totalorder %s28, 0
      %p118 = por %p116, %p117
      %s119 = ssub.s32 %s22, %s29
      %p120 = scmp.eq.s32.totalorder %s119, 0
      %s122 = sadd.s32 %s121, 1
      %s123 = scalar_select %p120, %s121, %s122
      %p126 = pneg %p120
      %p127 = scmp.eq.s32.totalorder %s22, 1
      %p128 = por %p126, %p127
      %p129 = scmp.ne.s32.totalorder %s121, %s124
      %p130 = scmp.eq.s32.totalorder %s22, 0
      %p131 = por %p129, %p130
      %p132 = scmp.ne.s32.totalorder %s121, %s124
      %p133 = scmp.eq.s32.totalorder %s27, 1
      %p134 = por %p132, %p133
      %p135 = scmp.ne.s32.totalorder %s124, %s125
      %p136 = scmp.eq.s32.totalorder %s27, 0
      %p137 = por %p135, %p136
      %p138 = scmp.ne.s32.totalorder %s124, %s125
      %p139 = scmp.eq.s32.totalorder %s28, 1
      %p140 = por %p138, %p139
      %p142 = scmp.ne.s32.totalorder %s125, %s141
      %p143 = scmp.eq.s32.totalorder %s28, 0
      %p144 = por %p142, %p143
      %s145 = ssub.s32 %s22, %s29
      %p146 = scmp.eq.s32.totalorder %s145, 0
      %s148 = sadd.s32 %s147, 1
      %s149 = scalar_select %p146, %s147, %s148
      %p152 = pneg %p146
      %p153 = scmp.eq.s32.totalorder %s22, 1
      %p154 = por %p152, %p153
      %p155 = scmp.ne.s32.totalorder %s147, %s150
      %p156 = scmp.eq.s32.totalorder %s22, 0
      %p157 = por %p155, %p156
      %p158 = scmp.ne.s32.totalorder %s147, %s150
      %p159 = scmp.eq.s32.totalorder %s27, 1
      %p160 = por %p158, %p159
      %p161 = scmp.ne.s32.totalorder %s150, %s151
      %p162 = scmp.eq.s32.totalorder %s27, 0
      %p163 = por %p161, %p162
      %p164 = scmp.ne.s32.totalorder %s150, %s151
      %p165 = scmp.eq.s32.totalorder %s28, 1
      %p166 = por %p164, %p165
      %p168 = scmp.ne.s32.totalorder %s151, %s167
      %p169 = scmp.eq.s32.totalorder %s28, 0
      %p170 = por %p168, %p169
      %s171 = ssub.s32 %s22, %s29
      %p172 = scmp.eq.s32.totalorder %s171, 0
      %s174 = sadd.s32 %s173, 1
      %s175 = scalar_select %p172, %s173, %s174
      %p178 = pneg %p172
      %p179 = scmp.eq.s32.totalorder %s22, 1
      %p180 = por %p178, %p179
      %p181 = scmp.ne.s32.totalorder %s173, %s176
      %p182 = scmp.eq.s32.totalorder %s22, 0
      %p183 = por %p181, %p182
      %p184 = scmp.ne.s32.totalorder %s173, %s176
      %p185 = scmp.eq.s32.totalorder %s27, 1
      %p186 = por %p184, %p185
      %p187 = scmp.ne.s32.totalorder %s176, %s177
      %p188 = scmp.eq.s32.totalorder %s27, 0
      %p189 = por %p187, %p188
      %p190 = scmp.ne.s32.totalorder %s176, %s177
      %p191 = scmp.eq.s32.totalorder %s28, 1
      %p192 = por %p190, %p191
      %p194 = scmp.ne.s32.totalorder %s177, %s193
      %p195 = scmp.eq.s32.totalorder %s28, 0
      %p196 = por %p194, %p195
      %s197 = ssub.s32 %s22, %s29
      %p198 = scmp.eq.s32.totalorder %s197, 0
      %s200 = sadd.s32 %s199, 1
      %s201 = scalar_select %p198, %s199, %s200
      %p204 = pneg %p198
      %p205 = scmp.eq.s32.totalorder %s22, 1
      %p206 = por %p204, %p205
      %p207 = scmp.ne.s32.totalorder %s199, %s202
      %p208 = scmp.eq.s32.totalorder %s22, 0
      %p209 = por %p207, %p208
      %p210 = scmp.ne.s32.totalorder %s199, %s202
      %p211 = scmp.eq.s32.totalorder %s27, 1
      %p212 = por %p210, %p211
      %p213 = scmp.ne.s32.totalorder %s202, %s203
      %p214 = scmp.eq.s32.totalorder %s27, 0
      %p215 = por %p213, %p214
      %p216 = scmp.ne.s32.totalorder %s202, %s203
      %p217 = scmp.eq.s32.totalorder %s28, 1
      %p218 = por %p216, %p217
      %p220 = scmp.ne.s32.totalorder %s203, %s219
      %p221 = scmp.eq.s32.totalorder %s28, 0
      %p222 = por %p220, %p221
      %s223 = ssub.s32 %s22, %s29
      %p224 = scmp.eq.s32.totalorder %s223, 0
      %s226 = sadd.s32 %s225, 1
      %s227 = scalar_select %p224, %s225, %s226
      %p230 = pneg %p224
      %p231 = scmp.eq.s32.totalorder %s22, 1
      %p232 = por %p230, %p231
      %p233 = scmp.ne.s32.totalorder %s225, %s228
      %p234 = scmp.eq.s32.totalorder %s22, 0
      %p235 = por %p233, %p234
      %p236 = scmp.ne.s32.totalorder %s225, %s228
      %p237 = scmp.eq.s32.totalorder %s27, 1
      %p238 = por %p236, %p237
      %p239 = scmp.ne.s32.totalorder %s228, %s229
      %p240 = scmp.eq.s32.totalorder %s27, 0
      %p241 = por %p239, %p240
      %p242 = scmp.ne.s32.totalorder %s228, %s229
      %p243 = scmp.eq.s32.totalorder %s28, 1
      %p244 = por %p242, %p243
      %p246 = scmp.ne.s32.totalorder %s229, %s245
      %p247 = scmp.eq.s32.totalorder %s28, 0
      %p248 = por %p246, %p247
      %p249 = scmp.le.s32.totalorder 1, %s22
      %p250 = scmp.lt.s32.totalorder %s22, 3
      %p251 = pnand %p249, %p250
      %p252 = pneg %p251
      // Predicated region
      $region9: #{tpu_custom_call.1} parent=5 // pred_check
        _
      $region10: #{tpu_custom_call.1} parent=5 // pred_check_branch
        %254 = sbr.rel (%p251) target = $region12
      $region11: #{tpu_custom_call.1} parent=5 // pred_region
        %s255 = ssub.s32 %s22, 1
        // Predicated region
        $region13: #{tpu_custom_call.1} parent=11 // pred_check
          %p256 = pneg %p43
        $region14: #{tpu_custom_call.1} parent=11 // pred_check_branch
          %258 = sbr.rel (%p256) target = $region16
        $region15: #{tpu_custom_call.1} parent=11 // pred_region
          %s260 = ssub.s32 12288, 12288
          %261 = vsyncadd [#allocation3], %s260
          %s262 = sshll.u32 [#allocation2], 4
          %s263 = int_to_ptr.vmem [resolvable:$true] %s262
          %268 = dma.hbm_to_vmem [thread:$0]  %s0, 12288, %s263, [#allocation3], 128, 128, 8
        $region16: #{tpu_custom_call.1} parent=11 // pred_fallthru
          _
        // Predicated region
        $region17: #{tpu_custom_call.1} parent=11 // pred_check
          %p269 = pneg %p64
        $region18: #{tpu_custom_call.1} parent=11 // pred_check_branch
          %271 = sbr.rel (%p269) target = $region20
        $region19: #{tpu_custom_call.1} parent=11 // pred_region
          %s273 = ssub.s32 8192, 8192
          %274 = vsyncadd [#allocation6], %s273
          %s275 = sshll.u32 [#allocation5], 4
          %s276 = int_to_ptr.vmem [resolvable:$true] %s275
          %281 = dma.hbm_to_vmem [thread:$0]  %s1, 8192, %s276, [#allocation6], 128, 128, 8
        $region20: #{tpu_custom_call.1} parent=11 // pred_fallthru
          _
        // Predicated region
        $region21: #{tpu_custom_call.1} parent=11 // pred_check
          %p282 = pneg %p85
        $region22: #{tpu_custom_call.1} parent=11 // pred_check_branch
          %284 = sbr.rel (%p282) target = $region24
        $region23: #{tpu_custom_call.1} parent=11 // pred_region
          %s286 = ssub.s32 4096, 4096
          %287 = vsyncadd [#allocation6], %s286
          %s288 = sshll.u32 [#allocation7], 4
          %s289 = int_to_ptr.vmem [resolvable:$true] %s288
          %294 = dma.hbm_to_vmem [thread:$0]  %s2, 4096, %s289, [#allocation6], 128, 128, 8
        $region24: #{tpu_custom_call.1} parent=11 // pred_fallthru
          _
      $region12: #{tpu_custom_call.1} parent=5 // pred_fallthru
        _
      %p295 = scmp.lt.s32.totalorder %s22, 2
      // Predicated region
      $region25: #{tpu_custom_call.1} parent=5 // pred_check
        %p296 = pneg %p295
      $region26: #{tpu_custom_call.1} parent=5 // pred_check_branch
        %298 = sbr.rel (%p296) target = $region28
      $region27: #{tpu_custom_call.1} parent=5 // pred_region
        // Predicated region
        $region29: #{tpu_custom_call.1} parent=27 // pred_check
          %p299 = pneg %p105
        $region30: #{tpu_custom_call.1} parent=27 // pred_check_branch
          %301 = sbr.rel (%p299) target = $region32
        $region31: #{tpu_custom_call.1} parent=27 // pred_region
          %p302 = scmp.lt.s32.totalorder %s22, 1
          %s303 = scalar_select %p302, %s22, 1
          %s304 = scalar_lea.vmem %s3, %s303
        $region32: #{tpu_custom_call.1} parent=27 // pred_fallthru
          _
        // Predicated region
        $region33: #{tpu_custom_call.1} parent=27 // pred_check
          %p305 = pneg %p131
        $region34: #{tpu_custom_call.1} parent=27 // pred_check_branch
          %307 = sbr.rel (%p305) target = $region36
        $region35: #{tpu_custom_call.1} parent=27 // pred_region
          %p308 = scmp.lt.s32.totalorder %s22, 1
          %s309 = scalar_select %p308, %s22, 1
          %s310 = scalar_lea.vmem %s4, %s309
        $region36: #{tpu_custom_call.1} parent=27 // pred_fallthru
          _
        // Predicated region
        $region37: #{tpu_custom_call.1} parent=27 // pred_check
          %p311 = pneg %p157
        $region38: #{tpu_custom_call.1} parent=27 // pred_check_branch
          %313 = sbr.rel (%p311) target = $region40
        $region39: #{tpu_custom_call.1} parent=27 // pred_region
          %p314 = scmp.lt.s32.totalorder %s22, 1
          %s315 = scalar_select %p314, %s22, 1
          %s316 = scalar_lea.vmem %s5, %s315
        $region40: #{tpu_custom_call.1} parent=27 // pred_fallthru
          _
        // Predicated region
        $region41: #{tpu_custom_call.1} parent=27 // pred_check
          %p317 = pneg %p183
        $region42: #{tpu_custom_call.1} parent=27 // pred_check_branch
          %319 = sbr.rel (%p317) target = $region44
        $region43: #{tpu_custom_call.1} parent=27 // pred_region
          %s320 = sand.u32 %s22, 1
          %s321 = scalar_lea.sflag [#allocation9], %s320
          %s322 = sand.u32 %s173, 1
          %s323 = smul.addr %s322, 256
          %s324 = scalar_lea.vmem [#allocation8], %s323
          %s326 = ssub.s32 4096, 4096
          %327 = vsyncadd %s321, %s326
          %s328 = smul.addr %s22, 128
          %s329 = scalar_lea.hbm %s6, %s328
          %s330 = sshll.u32 %s324, 4
          %s331 = int_to_ptr.vmem [resolvable:$true] %s330
          %336 = dma.hbm_to_vmem [thread:$0]  %s329, 4096, %s331, %s321, 256, 128, 8
        $region44: #{tpu_custom_call.1} parent=27 // pred_fallthru
          _
        // Predicated region
        $region45: #{tpu_custom_call.1} parent=27 // pred_check
          %p337 = pneg %p209
        $region46: #{tpu_custom_call.1} parent=27 // pred_check_branch
          %339 = sbr.rel (%p337) target = $region48
        $region47: #{tpu_custom_call.1} parent=27 // pred_region
          %s340 = sand.u32 %s22, 1
          %s341 = scalar_lea.sflag [#allocation9], %s340
          %s342 = sand.u32 %s199, 1
          %s343 = smul.addr %s342, 128
          %s344 = scalar_lea.vmem [#allocation10], %s343
          %s346 = ssub.s32 2048, 2048
          %347 = vsyncadd %s341, %s346
          %s348 = smul.addr %s22, 64
          %s349 = scalar_lea.hbm %s7, %s348
          %s350 = sshll.u32 %s344, 4
          %s351 = int_to_ptr.vmem [resolvable:$true] %s350
          %356 = dma.hbm_to_vmem [thread:$0]  %s349, 2048, %s351, %s341, 128, 64, 4
        $region48: #{tpu_custom_call.1} parent=27 // pred_fallthru
          _
      $region28: #{tpu_custom_call.1} parent=5 // pred_fallthru
        _
      %p357 = scmp.le.s32.totalorder 1, %s22
      %p358 = scmp.lt.s32.totalorder %s22, 3
      %p359 = pnand %p357, %p358
      %p360 = pneg %p359
      // Predicated region
      $region49: #{tpu_custom_call.1} parent=5 // pred_check
        _
      $region50: #{tpu_custom_call.1} parent=5 // pred_check_branch
        %362 = sbr.rel (%p359) target = $region52
      $region51: #{tpu_custom_call.1} parent=5 // pred_region
        %s363 = ssub.s32 %s22, 1
        // Predicated region
        $region53: #{tpu_custom_call.1} parent=51 // pred_check
          %p364 = pneg %p43
        $region54: #{tpu_custom_call.1} parent=51 // pred_check_branch
          %366 = sbr.rel (%p364) target = $region56
        $region55: #{tpu_custom_call.1} parent=51 // pred_region
          %367 = dma.done [#allocation3], 12288
        $region56: #{tpu_custom_call.1} parent=51 // pred_fallthru
          _
        // Predicated region
        $region57: #{tpu_custom_call.1} parent=51 // pred_check
          %p368 = pneg %p64
        $region58: #{tpu_custom_call.1} parent=51 // pred_check_branch
          %370 = sbr.rel (%p368) target = $region60
        $region59: #{tpu_custom_call.1} parent=51 // pred_region
          %371 = dma.done [#allocation6], 8192
        $region60: #{tpu_custom_call.1} parent=51 // pred_fallthru
          _
        // Predicated region
        $region61: #{tpu_custom_call.1} parent=51 // pred_check
          %p372 = pneg %p85
        $region62: #{tpu_custom_call.1} parent=51 // pred_check_branch
          %374 = sbr.rel (%p372) target = $region64
        $region63: #{tpu_custom_call.1} parent=51 // pred_region
          %375 = dma.done [#allocation6], 4096
        $region64: #{tpu_custom_call.1} parent=51 // pred_fallthru
          _
        %s376 = sand.u32 %s27, 1
        %s377 = scalar_lea.sflag [#allocation9], %s376
        %s378 = sand.u32 %s176, 1
        %s379 = smul.addr %s378, 256
        %s380 = scalar_lea.vmem [#allocation8], %s379
        // Predicated region
        $region65: #{tpu_custom_call.1} parent=51 // pred_check
          %p381 = pneg %p189
        $region66: #{tpu_custom_call.1} parent=51 // pred_check_branch
          %383 = sbr.rel (%p381) target = $region68
        $region67: #{tpu_custom_call.1} parent=51 // pred_region
          %384 = dma.done %s377, 4096
        $region68: #{tpu_custom_call.1} parent=51 // pred_fallthru
          _
        %s385 = sand.u32 %s27, 1
        %s386 = scalar_lea.sflag [#allocation9], %s385
        %s387 = sand.u32 %s202, 1
        %s388 = smul.addr %s387, 128
        %s389 = scalar_lea.vmem [#allocation10], %s388
        // Predicated region
        $region69: #{tpu_custom_call.1} parent=51 // pred_check
          %p390 = pneg %p215
        $region70: #{tpu_custom_call.1} parent=51 // pred_check_branch
          %392 = sbr.rel (%p390) target = $region72
        $region71: #{tpu_custom_call.1} parent=51 // pred_region
          %393 = dma.done %s386, 2048
        $region72: #{tpu_custom_call.1} parent=51 // pred_fallthru
          _
        %p394 = pneg %p43
        %p395 = pneg %p40
        %p396 = pneg %p64
        %p397 = pneg %p61
        %p398 = pneg %p85
        %p399 = pneg %p82
        %p400 = scmp.lt.s32.totalorder %s27, 1
        %s401 = scalar_select %p400, %s27, 1
        %s402 = scalar_lea.vmem %s3, %s401
        %p403 = pneg %p111
        %p404 = pneg %p108
        %p405 = scmp.lt.s32.totalorder %s27, 1
        %s406 = scalar_select %p405, %s27, 1
        %s407 = scalar_lea.vmem %s4, %s406
        %p408 = pneg %p137
        %p409 = pneg %p134
        %p410 = scmp.lt.s32.totalorder %s27, 1
        %s411 = scalar_select %p410, %s27, 1
        %s412 = scalar_lea.vmem %s5, %s411
        %p413 = pneg %p163
        %p414 = pneg %p160
        %s415 = sand.u32 %s27, 1
        %s416 = scalar_lea.sflag [#allocation9], %s415
        %s417 = sand.u32 %s176, 1
        %s418 = smul.addr %s417, 256
        %s419 = scalar_lea.vmem [#allocation8], %s418
        %p420 = pneg %p189
        %p421 = pneg %p186
        %s422 = sand.u32 %s27, 1
        %s423 = scalar_lea.sflag [#allocation9], %s422
        %s424 = sand.u32 %s202, 1
        %s425 = smul.addr %s424, 128
        %s426 = scalar_lea.vmem [#allocation10], %s425
        %p427 = pneg %p215
        %p428 = pneg %p212
        %p429 = pneg %p241
        %p430 = pneg %p238
        %s431 = sand.u32 %s228, 1
        %s432 = scalar_lea.sflag [#allocation4], %s431
        %s433 = sand.u32 %s228, 1
        %s434 = smul.addr %s433, 256
        %s435 = scalar_lea.vmem [#allocation11], %s434
        %p436 = scmp.lt.s32.totalorder %s27, 1
        %s437 = scalar_select %p436, %s27, 1
        %s438 = scalar_lea.vmem %s3, %s437
        %p439 = scmp.lt.s32.totalorder %s27, 1
        %s440 = scalar_select %p439, %s27, 1
        %s441 = scalar_lea.vmem %s4, %s440
        %p442 = scmp.lt.s32.totalorder %s27, 1
        %s443 = scalar_select %p442, %s27, 1
        %s444 = scalar_lea.vmem %s5, %s443
        %v446 = vld [vmem:[%s380] sm:$0xff]
        %v447 = vld [vmem:[%s380 + $0x8] sm:$0xff]
        %v448 = vld [vmem:[%s380 + $0x10] sm:$0xff]
        %v449 = vld [vmem:[%s380 + $0x18] sm:$0xff]
        %v450 = vld [vmem:[%s380 + $0x20] sm:$0xff]
        %v451 = vld [vmem:[%s380 + $0x28] sm:$0xff]
        %v452 = vld [vmem:[%s380 + $0x30] sm:$0xff]
        %v453 = vld [vmem:[%s380 + $0x38] sm:$0xff]
        %v454 = vld [vmem:[%s380 + $0x40] sm:$0xff]
        %v455 = vld [vmem:[%s380 + $0x48] sm:$0xff]
        %v456 = vld [vmem:[%s380 + $0x50] sm:$0xff]
        %v457 = vld [vmem:[%s380 + $0x58] sm:$0xff]
        %v458 = vld [vmem:[%s380 + $0x60] sm:$0xff]
        %v459 = vld [vmem:[%s380 + $0x68] sm:$0xff]
        %v460 = vld [vmem:[%s380 + $0x70] sm:$0xff]
        %v461 = vld [vmem:[%s380 + $0x78] sm:$0xff]
        %v462 = vld [vmem:[%s380 + $0x80] sm:$0xff]
        %v463 = vld [vmem:[%s380 + $0x88] sm:$0xff]
        %v464 = vld [vmem:[%s380 + $0x90] sm:$0xff]
        %v465 = vld [vmem:[%s380 + $0x98] sm:$0xff]
        %v466 = vld [vmem:[%s380 + $0xa0] sm:$0xff]
        %v467 = vld [vmem:[%s380 + $0xa8] sm:$0xff]
        %v468 = vld [vmem:[%s380 + $0xb0] sm:$0xff]
        %v469 = vld [vmem:[%s380 + $0xb8] sm:$0xff]
        %v470 = vld [vmem:[%s380 + $0xc0] sm:$0xff]
        %v471 = vld [vmem:[%s380 + $0xc8] sm:$0xff]
        %v472 = vld [vmem:[%s380 + $0xd0] sm:$0xff]
        %v473 = vld [vmem:[%s380 + $0xd8] sm:$0xff]
        %v474 = vld [vmem:[%s380 + $0xe0] sm:$0xff]
        %v475 = vld [vmem:[%s380 + $0xe8] sm:$0xff]
        %v476 = vld [vmem:[%s380 + $0xf0] sm:$0xff]
        %v477 = vld [vmem:[%s380 + $0xf8] sm:$0xff]
        %v478 = vpack.c.bf16 %v447, %v446
        %v479 = vpack.c.bf16 %v449, %v448
        %v480 = vpack.c.bf16 %v451, %v450
        %v481 = vpack.c.bf16 %v453, %v452
        %v482 = vpack.c.bf16 %v455, %v454
        %v483 = vpack.c.bf16 %v457, %v456
        %v484 = vpack.c.bf16 %v459, %v458
        %v485 = vpack.c.bf16 %v461, %v460
        %v486 = vpack.c.bf16 %v463, %v462
        %v487 = vpack.c.bf16 %v465, %v464
        %v488 = vpack.c.bf16 %v467, %v466
        %v489 = vpack.c.bf16 %v469, %v468
        %v490 = vpack.c.bf16 %v471, %v470
        %v491 = vpack.c.bf16 %v473, %v472
        %v492 = vpack.c.bf16 %v475, %v474
        %v493 = vpack.c.bf16 %v477, %v476
        %v494 = vld [vmem:[%s389] sm:$0xf]
        %v495 = vld [vmem:[%s389 + $0x4] sm:$0xf]
        %v496 = vld [vmem:[%s389 + $0x8] sm:$0xf]
        %v497 = vld [vmem:[%s389 + $0xc] sm:$0xf]
        %v498 = vld [vmem:[%s389 + $0x10] sm:$0xf]
        %v499 = vld [vmem:[%s389 + $0x14] sm:$0xf]
        %v500 = vld [vmem:[%s389 + $0x18] sm:$0xf]
        %v501 = vld [vmem:[%s389 + $0x1c] sm:$0xf]
        %v502 = vld [vmem:[%s389 + $0x20] sm:$0xf]
        %v503 = vld [vmem:[%s389 + $0x24] sm:$0xf]
        %v504 = vld [vmem:[%s389 + $0x28] sm:$0xf]
        %v505 = vld [vmem:[%s389 + $0x2c] sm:$0xf]
        %v506 = vld [vmem:[%s389 + $0x30] sm:$0xf]
        %v507 = vld [vmem:[%s389 + $0x34] sm:$0xf]
        %v508 = vld [vmem:[%s389 + $0x38] sm:$0xf]
        %v509 = vld [vmem:[%s389 + $0x3c] sm:$0xf]
        %v510 = vld [vmem:[%s389 + $0x40] sm:$0xf]
        %v511 = vld [vmem:[%s389 + $0x44] sm:$0xf]
        %v512 = vld [vmem:[%s389 + $0x48] sm:$0xf]
        %v513 = vld [vmem:[%s389 + $0x4c] sm:$0xf]
        %v514 = vld [vmem:[%s389 + $0x50] sm:$0xf]
        %v515 = vld [vmem:[%s389 + $0x54] sm:$0xf]
        %v516 = vld [vmem:[%s389 + $0x58] sm:$0xf]
        %v517 = vld [vmem:[%s389 + $0x5c] sm:$0xf]
        %v518 = vld [vmem:[%s389 + $0x60] sm:$0xf]
        %v519 = vld [vmem:[%s389 + $0x64] sm:$0xf]
        %v520 = vld [vmem:[%s389 + $0x68] sm:$0xf]
        %v521 = vld [vmem:[%s389 + $0x6c] sm:$0xf]
        %v522 = vld [vmem:[%s389 + $0x70] sm:$0xf]
        %v523 = vld [vmem:[%s389 + $0x74] sm:$0xf]
        %v524 = vld [vmem:[%s389 + $0x78] sm:$0xf]
        %v525 = vld [vmem:[%s389 + $0x7c] sm:$0xf]
        %v526 = vld [vmem:[#allocation2] sm:$0xff]
        %v527 = vld [vmem:[#allocation2 + $0x8] sm:$0xff]
        %v528 = vld [vmem:[#allocation2 + $0x10] sm:$0xff]
        %v529 = vld [vmem:[#allocation2 + $0x18] sm:$0xff]
        %v530 = vld [vmem:[#allocation2 + $0x20] sm:$0xff]
        %v531 = vld [vmem:[#allocation2 + $0x28] sm:$0xff]
        %v532 = vld [vmem:[#allocation2 + $0x30] sm:$0xff]
        %v533 = vld [vmem:[#allocation2 + $0x38] sm:$0xff]
        %v534 = vld [vmem:[#allocation2 + $0x40] sm:$0xff]
        %v535 = vld [vmem:[#allocation2 + $0x48] sm:$0xff]
        %v536 = vld [vmem:[#allocation2 + $0x50] sm:$0xff]
        %v537 = vld [vmem:[#allocation2 + $0x58] sm:$0xff]
        %v538 = vld [vmem:[#allocation2 + $0x60] sm:$0xff]
        %v539 = vld [vmem:[#allocation2 + $0x68] sm:$0xff]
        %v540 = vld [vmem:[#allocation2 + $0x70] sm:$0xff]
        %v541 = vld [vmem:[#allocation2 + $0x78] sm:$0xff]
        %v542 = vld [vmem:[#allocation2 + $0x80] sm:$0xff]
        %v543 = vld [vmem:[#allocation2 + $0x88] sm:$0xff]
        %v544 = vld [vmem:[#allocation2 + $0x90] sm:$0xff]
        %v545 = vld [vmem:[#allocation2 + $0x98] sm:$0xff]
        %v546 = vld [vmem:[#allocation2 + $0xa0] sm:$0xff]
        %v547 = vld [vmem:[#allocation2 + $0xa8] sm:$0xff]
        %v548 = vld [vmem:[#allocation2 + $0xb0] sm:$0xff]
        %v549 = vld [vmem:[#allocation2 + $0xb8] sm:$0xff]
        %v550 = vld [vmem:[#allocation2 + $0xc0] sm:$0xff]
        %v551 = vld [vmem:[#allocation2 + $0xc8] sm:$0xff]
        %v552 = vld [vmem:[#allocation2 + $0xd0] sm:$0xff]
        %v553 = vld [vmem:[#allocation2 + $0xd8] sm:$0xff]
        %v554 = vld [vmem:[#allocation2 + $0xe0] sm:$0xff]
        %v555 = vld [vmem:[#allocation2 + $0xe8] sm:$0xff]
        %v556 = vld [vmem:[#allocation2 + $0xf0] sm:$0xff]
        %v557 = vld [vmem:[#allocation2 + $0xf8] sm:$0xff]
        %v558 = vld [vmem:[#allocation2 + $0x100] sm:$0xff]
        %v559 = vld [vmem:[#allocation2 + $0x108] sm:$0xff]
        %v560 = vld [vmem:[#allocation2 + $0x110] sm:$0xff]
        %v561 = vld [vmem:[#allocation2 + $0x118] sm:$0xff]
        %v562 = vld [vmem:[#allocation2 + $0x120] sm:$0xff]
        %v563 = vld [vmem:[#allocation2 + $0x128] sm:$0xff]
        %v564 = vld [vmem:[#allocation2 + $0x130] sm:$0xff]
        %v565 = vld [vmem:[#allocation2 + $0x138] sm:$0xff]
        %v566 = vld [vmem:[#allocation2 + $0x140] sm:$0xff]
        %v567 = vld [vmem:[#allocation2 + $0x148] sm:$0xff]
        %v568 = vld [vmem:[#allocation2 + $0x150] sm:$0xff]
        %v569 = vld [vmem:[#allocation2 + $0x158] sm:$0xff]
        %v570 = vld [vmem:[#allocation2 + $0x160] sm:$0xff]
        %v571 = vld [vmem:[#allocation2 + $0x168] sm:$0xff]
        %v572 = vld [vmem:[#allocation2 + $0x170] sm:$0xff]
        %v573 = vld [vmem:[#allocation2 + $0x178] sm:$0xff]
        %v574 = vld [vmem:[#allocation2 + $0x180] sm:$0xff]
        %v575 = vld [vmem:[#allocation2 + $0x188] sm:$0xff]
        %v576 = vld [vmem:[#allocation2 + $0x190] sm:$0xff]
        %v577 = vld [vmem:[#allocation2 + $0x198] sm:$0xff]
        %v578 = vld [vmem:[#allocation2 + $0x1a0] sm:$0xff]
        %v579 = vld [vmem:[#allocation2 + $0x1a8] sm:$0xff]
        %v580 = vld [vmem:[#allocation2 + $0x1b0] sm:$0xff]
        %v581 = vld [vmem:[#allocation2 + $0x1b8] sm:$0xff]
        %v582 = vld [vmem:[#allocation2 + $0x1c0] sm:$0xff]
        %v583 = vld [vmem:[#allocation2 + $0x1c8] sm:$0xff]
        %v584 = vld [vmem:[#allocation2 + $0x1d0] sm:$0xff]
        %v585 = vld [vmem:[#allocation2 + $0x1d8] sm:$0xff]
        %v586 = vld [vmem:[#allocation2 + $0x1e0] sm:$0xff]
        %v587 = vld [vmem:[#allocation2 + $0x1e8] sm:$0xff]
        %v588 = vld [vmem:[#allocation2 + $0x1f0] sm:$0xff]
        %v589 = vld [vmem:[#allocation2 + $0x1f8] sm:$0xff]
        %v590 = vld [vmem:[#allocation2 + $0x200] sm:$0xff]
        %v591 = vld [vmem:[#allocation2 + $0x208] sm:$0xff]
        %v592 = vld [vmem:[#allocation2 + $0x210] sm:$0xff]
        %v593 = vld [vmem:[#allocation2 + $0x218] sm:$0xff]
        %v594 = vld [vmem:[#allocation2 + $0x220] sm:$0xff]
        %v595 = vld [vmem:[#allocation2 + $0x228] sm:$0xff]
        %v596 = vld [vmem:[#allocation2 + $0x230] sm:$0xff]
        %v597 = vld [vmem:[#allocation2 + $0x238] sm:$0xff]
        %v598 = vld [vmem:[#allocation2 + $0x240] sm:$0xff]
        %v599 = vld [vmem:[#allocation2 + $0x248] sm:$0xff]
        %v600 = vld [vmem:[#allocation2 + $0x250] sm:$0xff]
        %v601 = vld [vmem:[#allocation2 + $0x258] sm:$0xff]
        %v602 = vld [vmem:[#allocation2 + $0x260] sm:$0xff]
        %v603 = vld [vmem:[#allocation2 + $0x268] sm:$0xff]
        %v604 = vld [vmem:[#allocation2 + $0x270] sm:$0xff]
        %v605 = vld [vmem:[#allocation2 + $0x278] sm:$0xff]
        %v606 = vld [vmem:[#allocation2 + $0x280] sm:$0xff]
        %v607 = vld [vmem:[#allocation2 + $0x288] sm:$0xff]
        %v608 = vld [vmem:[#allocation2 + $0x290] sm:$0xff]
        %v609 = vld [vmem:[#allocation2 + $0x298] sm:$0xff]
        %v610 = vld [vmem:[#allocation2 + $0x2a0] sm:$0xff]
        %v611 = vld [vmem:[#allocation2 + $0x2a8] sm:$0xff]
        %v612 = vld [vmem:[#allocation2 + $0x2b0] sm:$0xff]
        %v613 = vld [vmem:[#allocation2 + $0x2b8] sm:$0xff]
        %v614 = vld [vmem:[#allocation2 + $0x2c0] sm:$0xff]
        %v615 = vld [vmem:[#allocation2 + $0x2c8] sm:$0xff]
        %v616 = vld [vmem:[#allocation2 + $0x2d0] sm:$0xff]
        %v617 = vld [vmem:[#allocation2 + $0x2d8] sm:$0xff]
        %v618 = vld [vmem:[#allocation2 + $0x2e0] sm:$0xff]
        %v619 = vld [vmem:[#allocation2 + $0x2e8] sm:$0xff]
        %v620 = vld [vmem:[#allocation2 + $0x2f0] sm:$0xff]
        %v621 = vld [vmem:[#allocation2 + $0x2f8] sm:$0xff]
        %v718 = vunpack.c.l.b16 %v526
        %v719 = vunpack.c.h.b16 %v526
        %v720 = vunpack.c.l.b16 %v527
        %v721 = vunpack.c.h.b16 %v527
        %v722 = vunpack.c.l.b16 %v528
        %v723 = vunpack.c.h.b16 %v528
        %v724 = vunpack.c.l.b16 %v529
        %v725 = vunpack.c.h.b16 %v529
        %v726 = vunpack.c.l.b16 %v530
        %v727 = vunpack.c.h.b16 %v530
        %v728 = vunpack.c.l.b16 %v531
        %v729 = vunpack.c.h.b16 %v531
        %v730 = vunpack.c.l.b16 %v532
        %v731 = vunpack.c.h.b16 %v532
        %v732 = vunpack.c.l.b16 %v533
        %v733 = vunpack.c.h.b16 %v533
        %v734 = vunpack.c.l.b16 %v534
        %v735 = vunpack.c.h.b16 %v534
        %v736 = vunpack.c.l.b16 %v535
        %v737 = vunpack.c.h.b16 %v535
        %v738 = vunpack.c.l.b16 %v536
        %v739 = vunpack.c.h.b16 %v536
        %v740 = vunpack.c.l.b16 %v537
        %v741 = vunpack.c.h.b16 %v537
        %v742 = vunpack.c.l.b16 %v538
        %v743 = vunpack.c.h.b16 %v538
        %v744 = vunpack.c.l.b16 %v539
        %v745 = vunpack.c.h.b16 %v539
        %v746 = vunpack.c.l.b16 %v540
        %v747 = vunpack.c.h.b16 %v540
        %v748 = vunpack.c.l.b16 %v541
        %v749 = vunpack.c.h.b16 %v541
        %v750 = vunpack.c.l.b16 %v542
        %v751 = vunpack.c.h.b16 %v542
        %v752 = vunpack.c.l.b16 %v543
        %v753 = vunpack.c.h.b16 %v543
        %v754 = vunpack.c.l.b16 %v544
        %v755 = vunpack.c.h.b16 %v544
        %v756 = vunpack.c.l.b16 %v545
        %v757 = vunpack.c.h.b16 %v545
        %v758 = vunpack.c.l.b16 %v546
        %v759 = vunpack.c.h.b16 %v546
        %v760 = vunpack.c.l.b16 %v547
        %v761 = vunpack.c.h.b16 %v547
        %v762 = vunpack.c.l.b16 %v548
        %v763 = vunpack.c.h.b16 %v548
        %v764 = vunpack.c.l.b16 %v549
        %v765 = vunpack.c.h.b16 %v549
        %v766 = vunpack.c.l.b16 %v550
        %v767 = vunpack.c.h.b16 %v550
        %v768 = vunpack.c.l.b16 %v551
        %v769 = vunpack.c.h.b16 %v551
        %v770 = vunpack.c.l.b16 %v552
        %v771 = vunpack.c.h.b16 %v552
        %v772 = vunpack.c.l.b16 %v553
        %v773 = vunpack.c.h.b16 %v553
        %v774 = vunpack.c.l.b16 %v554
        %v775 = vunpack.c.h.b16 %v554
        %v776 = vunpack.c.l.b16 %v555
        %v777 = vunpack.c.h.b16 %v555
        %v778 = vunpack.c.l.b16 %v556
        %v779 = vunpack.c.h.b16 %v556
        %v780 = vunpack.c.l.b16 %v557
        %v781 = vunpack.c.h.b16 %v557
        %v782 = vunpack.c.l.b16 %v558
        %v783 = vunpack.c.h.b16 %v558
        %v784 = vunpack.c.l.b16 %v559
        %v785 = vunpack.c.h.b16 %v559
        %v786 = vunpack.c.l.b16 %v560
        %v787 = vunpack.c.h.b16 %v560
        %v788 = vunpack.c.l.b16 %v561
        %v789 = vunpack.c.h.b16 %v561
        %v790 = vunpack.c.l.b16 %v562
        %v791 = vunpack.c.h.b16 %v562
        %v792 = vunpack.c.l.b16 %v563
        %v793 = vunpack.c.h.b16 %v563
        %v794 = vunpack.c.l.b16 %v564
        %v795 = vunpack.c.h.b16 %v564
        %v796 = vunpack.c.l.b16 %v565
        %v797 = vunpack.c.h.b16 %v565
        %v798 = vunpack.c.l.b16 %v566
        %v799 = vunpack.c.h.b16 %v566
        %v800 = vunpack.c.l.b16 %v567
        %v801 = vunpack.c.h.b16 %v567
        %v802 = vunpack.c.l.b16 %v568
        %v803 = vunpack.c.h.b16 %v568
        %v804 = vunpack.c.l.b16 %v569
        %v805 = vunpack.c.h.b16 %v569
        %v806 = vunpack.c.l.b16 %v570
        %v807 = vunpack.c.h.b16 %v570
        %v808 = vunpack.c.l.b16 %v571
        %v809 = vunpack.c.h.b16 %v571
        %v810 = vunpack.c.l.b16 %v572
        %v811 = vunpack.c.h.b16 %v572
        %v812 = vunpack.c.l.b16 %v573
        %v813 = vunpack.c.h.b16 %v573
        %v814 = vunpack.c.l.b16 %v574
        %v815 = vunpack.c.h.b16 %v574
        %v816 = vunpack.c.l.b16 %v575
        %v817 = vunpack.c.h.b16 %v575
        %v818 = vunpack.c.l.b16 %v576
        %v819 = vunpack.c.h.b16 %v576
        %v820 = vunpack.c.l.b16 %v577
        %v821 = vunpack.c.h.b16 %v577
        %v822 = vunpack.c.l.b16 %v578
        %v823 = vunpack.c.h.b16 %v578
        %v824 = vunpack.c.l.b16 %v579
        %v825 = vunpack.c.h.b16 %v579
        %v826 = vunpack.c.l.b16 %v580
        %v827 = vunpack.c.h.b16 %v580
        %v828 = vunpack.c.l.b16 %v581
        %v829 = vunpack.c.h.b16 %v581
        %v830 = vunpack.c.l.b16 %v582
        %v831 = vunpack.c.h.b16 %v582
        %v832 = vunpack.c.l.b16 %v583
        %v833 = vunpack.c.h.b16 %v583
        %v834 = vunpack.c.l.b16 %v584
        %v835 = vunpack.c.h.b16 %v584
        %v836 = vunpack.c.l.b16 %v585
        %v837 = vunpack.c.h.b16 %v585
        %v838 = vunpack.c.l.b16 %v586
        %v839 = vunpack.c.h.b16 %v586
        %v840 = vunpack.c.l.b16 %v587
        %v841 = vunpack.c.h.b16 %v587
        %v842 = vunpack.c.l.b16 %v588
        %v843 = vunpack.c.h.b16 %v588
        %v844 = vunpack.c.l.b16 %v589
        %v845 = vunpack.c.h.b16 %v589
        %v846 = vunpack.c.l.b16 %v590
        %v847 = vunpack.c.h.b16 %v590
        %v848 = vunpack.c.l.b16 %v591
        %v849 = vunpack.c.h.b16 %v591
        %v850 = vunpack.c.l.b16 %v592
        %v851 = vunpack.c.h.b16 %v592
        %v852 = vunpack.c.l.b16 %v593
        %v853 = vunpack.c.h.b16 %v593
        %v854 = vunpack.c.l.b16 %v594
        %v855 = vunpack.c.h.b16 %v594
        %v856 = vunpack.c.l.b16 %v595
        %v857 = vunpack.c.h.b16 %v595
        %v858 = vunpack.c.l.b16 %v596
        %v859 = vunpack.c.h.b16 %v596
        %v860 = vunpack.c.l.b16 %v597
        %v861 = vunpack.c.h.b16 %v597
        %v862 = vunpack.c.l.b16 %v598
        %v863 = vunpack.c.h.b16 %v598
        %v864 = vunpack.c.l.b16 %v599
        %v865 = vunpack.c.h.b16 %v599
        %v866 = vunpack.c.l.b16 %v600
        %v867 = vunpack.c.h.b16 %v600
        %v868 = vunpack.c.l.b16 %v601
        %v869 = vunpack.c.h.b16 %v601
        %v870 = vunpack.c.l.b16 %v602
        %v871 = vunpack.c.h.b16 %v602
        %v872 = vunpack.c.l.b16 %v603
        %v873 = vunpack.c.h.b16 %v603
        %v874 = vunpack.c.l.b16 %v604
        %v875 = vunpack.c.h.b16 %v604
        %v876 = vunpack.c.l.b16 %v605
        %v877 = vunpack.c.h.b16 %v605
        %v878 = vunpack.c.l.b16 %v606
        %v879 = vunpack.c.h.b16 %v606
        %v880 = vunpack.c.l.b16 %v607
        %v881 = vunpack.c.h.b16 %v607
        %v882 = vunpack.c.l.b16 %v608
        %v883 = vunpack.c.h.b16 %v608
        %v884 = vunpack.c.l.b16 %v609
        %v885 = vunpack.c.h.b16 %v609
        %v886 = vunpack.c.l.b16 %v610
        %v887 = vunpack.c.h.b16 %v610
        %v888 = vunpack.c.l.b16 %v611
        %v889 = vunpack.c.h.b16 %v611
        %v890 = vunpack.c.l.b16 %v612
        %v891 = vunpack.c.h.b16 %v612
        %v892 = vunpack.c.l.b16 %v613
        %v893 = vunpack.c.h.b16 %v613
        %v894 = vunpack.c.l.b16 %v614
        %v895 = vunpack.c.h.b16 %v614
        %v896 = vunpack.c.l.b16 %v615
        %v897 = vunpack.c.h.b16 %v615
        %v898 = vunpack.c.l.b16 %v616
        %v899 = vunpack.c.h.b16 %v616
        %v900 = vunpack.c.l.b16 %v617
        %v901 = vunpack.c.h.b16 %v617
        %v902 = vunpack.c.l.b16 %v618
        %v903 = vunpack.c.h.b16 %v618
        %v904 = vunpack.c.l.b16 %v619
        %v905 = vunpack.c.h.b16 %v619
        %v906 = vunpack.c.l.b16 %v620
        %v907 = vunpack.c.h.b16 %v620
        %v908 = vunpack.c.l.b16 %v621
        %v909 = vunpack.c.h.b16 %v621
        %v910 = vpack.c.b16 %v720, %v718
        %v911 = vpack.c.b16 %v721, %v719
        %v912 = vpack.c.b16 %v724, %v722
        %v913 = vpack.c.b16 %v725, %v723
        %v914 = vpack.c.b16 %v728, %v726
        %v915 = vpack.c.b16 %v729, %v727
        %v916 = vpack.c.b16 %v732, %v730
        %v917 = vpack.c.b16 %v733, %v731
        %v918 = vpack.c.b16 %v736, %v734
        %v919 = vpack.c.b16 %v737, %v735
        %v920 = vpack.c.b16 %v740, %v738
        %v921 = vpack.c.b16 %v741, %v739
        %v922 = vpack.c.b16 %v744, %v742
        %v923 = vpack.c.b16 %v745, %v743
        %v924 = vpack.c.b16 %v748, %v746
        %v925 = vpack.c.b16 %v749, %v747
        %v926 = vpack.c.b16 %v752, %v750
        %v927 = vpack.c.b16 %v753, %v751
        %v928 = vpack.c.b16 %v756, %v754
        %v929 = vpack.c.b16 %v757, %v755
        %v930 = vpack.c.b16 %v760, %v758
        %v931 = vpack.c.b16 %v761, %v759
        %v932 = vpack.c.b16 %v764, %v762
        %v933 = vpack.c.b16 %v765, %v763
        %v934 = vpack.c.b16 %v768, %v766
        %v935 = vpack.c.b16 %v769, %v767
        %v936 = vpack.c.b16 %v772, %v770
        %v937 = vpack.c.b16 %v773, %v771
        %v938 = vpack.c.b16 %v776, %v774
        %v939 = vpack.c.b16 %v777, %v775
        %v940 = vpack.c.b16 %v780, %v778
        %v941 = vpack.c.b16 %v781, %v779
        %v942 = vpack.c.b16 %v784, %v782
        %v943 = vpack.c.b16 %v785, %v783
        %v944 = vpack.c.b16 %v788, %v786
        %v945 = vpack.c.b16 %v789, %v787
        %v946 = vpack.c.b16 %v792, %v790
        %v947 = vpack.c.b16 %v793, %v791
        %v948 = vpack.c.b16 %v796, %v794
        %v949 = vpack.c.b16 %v797, %v795
        %v950 = vpack.c.b16 %v800, %v798
        %v951 = vpack.c.b16 %v801, %v799
        %v952 = vpack.c.b16 %v804, %v802
        %v953 = vpack.c.b16 %v805, %v803
        %v954 = vpack.c.b16 %v808, %v806
        %v955 = vpack.c.b16 %v809, %v807
        %v956 = vpack.c.b16 %v812, %v810
        %v957 = vpack.c.b16 %v813, %v811
        %v958 = vpack.c.b16 %v816, %v814
        %v959 = vpack.c.b16 %v817, %v815
        %v960 = vpack.c.b16 %v820, %v818
        %v961 = vpack.c.b16 %v821, %v819
        %v962 = vpack.c.b16 %v824, %v822
        %v963 = vpack.c.b16 %v825, %v823
        %v964 = vpack.c.b16 %v828, %v826
        %v965 = vpack.c.b16 %v829, %v827
        %v966 = vpack.c.b16 %v832, %v830
        %v967 = vpack.c.b16 %v833, %v831
        %v968 = vpack.c.b16 %v836, %v834
        %v969 = vpack.c.b16 %v837, %v835
        %v970 = vpack.c.b16 %v840, %v838
        %v971 = vpack.c.b16 %v841, %v839
        %v972 = vpack.c.b16 %v844, %v842
        %v973 = vpack.c.b16 %v845, %v843
        %v974 = vpack.c.b16 %v848, %v846
        %v975 = vpack.c.b16 %v849, %v847
        %v976 = vpack.c.b16 %v852, %v850
        %v977 = vpack.c.b16 %v853, %v851
        %v978 = vpack.c.b16 %v856, %v854
        %v979 = vpack.c.b16 %v857, %v855
        %v980 = vpack.c.b16 %v860, %v858
        %v981 = vpack.c.b16 %v861, %v859
        %v982 = vpack.c.b16 %v864, %v862
        %v983 = vpack.c.b16 %v865, %v863
        %v984 = vpack.c.b16 %v868, %v866
        %v985 = vpack.c.b16 %v869, %v867
        %v986 = vpack.c.b16 %v872, %v870
        %v987 = vpack.c.b16 %v873, %v871
        %v988 = vpack.c.b16 %v876, %v874
        %v989 = vpack.c.b16 %v877, %v875
        %v990 = vpack.c.b16 %v880, %v878
        %v991 = vpack.c.b16 %v881, %v879
        %v992 = vpack.c.b16 %v884, %v882
        %v993 = vpack.c.b16 %v885, %v883
        %v994 = vpack.c.b16 %v888, %v886
        %v995 = vpack.c.b16 %v889, %v887
        %v996 = vpack.c.b16 %v892, %v890
        %v997 = vpack.c.b16 %v893, %v891
        %v998 = vpack.c.b16 %v896, %v894
        %v999 = vpack.c.b16 %v897, %v895
        %v1000 = vpack.c.b16 %v900, %v898
        %v1001 = vpack.c.b16 %v901, %v899
        %v1002 = vpack.c.b16 %v904, %v902
        %v1003 = vpack.c.b16 %v905, %v903
        %v1004 = vpack.c.b16 %v908, %v906
        %v1005 = vpack.c.b16 %v909, %v907
        %v1134 = vunpack.c.l.b16 %v494
        %v1135 = vunpack.c.l.b16 %v495
        %v1136 = vunpack.c.l.b16 %v496
        %v1137 = vunpack.c.l.b16 %v497
        %v1138 = vunpack.c.l.b16 %v498
        %v1139 = vunpack.c.l.b16 %v499
        %v1140 = vunpack.c.l.b16 %v500
        %v1141 = vunpack.c.l.b16 %v501
        %v1142 = vunpack.c.l.b16 %v502
        %v1143 = vunpack.c.l.b16 %v503
        %v1144 = vunpack.c.l.b16 %v504
        %v1145 = vunpack.c.l.b16 %v505
        %v1146 = vunpack.c.l.b16 %v506
        %v1147 = vunpack.c.l.b16 %v507
        %v1148 = vunpack.c.l.b16 %v508
        %v1149 = vunpack.c.l.b16 %v509
        %v1150 = vunpack.c.l.b16 %v510
        %v1151 = vunpack.c.l.b16 %v511
        %v1152 = vunpack.c.l.b16 %v512
        %v1153 = vunpack.c.l.b16 %v513
        %v1154 = vunpack.c.l.b16 %v514
        %v1155 = vunpack.c.l.b16 %v515
        %v1156 = vunpack.c.l.b16 %v516
        %v1157 = vunpack.c.l.b16 %v517
        %v1158 = vunpack.c.l.b16 %v518
        %v1159 = vunpack.c.l.b16 %v519
        %v1160 = vunpack.c.l.b16 %v520
        %v1161 = vunpack.c.l.b16 %v521
        %v1162 = vunpack.c.l.b16 %v522
        %v1163 = vunpack.c.l.b16 %v523
        %v1164 = vunpack.c.l.b16 %v524
        %v1165 = vunpack.c.l.b16 %v525
        %v1166 = vpack.c.b16 %v1135, %v1134
        %v1167 = vpack.c.b16 %v1137, %v1136
        %v1168 = vpack.c.b16 %v1139, %v1138
        %v1169 = vpack.c.b16 %v1141, %v1140
        %v1170 = vpack.c.b16 %v1143, %v1142
        %v1171 = vpack.c.b16 %v1145, %v1144
        %v1172 = vpack.c.b16 %v1147, %v1146
        %v1173 = vpack.c.b16 %v1149, %v1148
        %v1174 = vpack.c.b16 %v1151, %v1150
        %v1175 = vpack.c.b16 %v1153, %v1152
        %v1176 = vpack.c.b16 %v1155, %v1154
        %v1177 = vpack.c.b16 %v1157, %v1156
        %v1178 = vpack.c.b16 %v1159, %v1158
        %v1179 = vpack.c.b16 %v1161, %v1160
        %v1180 = vpack.c.b16 %v1163, %v1162
        %v1181 = vpack.c.b16 %v1165, %v1164
        %1198 = vmatprep.subr.bf16.mxu0 0
        %1199 = vmatpush1.bf16.msra.mxu0 %v1166
        %1200 = vmatprep.subr.bf16.mxu0 0
        %1201 = vmatpush1.bf16.msra.mxu0 %v1167
        %1202 = vmatprep.subr.bf16.mxu0 0
        %1203 = vmatpush1.bf16.msra.mxu0 %v1168
        %1204 = vmatprep.subr.bf16.mxu0 0
        %1205 = vmatpush1.bf16.msra.mxu0 %v1169
        %1206 = vmatprep.subr.bf16.mxu0 0
        %1207 = vmatpush1.bf16.msra.mxu0 %v1170
        %1208 = vmatprep.subr.bf16.mxu0 0
        %1209 = vmatpush1.bf16.msra.mxu0 %v1171
        %1210 = vmatprep.subr.bf16.mxu0 0
        %1211 = vmatpush1.bf16.msra.mxu0 %v1172
        %1212 = vmatprep.subr.bf16.mxu0 0
        %1213 = vmatpush1.bf16.msra.mxu0 %v1173
        %1214 = vmatprep.subr.bf16.mxu0 0
        %1215 = vmatpush1.bf16.msra.mxu0 %v1174
        %1216 = vmatprep.subr.bf16.mxu0 0
        %1217 = vmatpush1.bf16.msra.mxu0 %v1175
        %1218 = vmatprep.subr.bf16.mxu0 0
        %1219 = vmatpush1.bf16.msra.mxu0 %v1176
        %1220 = vmatprep.subr.bf16.mxu0 0
        %1221 = vmatpush1.bf16.msra.mxu0 %v1177
        %1222 = vmatprep.subr.bf16.mxu0 0
        %1223 = vmatpush1.bf16.msra.mxu0 %v1178
        %1224 = vmatprep.subr.bf16.mxu0 0
        %1225 = vmatpush1.bf16.msra.mxu0 %v1179
        %1226 = vmatprep.subr.bf16.mxu0 0
        %1227 = vmatpush1.bf16.msra.mxu0 %v1180
        %1228 = vmatprep.subr.bf16.mxu0 0
        %1229 = vmatpush1.bf16.msra.mxu0 %v1181
        %1230 = vmatprep.mubr.bf16.mxu0 %v911
        %1231 = vmatmul.mubr.bf16.gmra.mrb[0].mxu0 %v910
        %v1232 = vpop.f32.mrb[0].mxu0
        %v1233 = vadd.f32 0.0, %v1232
        %v1234 = vpop.f32.mrb[0].mxu0
        %v1235 = vpop.f32.mrb[0].mxu0
        %v1236 = vadd.f32 0.0, %v1235
        %v1237 = vpop.f32.mrb[0].mxu0
        %1238 = vmatprep.mubr.bf16.mxu0 %v913
        %1239 = vmatmul.mubr.bf16.gmra.mrb[0].mxu0 %v912
        %v1240 = vpop.f32.mrb[0].mxu0
        %v1241 = vadd.f32 0.0, %v1240
        %v1242 = vpop.f32.mrb[0].mxu0
        %v1243 = vpop.f32.mrb[0].mxu0
        %v1244 = vadd.f32 0.0, %v1243
        %v1245 = vpop.f32.mrb[0].mxu0
        %1246 = vmatprep.mubr.bf16.mxu0 %v915
        %1247 = vmatmul.mubr.bf16.gmra.mrb[0].mxu0 %v914
        %v1248 = vpop.f32.mrb[0].mxu0
        %v1249 = vadd.f32 0.0, %v1248
        %v1250 = vpop.f32.mrb[0].mxu0
        %v1251 = vpop.f32.mrb[0].mxu0
        %v1252 = vadd.f32 0.0, %v1251
        %v1253 = vpop.f32.mrb[0].mxu0
        %1254 = vmatprep.mubr.bf16.mxu0 %v917
        %1255 = vmatmul.mubr.bf16.gmra.mrb[0].mxu0 %v916
        %v1256 = vpop.f32.mrb[0].mxu0
        %v1257 = vadd.f32 0.0, %v1256
        %v1258 = vpop.f32.mrb[0].mxu0
        %v1259 = vpop.f32.mrb[0].mxu0
        %v1260 = vadd.f32 0.0, %v1259
        %v1261 = vpop.f32.mrb[0].mxu0
        %1262 = vmatprep.mubr.bf16.mxu0 %v919
        %1263 = vmatmul.mubr.bf16.gmra.mrb[0].mxu0 %v918
        %v1264 = vpop.f32.mrb[0].mxu0
        %v1265 = vadd.f32 0.0, %v1264
        %v1266 = vpop.f32.mrb[0].mxu0
        %v1267 = vpop.f32.mrb[0].mxu0
        %v1268 = vadd.f32 0.0, %v1267
        %v1269 = vpop.f32.mrb[0].mxu0
        %1270 = vmatprep.mubr.bf16.mxu0 %v921
        %1271 = vmatmul.mubr.bf16.gmra.mrb[0].mxu0 %v920
        %v1272 = vpop.f32.mrb[0].mxu0
        %v1273 = vadd.f32 0.0, %v1272
        %v1274 = vpop.f32.mrb[0].mxu0
        %v1275 = vpop.f32.mrb[0].mxu0
        %v1276 = vadd.f32 0.0, %v1275
        %v1277 = vpop.f32.mrb[0].mxu0
        %1278 = vmatprep.mubr.bf16.mxu0 %v923
        %1279 = vmatmul.mubr.bf16.gmra.mrb[0].mxu0 %v922
        %v1280 = vpop.f32.mrb[0].mxu0
        %v1281 = vadd.f32 0.0, %v1280
        %v1282 = vpop.f32.mrb[0].mxu0
        %v1283 = vpop.f32.mrb[0].mxu0
        %v1284 = vadd.f32 0.0, %v1283
        %v1285 = vpop.f32.mrb[0].mxu0
        %1286 = vmatprep.mubr.bf16.mxu0 %v925
        %1287 = vmatmul.mubr.bf16.gmra.mrb[0].mxu0 %v924
        %v1288 = vpop.f32.mrb[0].mxu0
        %v1289 = vadd.f32 0.0, %v1288
        %v1290 = vpop.f32.mrb[0].mxu0
        %v1291 = vpop.f32.mrb[0].mxu0
        %v1292 = vadd.f32 0.0, %v1291
        %v1293 = vpop.f32.mrb[0].mxu0
        %1294 = vmatprep.mubr.bf16.mxu0 %v927
        %1295 = vmatmul.mubr.bf16.gmra.mrb[0].mxu0 %v926
        %v1296 = vpop.f32.mrb[0].mxu0
        %v1297 = vadd.f32 0.0, %v1296
        %v1298 = vpop.f32.mrb[0].mxu0
        %v1299 = vpop.f32.mrb[0].mxu0
        %v1300 = vadd.f32 0.0, %v1299
        %v1301 = vpop.f32.mrb[0].mxu0
        %1302 = vmatprep.mubr.bf16.mxu0 %v929
        %1303 = vmatmul.mubr.bf16.gmra.mrb[0].mxu0 %v928
        %v1304 = vpop.f32.mrb[0].mxu0
        %v1305 = vadd.f32 0.0, %v1304
        %v1306 = vpop.f32.mrb[0].mxu0
        %v1307 = vpop.f32.mrb[0].mxu0
        %v1308 = vadd.f32 0.0, %v1307
        %v1309 = vpop.f32.mrb[0].mxu0
        %1310 = vmatprep.mubr.bf16.mxu0 %v931
        %1311 = vmatmul.mubr.bf16.gmra.mrb[0].mxu0 %v930
        %v1312 = vpop.f32.mrb[0].mxu0
        %v1313 = vadd.f32 0.0, %v1312
        %v1314 = vpop.f32.mrb[0].mxu0
        %v1315 = vpop.f32.mrb[0].mxu0
        %v1316 = vadd.f32 0.0, %v1315
        %v1317 = vpop.f32.mrb[0].mxu0
        %1318 = vmatprep.mubr.bf16.mxu0 %v933
        %1319 = vmatmul.mubr.bf16.gmra.mrb[0].mxu0 %v932
        %v1320 = vpop.f32.mrb[0].mxu0
        %v1321 = vadd.f32 0.0, %v1320
        %v1322 = vpop.f32.mrb[0].mxu0
        %v1323 = vpop.f32.mrb[0].mxu0
        %v1324 = vadd.f32 0.0, %v1323
        %v1325 = vpop.f32.mrb[0].mxu0
        %1326 = vmatprep.mubr.bf16.mxu0 %v935
        %1327 = vmatmul.mubr.bf16.gmra.mrb[0].mxu0 %v934
        %v1328 = vpop.f32.mrb[0].mxu0
        %v1329 = vadd.f32 0.0, %v1328
        %v1330 = vpop.f32.mrb[0].mxu0
        %v1331 = vpop.f32.mrb[0].mxu0
        %v1332 = vadd.f32 0.0, %v1331
        %v1333 = vpop.f32.mrb[0].mxu0
        %1334 = vmatprep.mubr.bf16.mxu0 %v937
        %1335 = vmatmul.mubr.bf16.gmra.mrb[0].mxu0 %v936
        %v1336 = vpop.f32.mrb[0].mxu0
        %v1337 = vadd.f32 0.0, %v1336
        %v1338 = vpop.f32.mrb[0].mxu0
        %v1339 = vpop.f32.mrb[0].mxu0
        %v1340 = vadd.f32 0.0, %v1339
        %v1341 = vpop.f32.mrb[0].mxu0
        %1342 = vmatprep.mubr.bf16.mxu0 %v939
        %1343 = vmatmul.mubr.bf16.gmra.mrb[0].mxu0 %v938
        %v1344 = vpop.f32.mrb[0].mxu0
        %v1345 = vadd.f32 0.0, %v1344
        %v1346 = vpop.f32.mrb[0].mxu0
        %v1347 = vpop.f32.mrb[0].mxu0
        %v1348 = vadd.f32 0.0, %v1347
        %v1349 = vpop.f32.mrb[0].mxu0
        %1350 = vmatprep.mubr.bf16.mxu0 %v941
        %1351 = vmatmul.mubr.bf16.gmra.mrb[0].mxu0 %v940
        %v1352 = vpop.f32.mrb[0].mxu0
        %v1353 = vadd.f32 0.0, %v1352
        %v1354 = vpop.f32.mrb[0].mxu0
        %v1355 = vpop.f32.mrb[0].mxu0
        %v1356 = vadd.f32 0.0, %v1355
        %v1357 = vpop.f32.mrb[0].mxu0
        %1358 = vmatprep.mubr.bf16.mxu0 %v943
        %1359 = vmatmul.mubr.bf16.gmra.mrb[0].mxu0 %v942
        %v1360 = vpop.f32.mrb[0].mxu0
        %v1361 = vadd.f32 0.0, %v1360
        %v1362 = vpop.f32.mrb[0].mxu0
        %v1363 = vpop.f32.mrb[0].mxu0
        %v1364 = vadd.f32 0.0, %v1363
        %v1365 = vpop.f32.mrb[0].mxu0
        %1366 = vmatprep.mubr.bf16.mxu0 %v945
        %1367 = vmatmul.mubr.bf16.gmra.mrb[0].mxu0 %v944
        %v1368 = vpop.f32.mrb[0].mxu0
        %v1369 = vadd.f32 0.0, %v1368
        %v1370 = vpop.f32.mrb[0].mxu0
        %v1371 = vpop.f32.mrb[0].mxu0
        %v1372 = vadd.f32 0.0, %v1371
        %v1373 = vpop.f32.mrb[0].mxu0
        %1374 = vmatprep.mubr.bf16.mxu0 %v947
        %1375 = vmatmul.mubr.bf16.gmra.mrb[0].mxu0 %v946
        %v1376 = vpop.f32.mrb[0].mxu0
        %v1377 = vadd.f32 0.0, %v1376
        %v1378 = vpop.f32.mrb[0].mxu0
        %v1379 = vpop.f32.mrb[0].mxu0
        %v1380 = vadd.f32 0.0, %v1379
        %v1381 = vpop.f32.mrb[0].mxu0
        %1382 = vmatprep.mubr.bf16.mxu0 %v949
        %1383 = vmatmul.mubr.bf16.gmra.mrb[0].mxu0 %v948
        %v1384 = vpop.f32.mrb[0].mxu0
        %v1385 = vadd.f32 0.0, %v1384
        %v1386 = vpop.f32.mrb[0].mxu0
        %v1387 = vpop.f32.mrb[0].mxu0
        %v1388 = vadd.f32 0.0, %v1387
        %v1389 = vpop.f32.mrb[0].mxu0
        %1390 = vmatprep.mubr.bf16.mxu0 %v951
        %1391 = vmatmul.mubr.bf16.gmra.mrb[0].mxu0 %v950
        %v1392 = vpop.f32.mrb[0].mxu0
        %v1393 = vadd.f32 0.0, %v1392
        %v1394 = vpop.f32.mrb[0].mxu0
        %v1395 = vpop.f32.mrb[0].mxu0
        %v1396 = vadd.f32 0.0, %v1395
        %v1397 = vpop.f32.mrb[0].mxu0
        %1398 = vmatprep.mubr.bf16.mxu0 %v953
        %1399 = vmatmul.mubr.bf16.gmra.mrb[0].mxu0 %v952
        %v1400 = vpop.f32.mrb[0].mxu0
        %v1401 = vadd.f32 0.0, %v1400
        %v1402 = vpop.f32.mrb[0].mxu0
        %v1403 = vpop.f32.mrb[0].mxu0
        %v1404 = vadd.f32 0.0, %v1403
        %v1405 = vpop.f32.mrb[0].mxu0
        %1406 = vmatprep.mubr.bf16.mxu0 %v955
        %1407 = vmatmul.mubr.bf16.gmra.mrb[0].mxu0 %v954
        %v1408 = vpop.f32.mrb[0].mxu0
        %v1409 = vadd.f32 0.0, %v1408
        %v1410 = vpop.f32.mrb[0].mxu0
        %v1411 = vpop.f32.mrb[0].mxu0
        %v1412 = vadd.f32 0.0, %v1411
        %v1413 = vpop.f32.mrb[0].mxu0
        %1414 = vmatprep.mubr.bf16.mxu0 %v957
        %1415 = vmatmul.mubr.bf16.gmra.mrb[0].mxu0 %v956
        %v1416 = vpop.f32.mrb[0].mxu0
        %v1417 = vadd.f32 0.0, %v1416
        %v1418 = vpop.f32.mrb[0].mxu0
        %v1419 = vpop.f32.mrb[0].mxu0
        %v1420 = vadd.f32 0.0, %v1419
        %v1421 = vpop.f32.mrb[0].mxu0
        %1422 = vmatprep.mubr.bf16.mxu0 %v959
        %1423 = vmatmul.mubr.bf16.gmra.mrb[0].mxu0 %v958
        %v1424 = vpop.f32.mrb[0].mxu0
        %v1425 = vadd.f32 0.0, %v1424
        %v1426 = vpop.f32.mrb[0].mxu0
        %v1427 = vpop.f32.mrb[0].mxu0
        %v1428 = vadd.f32 0.0, %v1427
        %v1429 = vpop.f32.mrb[0].mxu0
        %1430 = vmatprep.mubr.bf16.mxu0 %v961
        %1431 = vmatmul.mubr.bf16.gmra.mrb[0].mxu0 %v960
        %v1432 = vpop.f32.mrb[0].mxu0
        %v1433 = vadd.f32 0.0, %v1432
        %v1434 = vpop.f32.mrb[0].mxu0
        %v1435 = vpop.f32.mrb[0].mxu0
        %v1436 = vadd.f32 0.0, %v1435
        %v1437 = vpop.f32.mrb[0].mxu0
        %1438 = vmatprep.mubr.bf16.mxu0 %v963
        %1439 = vmatmul.mubr.bf16.gmra.mrb[0].mxu0 %v962
        %v1440 = vpop.f32.mrb[0].mxu0
        %v1441 = vadd.f32 0.0, %v1440
        %v1442 = vpop.f32.mrb[0].mxu0
        %v1443 = vpop.f32.mrb[0].mxu0
        %v1444 = vadd.f32 0.0, %v1443
        %v1445 = vpop.f32.mrb[0].mxu0
        %1446 = vmatprep.mubr.bf16.mxu0 %v965
        %1447 = vmatmul.mubr.bf16.gmra.mrb[0].mxu0 %v964
        %v1448 = vpop.f32.mrb[0].mxu0
        %v1449 = vadd.f32 0.0, %v1448
        %v1450 = vpop.f32.mrb[0].mxu0
        %v1451 = vpop.f32.mrb[0].mxu0
        %v1452 = vadd.f32 0.0, %v1451
        %v1453 = vpop.f32.mrb[0].mxu0
        %1454 = vmatprep.mubr.bf16.mxu0 %v967
        %1455 = vmatmul.mubr.bf16.gmra.mrb[0].mxu0 %v966
        %v1456 = vpop.f32.mrb[0].mxu0
        %v1457 = vadd.f32 0.0, %v1456
        %v1458 = vpop.f32.mrb[0].mxu0
        %v1459 = vpop.f32.mrb[0].mxu0
        %v1460 = vadd.f32 0.0, %v1459
        %v1461 = vpop.f32.mrb[0].mxu0
        %1462 = vmatprep.mubr.bf16.mxu0 %v969
        %1463 = vmatmul.mubr.bf16.gmra.mrb[0].mxu0 %v968
        %v1464 = vpop.f32.mrb[0].mxu0
        %v1465 = vadd.f32 0.0, %v1464
        %v1466 = vpop.f32.mrb[0].mxu0
        %v1467 = vpop.f32.mrb[0].mxu0
        %v1468 = vadd.f32 0.0, %v1467
        %v1469 = vpop.f32.mrb[0].mxu0
        %1470 = vmatprep.mubr.bf16.mxu0 %v971
        %1471 = vmatmul.mubr.bf16.gmra.mrb[0].mxu0 %v970
        %v1472 = vpop.f32.mrb[0].mxu0
        %v1473 = vadd.f32 0.0, %v1472
        %v1474 = vpop.f32.mrb[0].mxu0
        %v1475 = vpop.f32.mrb[0].mxu0
        %v1476 = vadd.f32 0.0, %v1475
        %v1477 = vpop.f32.mrb[0].mxu0
        %1478 = vmatprep.mubr.bf16.mxu0 %v973
        %1479 = vmatmul.mubr.bf16.gmra.mrb[0].mxu0 %v972
        %v1480 = vpop.f32.mrb[0].mxu0
        %v1481 = vadd.f32 0.0, %v1480
        %v1482 = vpop.f32.mrb[0].mxu0
        %v1483 = vpop.f32.mrb[0].mxu0
        %v1484 = vadd.f32 0.0, %v1483
        %v1485 = vpop.f32.mrb[0].mxu0
        %1486 = vmatprep.mubr.bf16.mxu0 %v975
        %1487 = vmatmul.mubr.bf16.gmra.mrb[0].mxu0 %v974
        %v1488 = vpop.f32.mrb[0].mxu0
        %v1489 = vadd.f32 0.0, %v1488
        %v1490 = vpop.f32.mrb[0].mxu0
        %v1491 = vpop.f32.mrb[0].mxu0
        %v1492 = vadd.f32 0.0, %v1491
        %v1493 = vpop.f32.mrb[0].mxu0
        %1494 = vmatprep.mubr.bf16.mxu0 %v977
        %1495 = vmatmul.mubr.bf16.gmra.mrb[0].mxu0 %v976
        %v1496 = vpop.f32.mrb[0].mxu0
        %v1497 = vadd.f32 0.0, %v1496
        %v1498 = vpop.f32.mrb[0].mxu0
        %v1499 = vpop.f32.mrb[0].mxu0
        %v1500 = vadd.f32 0.0, %v1499
        %v1501 = vpop.f32.mrb[0].mxu0
        %1502 = vmatprep.mubr.bf16.mxu0 %v979
        %1503 = vmatmul.mubr.bf16.gmra.mrb[0].mxu0 %v978
        %v1504 = vpop.f32.mrb[0].mxu0
        %v1505 = vadd.f32 0.0, %v1504
        %v1506 = vpop.f32.mrb[0].mxu0
        %v1507 = vpop.f32.mrb[0].mxu0
        %v1508 = vadd.f32 0.0, %v1507
        %v1509 = vpop.f32.mrb[0].mxu0
        %1510 = vmatprep.mubr.bf16.mxu0 %v981
        %1511 = vmatmul.mubr.bf16.gmra.mrb[0].mxu0 %v980
        %v1512 = vpop.f32.mrb[0].mxu0
        %v1513 = vadd.f32 0.0, %v1512
        %v1514 = vpop.f32.mrb[0].mxu0
        %v1515 = vpop.f32.mrb[0].mxu0
        %v1516 = vadd.f32 0.0, %v1515
        %v1517 = vpop.f32.mrb[0].mxu0
        %1518 = vmatprep.mubr.bf16.mxu0 %v983
        %1519 = vmatmul.mubr.bf16.gmra.mrb[0].mxu0 %v982
        %v1520 = vpop.f32.mrb[0].mxu0
        %v1521 = vadd.f32 0.0, %v1520
        %v1522 = vpop.f32.mrb[0].mxu0
        %v1523 = vpop.f32.mrb[0].mxu0
        %v1524 = vadd.f32 0.0, %v1523
        %v1525 = vpop.f32.mrb[0].mxu0
        %1526 = vmatprep.mubr.bf16.mxu0 %v985
        %1527 = vmatmul.mubr.bf16.gmra.mrb[0].mxu0 %v984
        %v1528 = vpop.f32.mrb[0].mxu0
        %v1529 = vadd.f32 0.0, %v1528
        %v1530 = vpop.f32.mrb[0].mxu0
        %v1531 = vpop.f32.mrb[0].mxu0
        %v1532 = vadd.f32 0.0, %v1531
        %v1533 = vpop.f32.mrb[0].mxu0
        %1534 = vmatprep.mubr.bf16.mxu0 %v987
        %1535 = vmatmul.mubr.bf16.gmra.mrb[0].mxu0 %v986
        %v1536 = vpop.f32.mrb[0].mxu0
        %v1537 = vadd.f32 0.0, %v1536
        %v1538 = vpop.f32.mrb[0].mxu0
        %v1539 = vpop.f32.mrb[0].mxu0
        %v1540 = vadd.f32 0.0, %v1539
        %v1541 = vpop.f32.mrb[0].mxu0
        %1542 = vmatprep.mubr.bf16.mxu0 %v989
        %1543 = vmatmul.mubr.bf16.gmra.mrb[0].mxu0 %v988
        %v1544 = vpop.f32.mrb[0].mxu0
        %v1545 = vadd.f32 0.0, %v1544
        %v1546 = vpop.f32.mrb[0].mxu0
        %v1547 = vpop.f32.mrb[0].mxu0
        %v1548 = vadd.f32 0.0, %v1547
        %v1549 = vpop.f32.mrb[0].mxu0
        %1550 = vmatprep.mubr.bf16.mxu0 %v991
        %1551 = vmatmul.mubr.bf16.gmra.mrb[0].mxu0 %v990
        %v1552 = vpop.f32.mrb[0].mxu0
        %v1553 = vadd.f32 0.0, %v1552
        %v1554 = vpop.f32.mrb[0].mxu0
        %v1555 = vpop.f32.mrb[0].mxu0
        %v1556 = vadd.f32 0.0, %v1555
        %v1557 = vpop.f32.mrb[0].mxu0
        %1558 = vmatprep.mubr.bf16.mxu0 %v993
        %1559 = vmatmul.mubr.bf16.gmra.mrb[0].mxu0 %v992
        %v1560 = vpop.f32.mrb[0].mxu0
        %v1561 = vadd.f32 0.0, %v1560
        %v1562 = vpop.f32.mrb[0].mxu0
        %v1563 = vpop.f32.mrb[0].mxu0
        %v1564 = vadd.f32 0.0, %v1563
        %v1565 = vpop.f32.mrb[0].mxu0
        %1566 = vmatprep.mubr.bf16.mxu0 %v995
        %1567 = vmatmul.mubr.bf16.gmra.mrb[0].mxu0 %v994
        %v1568 = vpop.f32.mrb[0].mxu0
        %v1569 = vadd.f32 0.0, %v1568
        %v1570 = vpop.f32.mrb[0].mxu0
        %v1571 = vpop.f32.mrb[0].mxu0
        %v1572 = vadd.f32 0.0, %v1571
        %v1573 = vpop.f32.mrb[0].mxu0
        %1574 = vmatprep.mubr.bf16.mxu0 %v997
        %1575 = vmatmul.mubr.bf16.gmra.mrb[0].mxu0 %v996
        %v1576 = vpop.f32.mrb[0].mxu0
        %v1577 = vadd.f32 0.0, %v1576
        %v1578 = vpop.f32.mrb[0].mxu0
        %v1579 = vpop.f32.mrb[0].mxu0
        %v1580 = vadd.f32 0.0, %v1579
        %v1581 = vpop.f32.mrb[0].mxu0
        %1582 = vmatprep.mubr.bf16.mxu0 %v999
        %1583 = vmatmul.mubr.bf16.gmra.mrb[0].mxu0 %v998
        %v1584 = vpop.f32.mrb[0].mxu0
        %v1585 = vadd.f32 0.0, %v1584
        %v1586 = vpop.f32.mrb[0].mxu0
        %v1587 = vpop.f32.mrb[0].mxu0
        %v1588 = vadd.f32 0.0, %v1587
        %v1589 = vpop.f32.mrb[0].mxu0
        %1590 = vmatprep.mubr.bf16.mxu0 %v1001
        %1591 = vmatmul.mubr.bf16.gmra.mrb[0].mxu0 %v1000
        %v1592 = vpop.f32.mrb[0].mxu0
        %v1593 = vadd.f32 0.0, %v1592
        %v1594 = vpop.f32.mrb[0].mxu0
        %v1595 = vpop.f32.mrb[0].mxu0
        %v1596 = vadd.f32 0.0, %v1595
        %v1597 = vpop.f32.mrb[0].mxu0
        %1598 = vmatprep.mubr.bf16.mxu0 %v1003
        %1599 = vmatmul.mubr.bf16.gmra.mrb[0].mxu0 %v1002
        %v1600 = vpop.f32.mrb[0].mxu0
        %v1601 = vadd.f32 0.0, %v1600
        %v1602 = vpop.f32.mrb[0].mxu0
        %v1603 = vpop.f32.mrb[0].mxu0
        %v1604 = vadd.f32 0.0, %v1603
        %v1605 = vpop.f32.mrb[0].mxu0
        %1606 = vmatprep.mubr.bf16.mxu0 %v1005
        %1607 = vmatmul.mubr.bf16.gmra.mrb[0].mxu0 %v1004
        %v1608 = vpop.f32.mrb[0].mxu0
        %v1609 = vadd.f32 0.0, %v1608
        %v1610 = vpop.f32.mrb[0].mxu0
        %v1611 = vpop.f32.mrb[0].mxu0
        %v1612 = vadd.f32 0.0, %v1611
        %v1613 = vpop.f32.mrb[0].mxu0
        %1614 = vdwg.mxu0
        %v1615 = vld [vmem:[#allocation5] sm:$0xff]
        %v1616 = vld [vmem:[#allocation5 + $0x8] sm:$0xff]
        %v1617 = vld [vmem:[#allocation5 + $0x10] sm:$0xff]
        %v1618 = vld [vmem:[#allocation5 + $0x18] sm:$0xff]
        %v1619 = vld [vmem:[#allocation5 + $0x20] sm:$0xff]
        %v1620 = vld [vmem:[#allocation5 + $0x28] sm:$0xff]
        %v1621 = vld [vmem:[#allocation5 + $0x30] sm:$0xff]
        %v1622 = vld [vmem:[#allocation5 + $0x38] sm:$0xff]
        %v1623 = vld [vmem:[#allocation5 + $0x40] sm:$0xff]
        %v1624 = vld [vmem:[#allocation5 + $0x48] sm:$0xff]
        %v1625 = vld [vmem:[#allocation5 + $0x50] sm:$0xff]
        %v1626 = vld [vmem:[#allocation5 + $0x58] sm:$0xff]
        %v1627 = vld [vmem:[#allocation5 + $0x60] sm:$0xff]
        %v1628 = vld [vmem:[#allocation5 + $0x68] sm:$0xff]
        %v1629 = vld [vmem:[#allocation5 + $0x70] sm:$0xff]
        %v1630 = vld [vmem:[#allocation5 + $0x78] sm:$0xff]
        %v1631 = vld [vmem:[#allocation5 + $0x80] sm:$0xff]
        %v1632 = vld [vmem:[#allocation5 + $0x88] sm:$0xff]
        %v1633 = vld [vmem:[#allocation5 + $0x90] sm:$0xff]
        %v1634 = vld [vmem:[#allocation5 + $0x98] sm:$0xff]
        %v1635 = vld [vmem:[#allocation5 + $0xa0] sm:$0xff]
        %v1636 = vld [vmem:[#allocation5 + $0xa8] sm:$0xff]
        %v1637 = vld [vmem:[#allocation5 + $0xb0] sm:$0xff]
        %v1638 = vld [vmem:[#allocation5 + $0xb8] sm:$0xff]
        %v1639 = vld [vmem:[#allocation5 + $0xc0] sm:$0xff]
        %v1640 = vld [vmem:[#allocation5 + $0xc8] sm:$0xff]
        %v1641 = vld [vmem:[#allocation5 + $0xd0] sm:$0xff]
        %v1642 = vld [vmem:[#allocation5 + $0xd8] sm:$0xff]
        %v1643 = vld [vmem:[#allocation5 + $0xe0] sm:$0xff]
        %v1644 = vld [vmem:[#allocation5 + $0xe8] sm:$0xff]
        %v1645 = vld [vmem:[#allocation5 + $0xf0] sm:$0xff]
        %v1646 = vld [vmem:[#allocation5 + $0xf8] sm:$0xff]
        %v1647 = vld [vmem:[#allocation5 + $0x100] sm:$0xff]
        %v1648 = vld [vmem:[#allocation5 + $0x108] sm:$0xff]
        %v1649 = vld [vmem:[#allocation5 + $0x110] sm:$0xff]
        %v1650 = vld [vmem:[#allocation5 + $0x118] sm:$0xff]
        %v1651 = vld [vmem:[#allocation5 + $0x120] sm:$0xff]
        %v1652 = vld [vmem:[#allocation5 + $0x128] sm:$0xff]
        %v1653 = vld [vmem:[#allocation5 + $0x130] sm:$0xff]
        %v1654 = vld [vmem:[#allocation5 + $0x138] sm:$0xff]
        %v1655 = vld [vmem:[#allocation5 + $0x140] sm:$0xff]
        %v1656 = vld [vmem:[#allocation5 + $0x148] sm:$0xff]
        %v1657 = vld [vmem:[#allocation5 + $0x150] sm:$0xff]
        %v1658 = vld [vmem:[#allocation5 + $0x158] sm:$0xff]
        %v1659 = vld [vmem:[#allocation5 + $0x160] sm:$0xff]
        %v1660 = vld [vmem:[#allocation5 + $0x168] sm:$0xff]
        %v1661 = vld [vmem:[#allocation5 + $0x170] sm:$0xff]
        %v1662 = vld [vmem:[#allocation5 + $0x178] sm:$0xff]
        %v1663 = vld [vmem:[#allocation5 + $0x180] sm:$0xff]
        %v1664 = vld [vmem:[#allocation5 + $0x188] sm:$0xff]
        %v1665 = vld [vmem:[#allocation5 + $0x190] sm:$0xff]
        %v1666 = vld [vmem:[#allocation5 + $0x198] sm:$0xff]
        %v1667 = vld [vmem:[#allocation5 + $0x1a0] sm:$0xff]
        %v1668 = vld [vmem:[#allocation5 + $0x1a8] sm:$0xff]
        %v1669 = vld [vmem:[#allocation5 + $0x1b0] sm:$0xff]
        %v1670 = vld [vmem:[#allocation5 + $0x1b8] sm:$0xff]
        %v1671 = vld [vmem:[#allocation5 + $0x1c0] sm:$0xff]
        %v1672 = vld [vmem:[#allocation5 + $0x1c8] sm:$0xff]
        %v1673 = vld [vmem:[#allocation5 + $0x1d0] sm:$0xff]
        %v1674 = vld [vmem:[#allocation5 + $0x1d8] sm:$0xff]
        %v1675 = vld [vmem:[#allocation5 + $0x1e0] sm:$0xff]
        %v1676 = vld [vmem:[#allocation5 + $0x1e8] sm:$0xff]
        %v1677 = vld [vmem:[#allocation5 + $0x1f0] sm:$0xff]
        %v1678 = vld [vmem:[#allocation5 + $0x1f8] sm:$0xff]
        %v1743 = vunpack.c.l.b16 %v1615
        %v1744 = vunpack.c.h.b16 %v1615
        %v1745 = vunpack.c.l.b16 %v1616
        %v1746 = vunpack.c.h.b16 %v1616
        %v1747 = vunpack.c.l.b16 %v1617
        %v1748 = vunpack.c.h.b16 %v1617
        %v1749 = vunpack.c.l.b16 %v1618
        %v1750 = vunpack.c.h.b16 %v1618
        %v1751 = vunpack.c.l.b16 %v1619
        %v1752 = vunpack.c.h.b16 %v1619
        %v1753 = vunpack.c.l.b16 %v1620
        %v1754 = vunpack.c.h.b16 %v1620
        %v1755 = vunpack.c.l.b16 %v1621
        %v1756 = vunpack.c.h.b16 %v1621
        %v1757 = vunpack.c.l.b16 %v1622
        %v1758 = vunpack.c.h.b16 %v1622
        %v1759 = vunpack.c.l.b16 %v1623
        %v1760 = vunpack.c.h.b16 %v1623
        %v1761 = vunpack.c.l.b16 %v1624
        %v1762 = vunpack.c.h.b16 %v1624
        %v1763 = vunpack.c.l.b16 %v1625
        %v1764 = vunpack.c.h.b16 %v1625
        %v1765 = vunpack.c.l.b16 %v1626
        %v1766 = vunpack.c.h.b16 %v1626
        %v1767 = vunpack.c.l.b16 %v1627
        %v1768 = vunpack.c.h.b16 %v1627
        %v1769 = vunpack.c.l.b16 %v1628
        %v1770 = vunpack.c.h.b16 %v1628
        %v1771 = vunpack.c.l.b16 %v1629
        %v1772 = vunpack.c.h.b16 %v1629
        %v1773 = vunpack.c.l.b16 %v1630
        %v1774 = vunpack.c.h.b16 %v1630
        %v1775 = vunpack.c.l.b16 %v1631
        %v1776 = vunpack.c.h.b16 %v1631
        %v1777 = vunpack.c.l.b16 %v1632
        %v1778 = vunpack.c.h.b16 %v1632
        %v1779 = vunpack.c.l.b16 %v1633
        %v1780 = vunpack.c.h.b16 %v1633
        %v1781 = vunpack.c.l.b16 %v1634
        %v1782 = vunpack.c.h.b16 %v1634
        %v1783 = vunpack.c.l.b16 %v1635
        %v1784 = vunpack.c.h.b16 %v1635
        %v1785 = vunpack.c.l.b16 %v1636
        %v1786 = vunpack.c.h.b16 %v1636
        %v1787 = vunpack.c.l.b16 %v1637
        %v1788 = vunpack.c.h.b16 %v1637
        %v1789 = vunpack.c.l.b16 %v1638
        %v1790 = vunpack.c.h.b16 %v1638
        %v1791 = vunpack.c.l.b16 %v1639
        %v1792 = vunpack.c.h.b16 %v1639
        %v1793 = vunpack.c.l.b16 %v1640
        %v1794 = vunpack.c.h.b16 %v1640
        %v1795 = vunpack.c.l.b16 %v1641
        %v1796 = vunpack.c.h.b16 %v1641
        %v1797 = vunpack.c.l.b16 %v1642
        %v1798 = vunpack.c.h.b16 %v1642
        %v1799 = vunpack.c.l.b16 %v1643
        %v1800 = vunpack.c.h.b16 %v1643
        %v1801 = vunpack.c.l.b16 %v1644
        %v1802 = vunpack.c.h.b16 %v1644
        %v1803 = vunpack.c.l.b16 %v1645
        %v1804 = vunpack.c.h.b16 %v1645
        %v1805 = vunpack.c.l.b16 %v1646
        %v1806 = vunpack.c.h.b16 %v1646
        %v1807 = vunpack.c.l.b16 %v1647
        %v1808 = vunpack.c.h.b16 %v1647
        %v1809 = vunpack.c.l.b16 %v1648
        %v1810 = vunpack.c.h.b16 %v1648
        %v1811 = vunpack.c.l.b16 %v1649
        %v1812 = vunpack.c.h.b16 %v1649
        %v1813 = vunpack.c.l.b16 %v1650
        %v1814 = vunpack.c.h.b16 %v1650
        %v1815 = vunpack.c.l.b16 %v1651
        %v1816 = vunpack.c.h.b16 %v1651
        %v1817 = vunpack.c.l.b16 %v1652
        %v1818 = vunpack.c.h.b16 %v1652
        %v1819 = vunpack.c.l.b16 %v1653
        %v1820 = vunpack.c.h.b16 %v1653
        %v1821 = vunpack.c.l.b16 %v1654
        %v1822 = vunpack.c.h.b16 %v1654
        %v1823 = vunpack.c.l.b16 %v1655
        %v1824 = vunpack.c.h.b16 %v1655
        %v1825 = vunpack.c.l.b16 %v1656
        %v1826 = vunpack.c.h.b16 %v1656
        %v1827 = vunpack.c.l.b16 %v1657
        %v1828 = vunpack.c.h.b16 %v1657
        %v1829 = vunpack.c.l.b16 %v1658
        %v1830 = vunpack.c.h.b16 %v1658
        %v1831 = vunpack.c.l.b16 %v1659
        %v1832 = vunpack.c.h.b16 %v1659
        %v1833 = vunpack.c.l.b16 %v1660
        %v1834 = vunpack.c.h.b16 %v1660
        %v1835 = vunpack.c.l.b16 %v1661
        %v1836 = vunpack.c.h.b16 %v1661
        %v1837 = vunpack.c.l.b16 %v1662
        %v1838 = vunpack.c.h.b16 %v1662
        %v1839 = vunpack.c.l.b16 %v1663
        %v1840 = vunpack.c.h.b16 %v1663
        %v1841 = vunpack.c.l.b16 %v1664
        %v1842 = vunpack.c.h.b16 %v1664
        %v1843 = vunpack.c.l.b16 %v1665
        %v1844 = vunpack.c.h.b16 %v1665
        %v1845 = vunpack.c.l.b16 %v1666
        %v1846 = vunpack.c.h.b16 %v1666
        %v1847 = vunpack.c.l.b16 %v1667
        %v1848 = vunpack.c.h.b16 %v1667
        %v1849 = vunpack.c.l.b16 %v1668
        %v1850 = vunpack.c.h.b16 %v1668
        %v1851 = vunpack.c.l.b16 %v1669
        %v1852 = vunpack.c.h.b16 %v1669
        %v1853 = vunpack.c.l.b16 %v1670
        %v1854 = vunpack.c.h.b16 %v1670
        %v1855 = vunpack.c.l.b16 %v1671
        %v1856 = vunpack.c.h.b16 %v1671
        %v1857 = vunpack.c.l.b16 %v1672
        %v1858 = vunpack.c.h.b16 %v1672
        %v1859 = vunpack.c.l.b16 %v1673
        %v1860 = vunpack.c.h.b16 %v1673
        %v1861 = vunpack.c.l.b16 %v1674
        %v1862 = vunpack.c.h.b16 %v1674
        %v1863 = vunpack.c.l.b16 %v1675
        %v1864 = vunpack.c.h.b16 %v1675
        %v1865 = vunpack.c.l.b16 %v1676
        %v1866 = vunpack.c.h.b16 %v1676
        %v1867 = vunpack.c.l.b16 %v1677
        %v1868 = vunpack.c.h.b16 %v1677
        %v1869 = vunpack.c.l.b16 %v1678
        %v1870 = vunpack.c.h.b16 %v1678
        %v1871 = vpack.c.b16 %v1745, %v1743
        %v1872 = vpack.c.b16 %v1746, %v1744
        %v1873 = vpack.c.b16 %v1749, %v1747
        %v1874 = vpack.c.b16 %v1750, %v1748
        %v1875 = vpack.c.b16 %v1753, %v1751
        %v1876 = vpack.c.b16 %v1754, %v1752
        %v1877 = vpack.c.b16 %v1757, %v1755
        %v1878 = vpack.c.b16 %v1758, %v1756
        %v1879 = vpack.c.b16 %v1761, %v1759
        %v1880 = vpack.c.b16 %v1762, %v1760
        %v1881 = vpack.c.b16 %v1765, %v1763
        %v1882 = vpack.c.b16 %v1766, %v1764
        %v1883 = vpack.c.b16 %v1769, %v1767
        %v1884 = vpack.c.b16 %v1770, %v1768
        %v1885 = vpack.c.b16 %v1773, %v1771
        %v1886 = vpack.c.b16 %v1774, %v1772
        %v1887 = vpack.c.b16 %v1777, %v1775
        %v1888 = vpack.c.b16 %v1778, %v1776
        %v1889 = vpack.c.b16 %v1781, %v1779
        %v1890 = vpack.c.b16 %v1782, %v1780
        %v1891 = vpack.c.b16 %v1785, %v1783
        %v1892 = vpack.c.b16 %v1786, %v1784
        %v1893 = vpack.c.b16 %v1789, %v1787
        %v1894 = vpack.c.b16 %v1790, %v1788
        %v1895 = vpack.c.b16 %v1793, %v1791
        %v1896 = vpack.c.b16 %v1794, %v1792
        %v1897 = vpack.c.b16 %v1797, %v1795
        %v1898 = vpack.c.b16 %v1798, %v1796
        %v1899 = vpack.c.b16 %v1801, %v1799
        %v1900 = vpack.c.b16 %v1802, %v1800
        %v1901 = vpack.c.b16 %v1805, %v1803
        %v1902 = vpack.c.b16 %v1806, %v1804
        %v1903 = vpack.c.b16 %v1809, %v1807
        %v1904 = vpack.c.b16 %v1810, %v1808
        %v1905 = vpack.c.b16 %v1813, %v1811
        %v1906 = vpack.c.b16 %v1814, %v1812
        %v1907 = vpack.c.b16 %v1817, %v1815
        %v1908 = vpack.c.b16 %v1818, %v1816
        %v1909 = vpack.c.b16 %v1821, %v1819
        %v1910 = vpack.c.b16 %v1822, %v1820
        %v1911 = vpack.c.b16 %v1825, %v1823
        %v1912 = vpack.c.b16 %v1826, %v1824
        %v1913 = vpack.c.b16 %v1829, %v1827
        %v1914 = vpack.c.b16 %v1830, %v1828
        %v1915 = vpack.c.b16 %v1833, %v1831
        %v1916 = vpack.c.b16 %v1834, %v1832
        %v1917 = vpack.c.b16 %v1837, %v1835
        %v1918 = vpack.c.b16 %v1838, %v1836
        %v1919 = vpack.c.b16 %v1841, %v1839
        %v1920 = vpack.c.b16 %v1842, %v1840
        %v1921 = vpack.c.b16 %v1845, %v1843
        %v1922 = vpack.c.b16 %v1846, %v1844
        %v1923 = vpack.c.b16 %v1849, %v1847
        %v1924 = vpack.c.b16 %v1850, %v1848
        %v1925 = vpack.c.b16 %v1853, %v1851
        %v1926 = vpack.c.b16 %v1854, %v1852
        %v1927 = vpack.c.b16 %v1857, %v1855
        %v1928 = vpack.c.b16 %v1858, %v1856
        %v1929 = vpack.c.b16 %v1861, %v1859
        %v1930 = vpack.c.b16 %v1862, %v1860
        %v1931 = vpack.c.b16 %v1865, %v1863
        %v1932 = vpack.c.b16 %v1866, %v1864
        %v1933 = vpack.c.b16 %v1869, %v1867
        %v1934 = vpack.c.b16 %v1870, %v1868
        %1999 = vmatprep.subr.bf16.mxu0 0
        %2000 = vmatpush1.bf16.msra.mxu0 %v478
        %2001 = vmatprep.subr.bf16.mxu0 0
        %2002 = vmatpush1.bf16.msra.mxu0 %v479
        %2003 = vmatprep.subr.bf16.mxu0 0
        %2004 = vmatpush1.bf16.msra.mxu0 %v480
        %2005 = vmatprep.subr.bf16.mxu0 0
        %2006 = vmatpush1.bf16.msra.mxu0 %v481
        %2007 = vmatprep.subr.bf16.mxu0 0
        %2008 = vmatpush1.bf16.msra.mxu0 %v482
        %2009 = vmatprep.subr.bf16.mxu0 0
        %2010 = vmatpush1.bf16.msra.mxu0 %v483
        %2011 = vmatprep.subr.bf16.mxu0 0
        %2012 = vmatpush1.bf16.msra.mxu0 %v484
        %2013 = vmatprep.subr.bf16.mxu0 0
        %2014 = vmatpush1.bf16.msra.mxu0 %v485
        %2015 = vmatprep.subr.bf16.mxu0 0
        %2016 = vmatpush1.bf16.msra.mxu0 %v486
        %2017 = vmatprep.subr.bf16.mxu0 0
        %2018 = vmatpush1.bf16.msra.mxu0 %v487
        %2019 = vmatprep.subr.bf16.mxu0 0
        %2020 = vmatpush1.bf16.msra.mxu0 %v488
        %2021 = vmatprep.subr.bf16.mxu0 0
        %2022 = vmatpush1.bf16.msra.mxu0 %v489
        %2023 = vmatprep.subr.bf16.mxu0 0
        %2024 = vmatpush1.bf16.msra.mxu0 %v490
        %2025 = vmatprep.subr.bf16.mxu0 0
        %2026 = vmatpush1.bf16.msra.mxu0 %v491
        %2027 = vmatprep.subr.bf16.mxu0 0
        %2028 = vmatpush1.bf16.msra.mxu0 %v492
        %2029 = vmatprep.subr.bf16.mxu0 0
        %2030 = vmatpush1.bf16.msra.mxu0 %v493
        %2031 = vmatprep.mubr.bf16.mxu0 %v1872
        %2032 = vmatmul.mubr.bf16.gmra.mrb[0].mxu0 %v1871
        %v2033 = vpop.f32.mrb[0].mxu0
        %v2034 = vadd.f32 0.0, %v2033
        %v2035 = vpop.f32.mrb[0].mxu0
        %v2036 = vpop.f32.mrb[0].mxu0
        %v2037 = vadd.f32 0.0, %v2036
        %v2038 = vpop.f32.mrb[0].mxu0
        %2039 = vmatprep.mubr.bf16.mxu0 %v1874
        %2040 = vmatmul.mubr.bf16.gmra.mrb[0].mxu0 %v1873
        %v2041 = vpop.f32.mrb[0].mxu0
        %v2042 = vadd.f32 0.0, %v2041
        %v2043 = vpop.f32.mrb[0].mxu0
        %v2044 = vpop.f32.mrb[0].mxu0
        %v2045 = vadd.f32 0.0, %v2044
        %v2046 = vpop.f32.mrb[0].mxu0
        %2047 = vmatprep.mubr.bf16.mxu0 %v1876
        %2048 = vmatmul.mubr.bf16.gmra.mrb[0].mxu0 %v1875
        %v2049 = vpop.f32.mrb[0].mxu0
        %v2050 = vadd.f32 0.0, %v2049
        %v2051 = vpop.f32.mrb[0].mxu0
        %v2052 = vpop.f32.mrb[0].mxu0
        %v2053 = vadd.f32 0.0, %v2052
        %v2054 = vpop.f32.mrb[0].mxu0
        %2055 = vmatprep.mubr.bf16.mxu0 %v1878
        %2056 = vmatmul.mubr.bf16.gmra.mrb[0].mxu0 %v1877
        %v2057 = vpop.f32.mrb[0].mxu0
        %v2058 = vadd.f32 0.0, %v2057
        %v2059 = vpop.f32.mrb[0].mxu0
        %v2060 = vpop.f32.mrb[0].mxu0
        %v2061 = vadd.f32 0.0, %v2060
        %v2062 = vpop.f32.mrb[0].mxu0
        %2063 = vmatprep.mubr.bf16.mxu0 %v1880
        %2064 = vmatmul.mubr.bf16.gmra.mrb[0].mxu0 %v1879
        %v2065 = vpop.f32.mrb[0].mxu0
        %v2066 = vadd.f32 0.0, %v2065
        %v2067 = vpop.f32.mrb[0].mxu0
        %v2068 = vpop.f32.mrb[0].mxu0
        %v2069 = vadd.f32 0.0, %v2068
        %v2070 = vpop.f32.mrb[0].mxu0
        %2071 = vmatprep.mubr.bf16.mxu0 %v1882
        %2072 = vmatmul.mubr.bf16.gmra.mrb[0].mxu0 %v1881
        %v2073 = vpop.f32.mrb[0].mxu0
        %v2074 = vadd.f32 0.0, %v2073
        %v2075 = vpop.f32.mrb[0].mxu0
        %v2076 = vpop.f32.mrb[0].mxu0
        %v2077 = vadd.f32 0.0, %v2076
        %v2078 = vpop.f32.mrb[0].mxu0
        %2079 = vmatprep.mubr.bf16.mxu0 %v1884
        %2080 = vmatmul.mubr.bf16.gmra.mrb[0].mxu0 %v1883
        %v2081 = vpop.f32.mrb[0].mxu0
        %v2082 = vadd.f32 0.0, %v2081
        %v2083 = vpop.f32.mrb[0].mxu0
        %v2084 = vpop.f32.mrb[0].mxu0
        %v2085 = vadd.f32 0.0, %v2084
        %v2086 = vpop.f32.mrb[0].mxu0
        %2087 = vmatprep.mubr.bf16.mxu0 %v1886
        %2088 = vmatmul.mubr.bf16.gmra.mrb[0].mxu0 %v1885
        %v2089 = vpop.f32.mrb[0].mxu0
        %v2090 = vadd.f32 0.0, %v2089
        %v2091 = vpop.f32.mrb[0].mxu0
        %v2092 = vpop.f32.mrb[0].mxu0
        %v2093 = vadd.f32 0.0, %v2092
        %v2094 = vpop.f32.mrb[0].mxu0
        %2095 = vmatprep.mubr.bf16.mxu0 %v1888
        %2096 = vmatmul.mubr.bf16.gmra.mrb[0].mxu0 %v1887
        %v2097 = vpop.f32.mrb[0].mxu0
        %v2098 = vadd.f32 0.0, %v2097
        %v2099 = vpop.f32.mrb[0].mxu0
        %v2100 = vpop.f32.mrb[0].mxu0
        %v2101 = vadd.f32 0.0, %v2100
        %v2102 = vpop.f32.mrb[0].mxu0
        %2103 = vmatprep.mubr.bf16.mxu0 %v1890
        %2104 = vmatmul.mubr.bf16.gmra.mrb[0].mxu0 %v1889
        %v2105 = vpop.f32.mrb[0].mxu0
        %v2106 = vadd.f32 0.0, %v2105
        %v2107 = vpop.f32.mrb[0].mxu0
        %v2108 = vpop.f32.mrb[0].mxu0
        %v2109 = vadd.f32 0.0, %v2108
        %v2110 = vpop.f32.mrb[0].mxu0
        %2111 = vmatprep.mubr.bf16.mxu0 %v1892
        %2112 = vmatmul.mubr.bf16.gmra.mrb[0].mxu0 %v1891
        %v2113 = vpop.f32.mrb[0].mxu0
        %v2114 = vadd.f32 0.0, %v2113
        %v2115 = vpop.f32.mrb[0].mxu0
        %v2116 = vpop.f32.mrb[0].mxu0
        %v2117 = vadd.f32 0.0, %v2116
        %v2118 = vpop.f32.mrb[0].mxu0
        %2119 = vmatprep.mubr.bf16.mxu0 %v1894
        %2120 = vmatmul.mubr.bf16.gmra.mrb[0].mxu0 %v1893
        %v2121 = vpop.f32.mrb[0].mxu0
        %v2122 = vadd.f32 0.0, %v2121
        %v2123 = vpop.f32.mrb[0].mxu0
        %v2124 = vpop.f32.mrb[0].mxu0
        %v2125 = vadd.f32 0.0, %v2124
        %v2126 = vpop.f32.mrb[0].mxu0
        %2127 = vmatprep.mubr.bf16.mxu0 %v1896
        %2128 = vmatmul.mubr.bf16.gmra.mrb[0].mxu0 %v1895
        %v2129 = vpop.f32.mrb[0].mxu0
        %v2130 = vadd.f32 0.0, %v2129
        %v2131 = vpop.f32.mrb[0].mxu0
        %v2132 = vpop.f32.mrb[0].mxu0
        %v2133 = vadd.f32 0.0, %v2132
        %v2134 = vpop.f32.mrb[0].mxu0
        %2135 = vmatprep.mubr.bf16.mxu0 %v1898
        %2136 = vmatmul.mubr.bf16.gmra.mrb[0].mxu0 %v1897
        %v2137 = vpop.f32.mrb[0].mxu0
        %v2138 = vadd.f32 0.0, %v2137
        %v2139 = vpop.f32.mrb[0].mxu0
        %v2140 = vpop.f32.mrb[0].mxu0
        %v2141 = vadd.f32 0.0, %v2140
        %v2142 = vpop.f32.mrb[0].mxu0
        %2143 = vmatprep.mubr.bf16.mxu0 %v1900
        %2144 = vmatmul.mubr.bf16.gmra.mrb[0].mxu0 %v1899
        %v2145 = vpop.f32.mrb[0].mxu0
        %v2146 = vadd.f32 0.0, %v2145
        %v2147 = vpop.f32.mrb[0].mxu0
        %v2148 = vpop.f32.mrb[0].mxu0
        %v2149 = vadd.f32 0.0, %v2148
        %v2150 = vpop.f32.mrb[0].mxu0
        %2151 = vmatprep.mubr.bf16.mxu0 %v1902
        %2152 = vmatmul.mubr.bf16.gmra.mrb[0].mxu0 %v1901
        %v2153 = vpop.f32.mrb[0].mxu0
        %v2154 = vadd.f32 0.0, %v2153
        %v2155 = vpop.f32.mrb[0].mxu0
        %v2156 = vpop.f32.mrb[0].mxu0
        %v2157 = vadd.f32 0.0, %v2156
        %v2158 = vpop.f32.mrb[0].mxu0
        %2159 = vmatprep.mubr.bf16.mxu0 %v1904
        %2160 = vmatmul.mubr.bf16.gmra.mrb[0].mxu0 %v1903
        %v2161 = vpop.f32.mrb[0].mxu0
        %v2162 = vadd.f32 0.0, %v2161
        %v2163 = vpop.f32.mrb[0].mxu0
        %v2164 = vpop.f32.mrb[0].mxu0
        %v2165 = vadd.f32 0.0, %v2164
        %v2166 = vpop.f32.mrb[0].mxu0
        %2167 = vmatprep.mubr.bf16.mxu0 %v1906
        %2168 = vmatmul.mubr.bf16.gmra.mrb[0].mxu0 %v1905
        %v2169 = vpop.f32.mrb[0].mxu0
        %v2170 = vadd.f32 0.0, %v2169
        %v2171 = vpop.f32.mrb[0].mxu0
        %v2172 = vpop.f32.mrb[0].mxu0
        %v2173 = vadd.f32 0.0, %v2172
        %v2174 = vpop.f32.mrb[0].mxu0
        %2175 = vmatprep.mubr.bf16.mxu0 %v1908
        %2176 = vmatmul.mubr.bf16.gmra.mrb[0].mxu0 %v1907
        %v2177 = vpop.f32.mrb[0].mxu0
        %v2178 = vadd.f32 0.0, %v2177
        %v2179 = vpop.f32.mrb[0].mxu0
        %v2180 = vpop.f32.mrb[0].mxu0
        %v2181 = vadd.f32 0.0, %v2180
        %v2182 = vpop.f32.mrb[0].mxu0
        %2183 = vmatprep.mubr.bf16.mxu0 %v1910
        %2184 = vmatmul.mubr.bf16.gmra.mrb[0].mxu0 %v1909
        %v2185 = vpop.f32.mrb[0].mxu0
        %v2186 = vadd.f32 0.0, %v2185
        %v2187 = vpop.f32.mrb[0].mxu0
        %v2188 = vpop.f32.mrb[0].mxu0
        %v2189 = vadd.f32 0.0, %v2188
        %v2190 = vpop.f32.mrb[0].mxu0
        %2191 = vmatprep.mubr.bf16.mxu0 %v1912
        %2192 = vmatmul.mubr.bf16.gmra.mrb[0].mxu0 %v1911
        %v2193 = vpop.f32.mrb[0].mxu0
        %v2194 = vadd.f32 0.0, %v2193
        %v2195 = vpop.f32.mrb[0].mxu0
        %v2196 = vpop.f32.mrb[0].mxu0
        %v2197 = vadd.f32 0.0, %v2196
        %v2198 = vpop.f32.mrb[0].mxu0
        %2199 = vmatprep.mubr.bf16.mxu0 %v1914
        %2200 = vmatmul.mubr.bf16.gmra.mrb[0].mxu0 %v1913
        %v2201 = vpop.f32.mrb[0].mxu0
        %v2202 = vadd.f32 0.0, %v2201
        %v2203 = vpop.f32.mrb[0].mxu0
        %v2204 = vpop.f32.mrb[0].mxu0
        %v2205 = vadd.f32 0.0, %v2204
        %v2206 = vpop.f32.mrb[0].mxu0
        %2207 = vmatprep.mubr.bf16.mxu0 %v1916
        %2208 = vmatmul.mubr.bf16.gmra.mrb[0].mxu0 %v1915
        %v2209 = vpop.f32.mrb[0].mxu0
        %v2210 = vadd.f32 0.0, %v2209
        %v2211 = vpop.f32.mrb[0].mxu0
        %v2212 = vpop.f32.mrb[0].mxu0
        %v2213 = vadd.f32 0.0, %v2212
        %v2214 = vpop.f32.mrb[0].mxu0
        %2215 = vmatprep.mubr.bf16.mxu0 %v1918
        %2216 = vmatmul.mubr.bf16.gmra.mrb[0].mxu0 %v1917
        %v2217 = vpop.f32.mrb[0].mxu0
        %v2218 = vadd.f32 0.0, %v2217
        %v2219 = vpop.f32.mrb[0].mxu0
        %v2220 = vpop.f32.mrb[0].mxu0
        %v2221 = vadd.f32 0.0, %v2220
        %v2222 = vpop.f32.mrb[0].mxu0
        %2223 = vmatprep.mubr.bf16.mxu0 %v1920
        %2224 = vmatmul.mubr.bf16.gmra.mrb[0].mxu0 %v1919
        %v2225 = vpop.f32.mrb[0].mxu0
        %v2226 = vadd.f32 0.0, %v2225
        %v2227 = vpop.f32.mrb[0].mxu0
        %v2228 = vpop.f32.mrb[0].mxu0
        %v2229 = vadd.f32 0.0, %v2228
        %v2230 = vpop.f32.mrb[0].mxu0
        %2231 = vmatprep.mubr.bf16.mxu0 %v1922
        %2232 = vmatmul.mubr.bf16.gmra.mrb[0].mxu0 %v1921
        %v2233 = vpop.f32.mrb[0].mxu0
        %v2234 = vadd.f32 0.0, %v2233
        %v2235 = vpop.f32.mrb[0].mxu0
        %v2236 = vpop.f32.mrb[0].mxu0
        %v2237 = vadd.f32 0.0, %v2236
        %v2238 = vpop.f32.mrb[0].mxu0
        %2239 = vmatprep.mubr.bf16.mxu0 %v1924
        %2240 = vmatmul.mubr.bf16.gmra.mrb[0].mxu0 %v1923
        %v2241 = vpop.f32.mrb[0].mxu0
        %v2242 = vadd.f32 0.0, %v2241
        %v2243 = vpop.f32.mrb[0].mxu0
        %v2244 = vpop.f32.mrb[0].mxu0
        %v2245 = vadd.f32 0.0, %v2244
        %v2246 = vpop.f32.mrb[0].mxu0
        %2247 = vmatprep.mubr.bf16.mxu0 %v1926
        %2248 = vmatmul.mubr.bf16.gmra.mrb[0].mxu0 %v1925
        %v2249 = vpop.f32.mrb[0].mxu0
        %v2250 = vadd.f32 0.0, %v2249
        %v2251 = vpop.f32.mrb[0].mxu0
        %v2252 = vpop.f32.mrb[0].mxu0
        %v2253 = vadd.f32 0.0, %v2252
        %v2254 = vpop.f32.mrb[0].mxu0
        %2255 = vmatprep.mubr.bf16.mxu0 %v1928
        %2256 = vmatmul.mubr.bf16.gmra.mrb[0].mxu0 %v1927
        %v2257 = vpop.f32.mrb[0].mxu0
        %v2258 = vadd.f32 0.0, %v2257
        %v2259 = vpop.f32.mrb[0].mxu0
        %v2260 = vpop.f32.mrb[0].mxu0
        %v2261 = vadd.f32 0.0, %v2260
        %v2262 = vpop.f32.mrb[0].mxu0
        %2263 = vmatprep.mubr.bf16.mxu0 %v1930
        %2264 = vmatmul.mubr.bf16.gmra.mrb[0].mxu0 %v1929
        %v2265 = vpop.f32.mrb[0].mxu0
        %v2266 = vadd.f32 0.0, %v2265
        %v2267 = vpop.f32.mrb[0].mxu0
        %v2268 = vpop.f32.mrb[0].mxu0
        %v2269 = vadd.f32 0.0, %v2268
        %v2270 = vpop.f32.mrb[0].mxu0
        %2271 = vmatprep.mubr.bf16.mxu0 %v1932
        %2272 = vmatmul.mubr.bf16.gmra.mrb[0].mxu0 %v1931
        %v2273 = vpop.f32.mrb[0].mxu0
        %v2274 = vadd.f32 0.0, %v2273
        %v2275 = vpop.f32.mrb[0].mxu0
        %v2276 = vpop.f32.mrb[0].mxu0
        %v2277 = vadd.f32 0.0, %v2276
        %v2278 = vpop.f32.mrb[0].mxu0
        %2279 = vmatprep.mubr.bf16.mxu0 %v1934
        %2280 = vmatmul.mubr.bf16.gmra.mrb[0].mxu0 %v1933
        %v2281 = vpop.f32.mrb[0].mxu0
        %v2282 = vadd.f32 0.0, %v2281
        %v2283 = vpop.f32.mrb[0].mxu0
        %v2284 = vpop.f32.mrb[0].mxu0
        %v2285 = vadd.f32 0.0, %v2284
        %v2286 = vpop.f32.mrb[0].mxu0
        %2287 = vdwg.mxu0
        %v2288 = vadd.f32 %v1233, %v2034
        %v2289 = vadd.f32 %v1236, %v2037
        %v2290 = vadd.f32 %v1241, %v2042
        %v2291 = vadd.f32 %v1244, %v2045
        %v2292 = vadd.f32 %v1249, %v2050
        %v2293 = vadd.f32 %v1252, %v2053
        %v2294 = vadd.f32 %v1257, %v2058
        %v2295 = vadd.f32 %v1260, %v2061
        %v2296 = vadd.f32 %v1265, %v2066
        %v2297 = vadd.f32 %v1268, %v2069
        %v2298 = vadd.f32 %v1273, %v2074
        %v2299 = vadd.f32 %v1276, %v2077
        %v2300 = vadd.f32 %v1281, %v2082
        %v2301 = vadd.f32 %v1284, %v2085
        %v2302 = vadd.f32 %v1289, %v2090
        %v2303 = vadd.f32 %v1292, %v2093
        %v2304 = vadd.f32 %v1297, %v2098
        %v2305 = vadd.f32 %v1300, %v2101
        %v2306 = vadd.f32 %v1305, %v2106
        %v2307 = vadd.f32 %v1308, %v2109
        %v2308 = vadd.f32 %v1313, %v2114
        %v2309 = vadd.f32 %v1316, %v2117
        %v2310 = vadd.f32 %v1321, %v2122
        %v2311 = vadd.f32 %v1324, %v2125
        %v2312 = vadd.f32 %v1329, %v2130
        %v2313 = vadd.f32 %v1332, %v2133
        %v2314 = vadd.f32 %v1337, %v2138
        %v2315 = vadd.f32 %v1340, %v2141
        %v2316 = vadd.f32 %v1345, %v2146
        %v2317 = vadd.f32 %v1348, %v2149
        %v2318 = vadd.f32 %v1353, %v2154
        %v2319 = vadd.f32 %v1356, %v2157
        %v2320 = vld [vmem:[%s438] sm:$0x1]
        %v2322 = vlaneseq
        %v2323 = vshrl.u32 %v2322, 7
        %v2324 = vsub.s32 0, %v2323
        %v2325 = vrot.slane %v2320, %v2324
        %v2327 = vadd.f32 %v2288, %v2325
        %v2328 = vadd.f32 %v2289, %v2325
        %v2329 = vadd.f32 %v2290, %v2325
        %v2330 = vadd.f32 %v2291, %v2325
        %v2331 = vadd.f32 %v2292, %v2325
        %v2332 = vadd.f32 %v2293, %v2325
        %v2333 = vadd.f32 %v2294, %v2325
        %v2334 = vadd.f32 %v2295, %v2325
        %v2335 = vadd.f32 %v2296, %v2325
        %v2336 = vadd.f32 %v2297, %v2325
        %v2337 = vadd.f32 %v2298, %v2325
        %v2338 = vadd.f32 %v2299, %v2325
        %v2339 = vadd.f32 %v2300, %v2325
        %v2340 = vadd.f32 %v2301, %v2325
        %v2341 = vadd.f32 %v2302, %v2325
        %v2342 = vadd.f32 %v2303, %v2325
        %v2343 = vadd.f32 %v2304, %v2325
        %v2344 = vadd.f32 %v2305, %v2325
        %v2345 = vadd.f32 %v2306, %v2325
        %v2346 = vadd.f32 %v2307, %v2325
        %v2347 = vadd.f32 %v2308, %v2325
        %v2348 = vadd.f32 %v2309, %v2325
        %v2349 = vadd.f32 %v2310, %v2325
        %v2350 = vadd.f32 %v2311, %v2325
        %v2351 = vadd.f32 %v2312, %v2325
        %v2352 = vadd.f32 %v2313, %v2325
        %v2353 = vadd.f32 %v2314, %v2325
        %v2354 = vadd.f32 %v2315, %v2325
        %v2355 = vadd.f32 %v2316, %v2325
        %v2356 = vadd.f32 %v2317, %v2325
        %v2357 = vadd.f32 %v2318, %v2325
        %v2358 = vadd.f32 %v2319, %v2325
        %v2359 = vxor.u32 %v2327, 2147483648
        %v2360 = vxor.u32 %v2328, 2147483648
        %v2361 = vxor.u32 %v2329, 2147483648
        %v2362 = vxor.u32 %v2330, 2147483648
        %v2363 = vxor.u32 %v2331, 2147483648
        %v2364 = vxor.u32 %v2332, 2147483648
        %v2365 = vxor.u32 %v2333, 2147483648
        %v2366 = vxor.u32 %v2334, 2147483648
        %v2367 = vxor.u32 %v2335, 2147483648
        %v2368 = vxor.u32 %v2336, 2147483648
        %v2369 = vxor.u32 %v2337, 2147483648
        %v2370 = vxor.u32 %v2338, 2147483648
        %v2371 = vxor.u32 %v2339, 2147483648
        %v2372 = vxor.u32 %v2340, 2147483648
        %v2373 = vxor.u32 %v2341, 2147483648
        %v2374 = vxor.u32 %v2342, 2147483648
        %v2375 = vxor.u32 %v2343, 2147483648
        %v2376 = vxor.u32 %v2344, 2147483648
        %v2377 = vxor.u32 %v2345, 2147483648
        %v2378 = vxor.u32 %v2346, 2147483648
        %v2379 = vxor.u32 %v2347, 2147483648
        %v2380 = vxor.u32 %v2348, 2147483648
        %v2381 = vxor.u32 %v2349, 2147483648
        %v2382 = vxor.u32 %v2350, 2147483648
        %v2383 = vxor.u32 %v2351, 2147483648
        %v2384 = vxor.u32 %v2352, 2147483648
        %v2385 = vxor.u32 %v2353, 2147483648
        %v2386 = vxor.u32 %v2354, 2147483648
        %v2387 = vxor.u32 %v2355, 2147483648
        %v2388 = vxor.u32 %v2356, 2147483648
        %v2389 = vxor.u32 %v2357, 2147483648
        %v2390 = vxor.u32 %v2358, 2147483648
        %v2391 = vmul.f32 %v2359, 1.442695
        %v2392 = vpow.pop %v2391
        %v2393 = vmul.f32 %v2360, 1.442695
        %v2394 = vpow.pop %v2393
        %v2395 = vmul.f32 %v2361, 1.442695
        %v2396 = vpow.pop %v2395
        %v2397 = vmul.f32 %v2362, 1.442695
        %v2398 = vpow.pop %v2397
        %v2399 = vmul.f32 %v2363, 1.442695
        %v2400 = vpow.pop %v2399
        %v2401 = vmul.f32 %v2364, 1.442695
        %v2402 = vpow.pop %v2401
        %v2403 = vmul.f32 %v2365, 1.442695
        %v2404 = vpow.pop %v2403
        %v2405 = vmul.f32 %v2366, 1.442695
        %v2406 = vpow.pop %v2405
        %v2407 = vmul.f32 %v2367, 1.442695
        %v2408 = vpow.pop %v2407
        %v2409 = vmul.f32 %v2368, 1.442695
        %v2410 = vpow.pop %v2409
        %v2411 = vmul.f32 %v2369, 1.442695
        %v2412 = vpow.pop %v2411
        %v2413 = vmul.f32 %v2370, 1.442695
        %v2414 = vpow.pop %v2413
        %v2415 = vmul.f32 %v2371, 1.442695
        %v2416 = vpow.pop %v2415
        %v2417 = vmul.f32 %v2372, 1.442695
        %v2418 = vpow.pop %v2417
        %v2419 = vmul.f32 %v2373, 1.442695
        %v2420 = vpow.pop %v2419
        %v2421 = vmul.f32 %v2374, 1.442695
        %v2422 = vpow.pop %v2421
        %v2423 = vmul.f32 %v2375, 1.442695
        %v2424 = vpow.pop %v2423
        %v2425 = vmul.f32 %v2376, 1.442695
        %v2426 = vpow.pop %v2425
        %v2427 = vmul.f32 %v2377, 1.442695
        %v2428 = vpow.pop %v2427
        %v2429 = vmul.f32 %v2378, 1.442695
        %v2430 = vpow.pop %v2429
        %v2431 = vmul.f32 %v2379, 1.442695
        %v2432 = vpow.pop %v2431
        %v2433 = vmul.f32 %v2380, 1.442695
        %v2434 = vpow.pop %v2433
        %v2435 = vmul.f32 %v2381, 1.442695
        %v2436 = vpow.pop %v2435
        %v2437 = vmul.f32 %v2382, 1.442695
        %v2438 = vpow.pop %v2437
        %v2439 = vmul.f32 %v2383, 1.442695
        %v2440 = vpow.pop %v2439
        %v2441 = vmul.f32 %v2384, 1.442695
        %v2442 = vpow.pop %v2441
        %v2443 = vmul.f32 %v2385, 1.442695
        %v2444 = vpow.pop %v2443
        %v2445 = vmul.f32 %v2386, 1.442695
        %v2446 = vpow.pop %v2445
        %v2447 = vmul.f32 %v2387, 1.442695
        %v2448 = vpow.pop %v2447
        %v2449 = vmul.f32 %v2388, 1.442695
        %v2450 = vpow.pop %v2449
        %v2451 = vmul.f32 %v2389, 1.442695
        %v2452 = vpow.pop %v2451
        %v2453 = vmul.f32 %v2390, 1.442695
        %v2454 = vpow.pop %v2453
        %v2455 = vadd.f32 %v2392, 1.0
        %v2456 = vadd.f32 %v2394, 1.0
        %v2457 = vadd.f32 %v2396, 1.0
        %v2458 = vadd.f32 %v2398, 1.0
        %v2459 = vadd.f32 %v2400, 1.0
        %v2460 = vadd.f32 %v2402, 1.0
        %v2461 = vadd.f32 %v2404, 1.0
        %v2462 = vadd.f32 %v2406, 1.0
        %v2463 = vadd.f32 %v2408, 1.0
        %v2464 = vadd.f32 %v2410, 1.0
        %v2465 = vadd.f32 %v2412, 1.0
        %v2466 = vadd.f32 %v2414, 1.0
        %v2467 = vadd.f32 %v2416, 1.0
        %v2468 = vadd.f32 %v2418, 1.0
        %v2469 = vadd.f32 %v2420, 1.0
        %v2470 = vadd.f32 %v2422, 1.0
        %v2471 = vadd.f32 %v2424, 1.0
        %v2472 = vadd.f32 %v2426, 1.0
        %v2473 = vadd.f32 %v2428, 1.0
        %v2474 = vadd.f32 %v2430, 1.0
        %v2475 = vadd.f32 %v2432, 1.0
        %v2476 = vadd.f32 %v2434, 1.0
        %v2477 = vadd.f32 %v2436, 1.0
        %v2478 = vadd.f32 %v2438, 1.0
        %v2479 = vadd.f32 %v2440, 1.0
        %v2480 = vadd.f32 %v2442, 1.0
        %v2481 = vadd.f32 %v2444, 1.0
        %v2482 = vadd.f32 %v2446, 1.0
        %v2483 = vadd.f32 %v2448, 1.0
        %v2484 = vadd.f32 %v2450, 1.0
        %v2485 = vadd.f32 %v2452, 1.0
        %v2486 = vadd.f32 %v2454, 1.0
        %v2487 = vrcp.pop %v2455
        %v2488 = vmul.f32 1.0, %v2487
        %v2489 = vrcp.pop %v2456
        %v2490 = vmul.f32 1.0, %v2489
        %v2491 = vrcp.pop %v2457
        %v2492 = vmul.f32 1.0, %v2491
        %v2493 = vrcp.pop %v2458
        %v2494 = vmul.f32 1.0, %v2493
        %v2495 = vrcp.pop %v2459
        %v2496 = vmul.f32 1.0, %v2495
        %v2497 = vrcp.pop %v2460
        %v2498 = vmul.f32 1.0, %v2497
        %v2499 = vrcp.pop %v2461
        %v2500 = vmul.f32 1.0, %v2499
        %v2501 = vrcp.pop %v2462
        %v2502 = vmul.f32 1.0, %v2501
        %v2503 = vrcp.pop %v2463
        %v2504 = vmul.f32 1.0, %v2503
        %v2505 = vrcp.pop %v2464
        %v2506 = vmul.f32 1.0, %v2505
        %v2507 = vrcp.pop %v2465
        %v2508 = vmul.f32 1.0, %v2507
        %v2509 = vrcp.pop %v2466
        %v2510 = vmul.f32 1.0, %v2509
        %v2511 = vrcp.pop %v2467
        %v2512 = vmul.f32 1.0, %v2511
        %v2513 = vrcp.pop %v2468
        %v2514 = vmul.f32 1.0, %v2513
        %v2515 = vrcp.pop %v2469
        %v2516 = vmul.f32 1.0, %v2515
        %v2517 = vrcp.pop %v2470
        %v2518 = vmul.f32 1.0, %v2517
        %v2519 = vrcp.pop %v2471
        %v2520 = vmul.f32 1.0, %v2519
        %v2521 = vrcp.pop %v2472
        %v2522 = vmul.f32 1.0, %v2521
        %v2523 = vrcp.pop %v2473
        %v2524 = vmul.f32 1.0, %v2523
        %v2525 = vrcp.pop %v2474
        %v2526 = vmul.f32 1.0, %v2525
        %v2527 = vrcp.pop %v2475
        %v2528 = vmul.f32 1.0, %v2527
        %v2529 = vrcp.pop %v2476
        %v2530 = vmul.f32 1.0, %v2529
        %v2531 = vrcp.pop %v2477
        %v2532 = vmul.f32 1.0, %v2531
        %v2533 = vrcp.pop %v2478
        %v2534 = vmul.f32 1.0, %v2533
        %v2535 = vrcp.pop %v2479
        %v2536 = vmul.f32 1.0, %v2535
        %v2537 = vrcp.pop %v2480
        %v2538 = vmul.f32 1.0, %v2537
        %v2539 = vrcp.pop %v2481
        %v2540 = vmul.f32 1.0, %v2539
        %v2541 = vrcp.pop %v2482
        %v2542 = vmul.f32 1.0, %v2541
        %v2543 = vrcp.pop %v2483
        %v2544 = vmul.f32 1.0, %v2543
        %v2545 = vrcp.pop %v2484
        %v2546 = vmul.f32 1.0, %v2545
        %v2547 = vrcp.pop %v2485
        %v2548 = vmul.f32 1.0, %v2547
        %v2549 = vrcp.pop %v2486
        %v2550 = vmul.f32 1.0, %v2549
        %v2551 = vadd.f32 %v1361, %v2162
        %v2552 = vadd.f32 %v1364, %v2165
        %v2553 = vadd.f32 %v1369, %v2170
        %v2554 = vadd.f32 %v1372, %v2173
        %v2555 = vadd.f32 %v1377, %v2178
        %v2556 = vadd.f32 %v1380, %v2181
        %v2557 = vadd.f32 %v1385, %v2186
        %v2558 = vadd.f32 %v1388, %v2189
        %v2559 = vadd.f32 %v1393, %v2194
        %v2560 = vadd.f32 %v1396, %v2197
        %v2561 = vadd.f32 %v1401, %v2202
        %v2562 = vadd.f32 %v1404, %v2205
        %v2563 = vadd.f32 %v1409, %v2210
        %v2564 = vadd.f32 %v1412, %v2213
        %v2565 = vadd.f32 %v1417, %v2218
        %v2566 = vadd.f32 %v1420, %v2221
        %v2567 = vadd.f32 %v1425, %v2226
        %v2568 = vadd.f32 %v1428, %v2229
        %v2569 = vadd.f32 %v1433, %v2234
        %v2570 = vadd.f32 %v1436, %v2237
        %v2571 = vadd.f32 %v1441, %v2242
        %v2572 = vadd.f32 %v1444, %v2245
        %v2573 = vadd.f32 %v1449, %v2250
        %v2574 = vadd.f32 %v1452, %v2253
        %v2575 = vadd.f32 %v1457, %v2258
        %v2576 = vadd.f32 %v1460, %v2261
        %v2577 = vadd.f32 %v1465, %v2266
        %v2578 = vadd.f32 %v1468, %v2269
        %v2579 = vadd.f32 %v1473, %v2274
        %v2580 = vadd.f32 %v1476, %v2277
        %v2581 = vadd.f32 %v1481, %v2282
        %v2582 = vadd.f32 %v1484, %v2285
        %v2583 = vld [vmem:[%s441] sm:$0x1]
        %v2585 = vlaneseq
        %v2586 = vshrl.u32 %v2585, 7
        %v2587 = vsub.s32 0, %v2586
        %v2588 = vrot.slane %v2583, %v2587
        %v2590 = vadd.f32 %v2551, %v2588
        %v2591 = vadd.f32 %v2552, %v2588
        %v2592 = vadd.f32 %v2553, %v2588
        %v2593 = vadd.f32 %v2554, %v2588
        %v2594 = vadd.f32 %v2555, %v2588
        %v2595 = vadd.f32 %v2556, %v2588
        %v2596 = vadd.f32 %v2557, %v2588
        %v2597 = vadd.f32 %v2558, %v2588
        %v2598 = vadd.f32 %v2559, %v2588
        %v2599 = vadd.f32 %v2560, %v2588
        %v2600 = vadd.f32 %v2561, %v2588
        %v2601 = vadd.f32 %v2562, %v2588
        %v2602 = vadd.f32 %v2563, %v2588
        %v2603 = vadd.f32 %v2564, %v2588
        %v2604 = vadd.f32 %v2565, %v2588
        %v2605 = vadd.f32 %v2566, %v2588
        %v2606 = vadd.f32 %v2567, %v2588
        %v2607 = vadd.f32 %v2568, %v2588
        %v2608 = vadd.f32 %v2569, %v2588
        %v2609 = vadd.f32 %v2570, %v2588
        %v2610 = vadd.f32 %v2571, %v2588
        %v2611 = vadd.f32 %v2572, %v2588
        %v2612 = vadd.f32 %v2573, %v2588
        %v2613 = vadd.f32 %v2574, %v2588
        %v2614 = vadd.f32 %v2575, %v2588
        %v2615 = vadd.f32 %v2576, %v2588
        %v2616 = vadd.f32 %v2577, %v2588
        %v2617 = vadd.f32 %v2578, %v2588
        %v2618 = vadd.f32 %v2579, %v2588
        %v2619 = vadd.f32 %v2580, %v2588
        %v2620 = vadd.f32 %v2581, %v2588
        %v2621 = vadd.f32 %v2582, %v2588
        %v2622 = vxor.u32 %v2590, 2147483648
        %v2623 = vxor.u32 %v2591, 2147483648
        %v2624 = vxor.u32 %v2592, 2147483648
        %v2625 = vxor.u32 %v2593, 2147483648
        %v2626 = vxor.u32 %v2594, 2147483648
        %v2627 = vxor.u32 %v2595, 2147483648
        %v2628 = vxor.u32 %v2596, 2147483648
        %v2629 = vxor.u32 %v2597, 2147483648
        %v2630 = vxor.u32 %v2598, 2147483648
        %v2631 = vxor.u32 %v2599, 2147483648
        %v2632 = vxor.u32 %v2600, 2147483648
        %v2633 = vxor.u32 %v2601, 2147483648
        %v2634 = vxor.u32 %v2602, 2147483648
        %v2635 = vxor.u32 %v2603, 2147483648
        %v2636 = vxor.u32 %v2604, 2147483648
        %v2637 = vxor.u32 %v2605, 2147483648
        %v2638 = vxor.u32 %v2606, 2147483648
        %v2639 = vxor.u32 %v2607, 2147483648
        %v2640 = vxor.u32 %v2608, 2147483648
        %v2641 = vxor.u32 %v2609, 2147483648
        %v2642 = vxor.u32 %v2610, 2147483648
        %v2643 = vxor.u32 %v2611, 2147483648
        %v2644 = vxor.u32 %v2612, 2147483648
        %v2645 = vxor.u32 %v2613, 2147483648
        %v2646 = vxor.u32 %v2614, 2147483648
        %v2647 = vxor.u32 %v2615, 2147483648
        %v2648 = vxor.u32 %v2616, 2147483648
        %v2649 = vxor.u32 %v2617, 2147483648
        %v2650 = vxor.u32 %v2618, 2147483648
        %v2651 = vxor.u32 %v2619, 2147483648
        %v2652 = vxor.u32 %v2620, 2147483648
        %v2653 = vxor.u32 %v2621, 2147483648
        %v2654 = vmul.f32 %v2622, 1.442695
        %v2655 = vpow.pop %v2654
        %v2656 = vmul.f32 %v2623, 1.442695
        %v2657 = vpow.pop %v2656
        %v2658 = vmul.f32 %v2624, 1.442695
        %v2659 = vpow.pop %v2658
        %v2660 = vmul.f32 %v2625, 1.442695
        %v2661 = vpow.pop %v2660
        %v2662 = vmul.f32 %v2626, 1.442695
        %v2663 = vpow.pop %v2662
        %v2664 = vmul.f32 %v2627, 1.442695
        %v2665 = vpow.pop %v2664
        %v2666 = vmul.f32 %v2628, 1.442695
        %v2667 = vpow.pop %v2666
        %v2668 = vmul.f32 %v2629, 1.442695
        %v2669 = vpow.pop %v2668
        %v2670 = vmul.f32 %v2630, 1.442695
        %v2671 = vpow.pop %v2670
        %v2672 = vmul.f32 %v2631, 1.442695
        %v2673 = vpow.pop %v2672
        %v2674 = vmul.f32 %v2632, 1.442695
        %v2675 = vpow.pop %v2674
        %v2676 = vmul.f32 %v2633, 1.442695
        %v2677 = vpow.pop %v2676
        %v2678 = vmul.f32 %v2634, 1.442695
        %v2679 = vpow.pop %v2678
        %v2680 = vmul.f32 %v2635, 1.442695
        %v2681 = vpow.pop %v2680
        %v2682 = vmul.f32 %v2636, 1.442695
        %v2683 = vpow.pop %v2682
        %v2684 = vmul.f32 %v2637, 1.442695
        %v2685 = vpow.pop %v2684
        %v2686 = vmul.f32 %v2638, 1.442695
        %v2687 = vpow.pop %v2686
        %v2688 = vmul.f32 %v2639, 1.442695
        %v2689 = vpow.pop %v2688
        %v2690 = vmul.f32 %v2640, 1.442695
        %v2691 = vpow.pop %v2690
        %v2692 = vmul.f32 %v2641, 1.442695
        %v2693 = vpow.pop %v2692
        %v2694 = vmul.f32 %v2642, 1.442695
        %v2695 = vpow.pop %v2694
        %v2696 = vmul.f32 %v2643, 1.442695
        %v2697 = vpow.pop %v2696
        %v2698 = vmul.f32 %v2644, 1.442695
        %v2699 = vpow.pop %v2698
        %v2700 = vmul.f32 %v2645, 1.442695
        %v2701 = vpow.pop %v2700
        %v2702 = vmul.f32 %v2646, 1.442695
        %v2703 = vpow.pop %v2702
        %v2704 = vmul.f32 %v2647, 1.442695
        %v2705 = vpow.pop %v2704
        %v2706 = vmul.f32 %v2648, 1.442695
        %v2707 = vpow.pop %v2706
        %v2708 = vmul.f32 %v2649, 1.442695
        %v2709 = vpow.pop %v2708
        %v2710 = vmul.f32 %v2650, 1.442695
        %v2711 = vpow.pop %v2710
        %v2712 = vmul.f32 %v2651, 1.442695
        %v2713 = vpow.pop %v2712
        %v2714 = vmul.f32 %v2652, 1.442695
        %v2715 = vpow.pop %v2714
        %v2716 = vmul.f32 %v2653, 1.442695
        %v2717 = vpow.pop %v2716
        %v2718 = vadd.f32 %v2655, 1.0
        %v2719 = vadd.f32 %v2657, 1.0
        %v2720 = vadd.f32 %v2659, 1.0
        %v2721 = vadd.f32 %v2661, 1.0
        %v2722 = vadd.f32 %v2663, 1.0
        %v2723 = vadd.f32 %v2665, 1.0
        %v2724 = vadd.f32 %v2667, 1.0
        %v2725 = vadd.f32 %v2669, 1.0
        %v2726 = vadd.f32 %v2671, 1.0
        %v2727 = vadd.f32 %v2673, 1.0
        %v2728 = vadd.f32 %v2675, 1.0
        %v2729 = vadd.f32 %v2677, 1.0
        %v2730 = vadd.f32 %v2679, 1.0
        %v2731 = vadd.f32 %v2681, 1.0
        %v2732 = vadd.f32 %v2683, 1.0
        %v2733 = vadd.f32 %v2685, 1.0
        %v2734 = vadd.f32 %v2687, 1.0
        %v2735 = vadd.f32 %v2689, 1.0
        %v2736 = vadd.f32 %v2691, 1.0
        %v2737 = vadd.f32 %v2693, 1.0
        %v2738 = vadd.f32 %v2695, 1.0
        %v2739 = vadd.f32 %v2697, 1.0
        %v2740 = vadd.f32 %v2699, 1.0
        %v2741 = vadd.f32 %v2701, 1.0
        %v2742 = vadd.f32 %v2703, 1.0
        %v2743 = vadd.f32 %v2705, 1.0
        %v2744 = vadd.f32 %v2707, 1.0
        %v2745 = vadd.f32 %v2709, 1.0
        %v2746 = vadd.f32 %v2711, 1.0
        %v2747 = vadd.f32 %v2713, 1.0
        %v2748 = vadd.f32 %v2715, 1.0
        %v2749 = vadd.f32 %v2717, 1.0
        %v2750 = vrcp.pop %v2718
        %v2751 = vmul.f32 1.0, %v2750
        %v2752 = vrcp.pop %v2719
        %v2753 = vmul.f32 1.0, %v2752
        %v2754 = vrcp.pop %v2720
        %v2755 = vmul.f32 1.0, %v2754
        %v2756 = vrcp.pop %v2721
        %v2757 = vmul.f32 1.0, %v2756
        %v2758 = vrcp.pop %v2722
        %v2759 = vmul.f32 1.0, %v2758
        %v2760 = vrcp.pop %v2723
        %v2761 = vmul.f32 1.0, %v2760
        %v2762 = vrcp.pop %v2724
        %v2763 = vmul.f32 1.0, %v2762
        %v2764 = vrcp.pop %v2725
        %v2765 = vmul.f32 1.0, %v2764
        %v2766 = vrcp.pop %v2726
        %v2767 = vmul.f32 1.0, %v2766
        %v2768 = vrcp.pop %v2727
        %v2769 = vmul.f32 1.0, %v2768
        %v2770 = vrcp.pop %v2728
        %v2771 = vmul.f32 1.0, %v2770
        %v2772 = vrcp.pop %v2729
        %v2773 = vmul.f32 1.0, %v2772
        %v2774 = vrcp.pop %v2730
        %v2775 = vmul.f32 1.0, %v2774
        %v2776 = vrcp.pop %v2731
        %v2777 = vmul.f32 1.0, %v2776
        %v2778 = vrcp.pop %v2732
        %v2779 = vmul.f32 1.0, %v2778
        %v2780 = vrcp.pop %v2733
        %v2781 = vmul.f32 1.0, %v2780
        %v2782 = vrcp.pop %v2734
        %v2783 = vmul.f32 1.0, %v2782
        %v2784 = vrcp.pop %v2735
        %v2785 = vmul.f32 1.0, %v2784
        %v2786 = vrcp.pop %v2736
        %v2787 = vmul.f32 1.0, %v2786
        %v2788 = vrcp.pop %v2737
        %v2789 = vmul.f32 1.0, %v2788
        %v2790 = vrcp.pop %v2738
        %v2791 = vmul.f32 1.0, %v2790
        %v2792 = vrcp.pop %v2739
        %v2793 = vmul.f32 1.0, %v2792
        %v2794 = vrcp.pop %v2740
        %v2795 = vmul.f32 1.0, %v2794
        %v2796 = vrcp.pop %v2741
        %v2797 = vmul.f32 1.0, %v2796
        %v2798 = vrcp.pop %v2742
        %v2799 = vmul.f32 1.0, %v2798
        %v2800 = vrcp.pop %v2743
        %v2801 = vmul.f32 1.0, %v2800
        %v2802 = vrcp.pop %v2744
        %v2803 = vmul.f32 1.0, %v2802
        %v2804 = vrcp.pop %v2745
        %v2805 = vmul.f32 1.0, %v2804
        %v2806 = vrcp.pop %v2746
        %v2807 = vmul.f32 1.0, %v2806
        %v2808 = vrcp.pop %v2747
        %v2809 = vmul.f32 1.0, %v2808
        %v2810 = vrcp.pop %v2748
        %v2811 = vmul.f32 1.0, %v2810
        %v2812 = vrcp.pop %v2749
        %v2813 = vmul.f32 1.0, %v2812
        %v2814 = vmul.f32 %v2751, %v446
        %v2815 = vmul.f32 %v2753, %v447
        %v2816 = vmul.f32 %v2755, %v448
        %v2817 = vmul.f32 %v2757, %v449
        %v2818 = vmul.f32 %v2759, %v450
        %v2819 = vmul.f32 %v2761, %v451
        %v2820 = vmul.f32 %v2763, %v452
        %v2821 = vmul.f32 %v2765, %v453
        %v2822 = vmul.f32 %v2767, %v454
        %v2823 = vmul.f32 %v2769, %v455
        %v2824 = vmul.f32 %v2771, %v456
        %v2825 = vmul.f32 %v2773, %v457
        %v2826 = vmul.f32 %v2775, %v458
        %v2827 = vmul.f32 %v2777, %v459
        %v2828 = vmul.f32 %v2779, %v460
        %v2829 = vmul.f32 %v2781, %v461
        %v2830 = vmul.f32 %v2783, %v462
        %v2831 = vmul.f32 %v2785, %v463
        %v2832 = vmul.f32 %v2787, %v464
        %v2833 = vmul.f32 %v2789, %v465
        %v2834 = vmul.f32 %v2791, %v466
        %v2835 = vmul.f32 %v2793, %v467
        %v2836 = vmul.f32 %v2795, %v468
        %v2837 = vmul.f32 %v2797, %v469
        %v2838 = vmul.f32 %v2799, %v470
        %v2839 = vmul.f32 %v2801, %v471
        %v2840 = vmul.f32 %v2803, %v472
        %v2841 = vmul.f32 %v2805, %v473
        %v2842 = vmul.f32 %v2807, %v474
        %v2843 = vmul.f32 %v2809, %v475
        %v2844 = vmul.f32 %v2811, %v476
        %v2845 = vmul.f32 %v2813, %v477
        %v2846 = vpack.c.bf16 %v2815, %v2814
        %v2847 = vpack.c.bf16 %v2817, %v2816
        %v2848 = vpack.c.bf16 %v2819, %v2818
        %v2849 = vpack.c.bf16 %v2821, %v2820
        %v2850 = vpack.c.bf16 %v2823, %v2822
        %v2851 = vpack.c.bf16 %v2825, %v2824
        %v2852 = vpack.c.bf16 %v2827, %v2826
        %v2853 = vpack.c.bf16 %v2829, %v2828
        %v2854 = vpack.c.bf16 %v2831, %v2830
        %v2855 = vpack.c.bf16 %v2833, %v2832
        %v2856 = vpack.c.bf16 %v2835, %v2834
        %v2857 = vpack.c.bf16 %v2837, %v2836
        %v2858 = vpack.c.bf16 %v2839, %v2838
        %v2859 = vpack.c.bf16 %v2841, %v2840
        %v2860 = vpack.c.bf16 %v2843, %v2842
        %v2861 = vpack.c.bf16 %v2845, %v2844
        %v2862 = vld [vmem:[#allocation7] sm:$0xff]
        %v2863 = vld [vmem:[#allocation7 + $0x8] sm:$0xff]
        %v2864 = vld [vmem:[#allocation7 + $0x10] sm:$0xff]
        %v2865 = vld [vmem:[#allocation7 + $0x18] sm:$0xff]
        %v2866 = vld [vmem:[#allocation7 + $0x20] sm:$0xff]
        %v2867 = vld [vmem:[#allocation7 + $0x28] sm:$0xff]
        %v2868 = vld [vmem:[#allocation7 + $0x30] sm:$0xff]
        %v2869 = vld [vmem:[#allocation7 + $0x38] sm:$0xff]
        %v2870 = vld [vmem:[#allocation7 + $0x40] sm:$0xff]
        %v2871 = vld [vmem:[#allocation7 + $0x48] sm:$0xff]
        %v2872 = vld [vmem:[#allocation7 + $0x50] sm:$0xff]
        %v2873 = vld [vmem:[#allocation7 + $0x58] sm:$0xff]
        %v2874 = vld [vmem:[#allocation7 + $0x60] sm:$0xff]
        %v2875 = vld [vmem:[#allocation7 + $0x68] sm:$0xff]
        %v2876 = vld [vmem:[#allocation7 + $0x70] sm:$0xff]
        %v2877 = vld [vmem:[#allocation7 + $0x78] sm:$0xff]
        %v2878 = vld [vmem:[#allocation7 + $0x80] sm:$0xff]
        %v2879 = vld [vmem:[#allocation7 + $0x88] sm:$0xff]
        %v2880 = vld [vmem:[#allocation7 + $0x90] sm:$0xff]
        %v2881 = vld [vmem:[#allocation7 + $0x98] sm:$0xff]
        %v2882 = vld [vmem:[#allocation7 + $0xa0] sm:$0xff]
        %v2883 = vld [vmem:[#allocation7 + $0xa8] sm:$0xff]
        %v2884 = vld [vmem:[#allocation7 + $0xb0] sm:$0xff]
        %v2885 = vld [vmem:[#allocation7 + $0xb8] sm:$0xff]
        %v2886 = vld [vmem:[#allocation7 + $0xc0] sm:$0xff]
        %v2887 = vld [vmem:[#allocation7 + $0xc8] sm:$0xff]
        %v2888 = vld [vmem:[#allocation7 + $0xd0] sm:$0xff]
        %v2889 = vld [vmem:[#allocation7 + $0xd8] sm:$0xff]
        %v2890 = vld [vmem:[#allocation7 + $0xe0] sm:$0xff]
        %v2891 = vld [vmem:[#allocation7 + $0xe8] sm:$0xff]
        %v2892 = vld [vmem:[#allocation7 + $0xf0] sm:$0xff]
        %v2893 = vld [vmem:[#allocation7 + $0xf8] sm:$0xff]
        %v2926 = vunpack.c.l.b16 %v2862
        %v2927 = vunpack.c.h.b16 %v2862
        %v2928 = vunpack.c.l.b16 %v2863
        %v2929 = vunpack.c.h.b16 %v2863
        %v2930 = vunpack.c.l.b16 %v2864
        %v2931 = vunpack.c.h.b16 %v2864
        %v2932 = vunpack.c.l.b16 %v2865
        %v2933 = vunpack.c.h.b16 %v2865
        %v2934 = vunpack.c.l.b16 %v2866
        %v2935 = vunpack.c.h.b16 %v2866
        %v2936 = vunpack.c.l.b16 %v2867
        %v2937 = vunpack.c.h.b16 %v2867
        %v2938 = vunpack.c.l.b16 %v2868
        %v2939 = vunpack.c.h.b16 %v2868
        %v2940 = vunpack.c.l.b16 %v2869
        %v2941 = vunpack.c.h.b16 %v2869
        %v2942 = vunpack.c.l.b16 %v2870
        %v2943 = vunpack.c.h.b16 %v2870
        %v2944 = vunpack.c.l.b16 %v2871
        %v2945 = vunpack.c.h.b16 %v2871
        %v2946 = vunpack.c.l.b16 %v2872
        %v2947 = vunpack.c.h.b16 %v2872
        %v2948 = vunpack.c.l.b16 %v2873
        %v2949 = vunpack.c.h.b16 %v2873
        %v2950 = vunpack.c.l.b16 %v2874
        %v2951 = vunpack.c.h.b16 %v2874
        %v2952 = vunpack.c.l.b16 %v2875
        %v2953 = vunpack.c.h.b16 %v2875
        %v2954 = vunpack.c.l.b16 %v2876
        %v2955 = vunpack.c.h.b16 %v2876
        %v2956 = vunpack.c.l.b16 %v2877
        %v2957 = vunpack.c.h.b16 %v2877
        %v2958 = vunpack.c.l.b16 %v2878
        %v2959 = vunpack.c.h.b16 %v2878
        %v2960 = vunpack.c.l.b16 %v2879
        %v2961 = vunpack.c.h.b16 %v2879
        %v2962 = vunpack.c.l.b16 %v2880
        %v2963 = vunpack.c.h.b16 %v2880
        %v2964 = vunpack.c.l.b16 %v2881
        %v2965 = vunpack.c.h.b16 %v2881
        %v2966 = vunpack.c.l.b16 %v2882
        %v2967 = vunpack.c.h.b16 %v2882
        %v2968 = vunpack.c.l.b16 %v2883
        %v2969 = vunpack.c.h.b16 %v2883
        %v2970 = vunpack.c.l.b16 %v2884
        %v2971 = vunpack.c.h.b16 %v2884
        %v2972 = vunpack.c.l.b16 %v2885
        %v2973 = vunpack.c.h.b16 %v2885
        %v2974 = vunpack.c.l.b16 %v2886
        %v2975 = vunpack.c.h.b16 %v2886
        %v2976 = vunpack.c.l.b16 %v2887
        %v2977 = vunpack.c.h.b16 %v2887
        %v2978 = vunpack.c.l.b16 %v2888
        %v2979 = vunpack.c.h.b16 %v2888
        %v2980 = vunpack.c.l.b16 %v2889
        %v2981 = vunpack.c.h.b16 %v2889
        %v2982 = vunpack.c.l.b16 %v2890
        %v2983 = vunpack.c.h.b16 %v2890
        %v2984 = vunpack.c.l.b16 %v2891
        %v2985 = vunpack.c.h.b16 %v2891
        %v2986 = vunpack.c.l.b16 %v2892
        %v2987 = vunpack.c.h.b16 %v2892
        %v2988 = vunpack.c.l.b16 %v2893
        %v2989 = vunpack.c.h.b16 %v2893
        %v2990 = vpack.c.b16 %v2928, %v2926
        %v2991 = vpack.c.b16 %v2929, %v2927
        %v2992 = vpack.c.b16 %v2932, %v2930
        %v2993 = vpack.c.b16 %v2933, %v2931
        %v2994 = vpack.c.b16 %v2936, %v2934
        %v2995 = vpack.c.b16 %v2937, %v2935
        %v2996 = vpack.c.b16 %v2940, %v2938
        %v2997 = vpack.c.b16 %v2941, %v2939
        %v2998 = vpack.c.b16 %v2944, %v2942
        %v2999 = vpack.c.b16 %v2945, %v2943
        %v3000 = vpack.c.b16 %v2948, %v2946
        %v3001 = vpack.c.b16 %v2949, %v2947
        %v3002 = vpack.c.b16 %v2952, %v2950
        %v3003 = vpack.c.b16 %v2953, %v2951
        %v3004 = vpack.c.b16 %v2956, %v2954
        %v3005 = vpack.c.b16 %v2957, %v2955
        %v3006 = vpack.c.b16 %v2960, %v2958
        %v3007 = vpack.c.b16 %v2961, %v2959
        %v3008 = vpack.c.b16 %v2964, %v2962
        %v3009 = vpack.c.b16 %v2965, %v2963
        %v3010 = vpack.c.b16 %v2968, %v2966
        %v3011 = vpack.c.b16 %v2969, %v2967
        %v3012 = vpack.c.b16 %v2972, %v2970
        %v3013 = vpack.c.b16 %v2973, %v2971
        %v3014 = vpack.c.b16 %v2976, %v2974
        %v3015 = vpack.c.b16 %v2977, %v2975
        %v3016 = vpack.c.b16 %v2980, %v2978
        %v3017 = vpack.c.b16 %v2981, %v2979
        %v3018 = vpack.c.b16 %v2984, %v2982
        %v3019 = vpack.c.b16 %v2985, %v2983
        %v3020 = vpack.c.b16 %v2988, %v2986
        %v3021 = vpack.c.b16 %v2989, %v2987
        %3054 = vmatprep.subr.bf16.mxu0 0
        %3055 = vmatpush1.bf16.msra.mxu0 %v2846
        %3056 = vmatprep.subr.bf16.mxu0 0
        %3057 = vmatpush1.bf16.msra.mxu0 %v2847
        %3058 = vmatprep.subr.bf16.mxu0 0
        %3059 = vmatpush1.bf16.msra.mxu0 %v2848
        %3060 = vmatprep.subr.bf16.mxu0 0
        %3061 = vmatpush1.bf16.msra.mxu0 %v2849
        %3062 = vmatprep.subr.bf16.mxu0 0
        %3063 = vmatpush1.bf16.msra.mxu0 %v2850
        %3064 = vmatprep.subr.bf16.mxu0 0
        %3065 = vmatpush1.bf16.msra.mxu0 %v2851
        %3066 = vmatprep.subr.bf16.mxu0 0
        %3067 = vmatpush1.bf16.msra.mxu0 %v2852
        %3068 = vmatprep.subr.bf16.mxu0 0
        %3069 = vmatpush1.bf16.msra.mxu0 %v2853
        %3070 = vmatprep.subr.bf16.mxu0 0
        %3071 = vmatpush1.bf16.msra.mxu0 %v2854
        %3072 = vmatprep.subr.bf16.mxu0 0
        %3073 = vmatpush1.bf16.msra.mxu0 %v2855
        %3074 = vmatprep.subr.bf16.mxu0 0
        %3075 = vmatpush1.bf16.msra.mxu0 %v2856
        %3076 = vmatprep.subr.bf16.mxu0 0
        %3077 = vmatpush1.bf16.msra.mxu0 %v2857
        %3078 = vmatprep.subr.bf16.mxu0 0
        %3079 = vmatpush1.bf16.msra.mxu0 %v2858
        %3080 = vmatprep.subr.bf16.mxu0 0
        %3081 = vmatpush1.bf16.msra.mxu0 %v2859
        %3082 = vmatprep.subr.bf16.mxu0 0
        %3083 = vmatpush1.bf16.msra.mxu0 %v2860
        %3084 = vmatprep.subr.bf16.mxu0 0
        %3085 = vmatpush1.bf16.msra.mxu0 %v2861
        %3086 = vmatprep.mubr.bf16.mxu0 %v2991
        %3087 = vmatmul.mubr.bf16.gmra.mrb[0].mxu0 %v2990
        %v3088 = vpop.f32.mrb[0].mxu0
        %v3089 = vadd.f32 0.0, %v3088
        %v3090 = vpop.f32.mrb[0].mxu0
        %v3091 = vpop.f32.mrb[0].mxu0
        %v3092 = vadd.f32 0.0, %v3091
        %v3093 = vpop.f32.mrb[0].mxu0
        %3094 = vmatprep.mubr.bf16.mxu0 %v2993
        %3095 = vmatmul.mubr.bf16.gmra.mrb[0].mxu0 %v2992
        %v3096 = vpop.f32.mrb[0].mxu0
        %v3097 = vadd.f32 0.0, %v3096
        %v3098 = vpop.f32.mrb[0].mxu0
        %v3099 = vpop.f32.mrb[0].mxu0
        %v3100 = vadd.f32 0.0, %v3099
        %v3101 = vpop.f32.mrb[0].mxu0
        %3102 = vmatprep.mubr.bf16.mxu0 %v2995
        %3103 = vmatmul.mubr.bf16.gmra.mrb[0].mxu0 %v2994
        %v3104 = vpop.f32.mrb[0].mxu0
        %v3105 = vadd.f32 0.0, %v3104
        %v3106 = vpop.f32.mrb[0].mxu0
        %v3107 = vpop.f32.mrb[0].mxu0
        %v3108 = vadd.f32 0.0, %v3107
        %v3109 = vpop.f32.mrb[0].mxu0
        %3110 = vmatprep.mubr.bf16.mxu0 %v2997
        %3111 = vmatmul.mubr.bf16.gmra.mrb[0].mxu0 %v2996
        %v3112 = vpop.f32.mrb[0].mxu0
        %v3113 = vadd.f32 0.0, %v3112
        %v3114 = vpop.f32.mrb[0].mxu0
        %v3115 = vpop.f32.mrb[0].mxu0
        %v3116 = vadd.f32 0.0, %v3115
        %v3117 = vpop.f32.mrb[0].mxu0
        %3118 = vmatprep.mubr.bf16.mxu0 %v2999
        %3119 = vmatmul.mubr.bf16.gmra.mrb[0].mxu0 %v2998
        %v3120 = vpop.f32.mrb[0].mxu0
        %v3121 = vadd.f32 0.0, %v3120
        %v3122 = vpop.f32.mrb[0].mxu0
        %v3123 = vpop.f32.mrb[0].mxu0
        %v3124 = vadd.f32 0.0, %v3123
        %v3125 = vpop.f32.mrb[0].mxu0
        %3126 = vmatprep.mubr.bf16.mxu0 %v3001
        %3127 = vmatmul.mubr.bf16.gmra.mrb[0].mxu0 %v3000
        %v3128 = vpop.f32.mrb[0].mxu0
        %v3129 = vadd.f32 0.0, %v3128
        %v3130 = vpop.f32.mrb[0].mxu0
        %v3131 = vpop.f32.mrb[0].mxu0
        %v3132 = vadd.f32 0.0, %v3131
        %v3133 = vpop.f32.mrb[0].mxu0
        %3134 = vmatprep.mubr.bf16.mxu0 %v3003
        %3135 = vmatmul.mubr.bf16.gmra.mrb[0].mxu0 %v3002
        %v3136 = vpop.f32.mrb[0].mxu0
        %v3137 = vadd.f32 0.0, %v3136
        %v3138 = vpop.f32.mrb[0].mxu0
        %v3139 = vpop.f32.mrb[0].mxu0
        %v3140 = vadd.f32 0.0, %v3139
        %v3141 = vpop.f32.mrb[0].mxu0
        %3142 = vmatprep.mubr.bf16.mxu0 %v3005
        %3143 = vmatmul.mubr.bf16.gmra.mrb[0].mxu0 %v3004
        %v3144 = vpop.f32.mrb[0].mxu0
        %v3145 = vadd.f32 0.0, %v3144
        %v3146 = vpop.f32.mrb[0].mxu0
        %v3147 = vpop.f32.mrb[0].mxu0
        %v3148 = vadd.f32 0.0, %v3147
        %v3149 = vpop.f32.mrb[0].mxu0
        %3150 = vmatprep.mubr.bf16.mxu0 %v3007
        %3151 = vmatmul.mubr.bf16.gmra.mrb[0].mxu0 %v3006
        %v3152 = vpop.f32.mrb[0].mxu0
        %v3153 = vadd.f32 0.0, %v3152
        %v3154 = vpop.f32.mrb[0].mxu0
        %v3155 = vpop.f32.mrb[0].mxu0
        %v3156 = vadd.f32 0.0, %v3155
        %v3157 = vpop.f32.mrb[0].mxu0
        %3158 = vmatprep.mubr.bf16.mxu0 %v3009
        %3159 = vmatmul.mubr.bf16.gmra.mrb[0].mxu0 %v3008
        %v3160 = vpop.f32.mrb[0].mxu0
        %v3161 = vadd.f32 0.0, %v3160
        %v3162 = vpop.f32.mrb[0].mxu0
        %v3163 = vpop.f32.mrb[0].mxu0
        %v3164 = vadd.f32 0.0, %v3163
        %v3165 = vpop.f32.mrb[0].mxu0
        %3166 = vmatprep.mubr.bf16.mxu0 %v3011
        %3167 = vmatmul.mubr.bf16.gmra.mrb[0].mxu0 %v3010
        %v3168 = vpop.f32.mrb[0].mxu0
        %v3169 = vadd.f32 0.0, %v3168
        %v3170 = vpop.f32.mrb[0].mxu0
        %v3171 = vpop.f32.mrb[0].mxu0
        %v3172 = vadd.f32 0.0, %v3171
        %v3173 = vpop.f32.mrb[0].mxu0
        %3174 = vmatprep.mubr.bf16.mxu0 %v3013
        %3175 = vmatmul.mubr.bf16.gmra.mrb[0].mxu0 %v3012
        %v3176 = vpop.f32.mrb[0].mxu0
        %v3177 = vadd.f32 0.0, %v3176
        %v3178 = vpop.f32.mrb[0].mxu0
        %v3179 = vpop.f32.mrb[0].mxu0
        %v3180 = vadd.f32 0.0, %v3179
        %v3181 = vpop.f32.mrb[0].mxu0
        %3182 = vmatprep.mubr.bf16.mxu0 %v3015
        %3183 = vmatmul.mubr.bf16.gmra.mrb[0].mxu0 %v3014
        %v3184 = vpop.f32.mrb[0].mxu0
        %v3185 = vadd.f32 0.0, %v3184
        %v3186 = vpop.f32.mrb[0].mxu0
        %v3187 = vpop.f32.mrb[0].mxu0
        %v3188 = vadd.f32 0.0, %v3187
        %v3189 = vpop.f32.mrb[0].mxu0
        %3190 = vmatprep.mubr.bf16.mxu0 %v3017
        %3191 = vmatmul.mubr.bf16.gmra.mrb[0].mxu0 %v3016
        %v3192 = vpop.f32.mrb[0].mxu0
        %v3193 = vadd.f32 0.0, %v3192
        %v3194 = vpop.f32.mrb[0].mxu0
        %v3195 = vpop.f32.mrb[0].mxu0
        %v3196 = vadd.f32 0.0, %v3195
        %v3197 = vpop.f32.mrb[0].mxu0
        %3198 = vmatprep.mubr.bf16.mxu0 %v3019
        %3199 = vmatmul.mubr.bf16.gmra.mrb[0].mxu0 %v3018
        %v3200 = vpop.f32.mrb[0].mxu0
        %v3201 = vadd.f32 0.0, %v3200
        %v3202 = vpop.f32.mrb[0].mxu0
        %v3203 = vpop.f32.mrb[0].mxu0
        %v3204 = vadd.f32 0.0, %v3203
        %v3205 = vpop.f32.mrb[0].mxu0
        %3206 = vmatprep.mubr.bf16.mxu0 %v3021
        %3207 = vmatmul.mubr.bf16.gmra.mrb[0].mxu0 %v3020
        %v3208 = vpop.f32.mrb[0].mxu0
        %v3209 = vadd.f32 0.0, %v3208
        %v3210 = vpop.f32.mrb[0].mxu0
        %v3211 = vpop.f32.mrb[0].mxu0
        %v3212 = vadd.f32 0.0, %v3211
        %v3213 = vpop.f32.mrb[0].mxu0
        %3214 = vdwg.mxu0
        %v3215 = vadd.f32 %v1489, %v3089
        %v3216 = vadd.f32 %v1492, %v3092
        %v3217 = vadd.f32 %v1497, %v3097
        %v3218 = vadd.f32 %v1500, %v3100
        %v3219 = vadd.f32 %v1505, %v3105
        %v3220 = vadd.f32 %v1508, %v3108
        %v3221 = vadd.f32 %v1513, %v3113
        %v3222 = vadd.f32 %v1516, %v3116
        %v3223 = vadd.f32 %v1521, %v3121
        %v3224 = vadd.f32 %v1524, %v3124
        %v3225 = vadd.f32 %v1529, %v3129
        %v3226 = vadd.f32 %v1532, %v3132
        %v3227 = vadd.f32 %v1537, %v3137
        %v3228 = vadd.f32 %v1540, %v3140
        %v3229 = vadd.f32 %v1545, %v3145
        %v3230 = vadd.f32 %v1548, %v3148
        %v3231 = vadd.f32 %v1553, %v3153
        %v3232 = vadd.f32 %v1556, %v3156
        %v3233 = vadd.f32 %v1561, %v3161
        %v3234 = vadd.f32 %v1564, %v3164
        %v3235 = vadd.f32 %v1569, %v3169
        %v3236 = vadd.f32 %v1572, %v3172
        %v3237 = vadd.f32 %v1577, %v3177
        %v3238 = vadd.f32 %v1580, %v3180
        %v3239 = vadd.f32 %v1585, %v3185
        %v3240 = vadd.f32 %v1588, %v3188
        %v3241 = vadd.f32 %v1593, %v3193
        %v3242 = vadd.f32 %v1596, %v3196
        %v3243 = vadd.f32 %v1601, %v3201
        %v3244 = vadd.f32 %v1604, %v3204
        %v3245 = vadd.f32 %v1609, %v3209
        %v3246 = vadd.f32 %v1612, %v3212
        %v3247 = vld [vmem:[%s444] sm:$0x1]
        %v3249 = vlaneseq
        %v3250 = vshrl.u32 %v3249, 7
        %v3251 = vsub.s32 0, %v3250
        %v3252 = vrot.slane %v3247, %v3251
        %v3254 = vadd.f32 %v3215, %v3252
        %v3255 = vadd.f32 %v3216, %v3252
        %v3256 = vadd.f32 %v3217, %v3252
        %v3257 = vadd.f32 %v3218, %v3252
        %v3258 = vadd.f32 %v3219, %v3252
        %v3259 = vadd.f32 %v3220, %v3252
        %v3260 = vadd.f32 %v3221, %v3252
        %v3261 = vadd.f32 %v3222, %v3252
        %v3262 = vadd.f32 %v3223, %v3252
        %v3263 = vadd.f32 %v3224, %v3252
        %v3264 = vadd.f32 %v3225, %v3252
        %v3265 = vadd.f32 %v3226, %v3252
        %v3266 = vadd.f32 %v3227, %v3252
        %v3267 = vadd.f32 %v3228, %v3252
        %v3268 = vadd.f32 %v3229, %v3252
        %v3269 = vadd.f32 %v3230, %v3252
        %v3270 = vadd.f32 %v3231, %v3252
        %v3271 = vadd.f32 %v3232, %v3252
        %v3272 = vadd.f32 %v3233, %v3252
        %v3273 = vadd.f32 %v3234, %v3252
        %v3274 = vadd.f32 %v3235, %v3252
        %v3275 = vadd.f32 %v3236, %v3252
        %v3276 = vadd.f32 %v3237, %v3252
        %v3277 = vadd.f32 %v3238, %v3252
        %v3278 = vadd.f32 %v3239, %v3252
        %v3279 = vadd.f32 %v3240, %v3252
        %v3280 = vadd.f32 %v3241, %v3252
        %v3281 = vadd.f32 %v3242, %v3252
        %v3282 = vadd.f32 %v3243, %v3252
        %v3283 = vadd.f32 %v3244, %v3252
        %v3284 = vadd.f32 %v3245, %v3252
        %v3285 = vadd.f32 %v3246, %v3252
        %v3286 = vtanh.pop %v3254
        %v3287 = vtanh.pop %v3255
        %v3288 = vtanh.pop %v3256
        %v3289 = vtanh.pop %v3257
        %v3290 = vtanh.pop %v3258
        %v3291 = vtanh.pop %v3259
        %v3292 = vtanh.pop %v3260
        %v3293 = vtanh.pop %v3261
        %v3294 = vtanh.pop %v3262
        %v3295 = vtanh.pop %v3263
        %v3296 = vtanh.pop %v3264
        %v3297 = vtanh.pop %v3265
        %v3298 = vtanh.pop %v3266
        %v3299 = vtanh.pop %v3267
        %v3300 = vtanh.pop %v3268
        %v3301 = vtanh.pop %v3269
        %v3302 = vtanh.pop %v3270
        %v3303 = vtanh.pop %v3271
        %v3304 = vtanh.pop %v3272
        %v3305 = vtanh.pop %v3273
        %v3306 = vtanh.pop %v3274
        %v3307 = vtanh.pop %v3275
        %v3308 = vtanh.pop %v3276
        %v3309 = vtanh.pop %v3277
        %v3310 = vtanh.pop %v3278
        %v3311 = vtanh.pop %v3279
        %v3312 = vtanh.pop %v3280
        %v3313 = vtanh.pop %v3281
        %v3314 = vtanh.pop %v3282
        %v3315 = vtanh.pop %v3283
        %v3316 = vtanh.pop %v3284
        %v3317 = vtanh.pop %v3285
        %v3318 = vsub.f32 %v3286, %v446
        %v3319 = vsub.f32 %v3287, %v447
        %v3320 = vsub.f32 %v3288, %v448
        %v3321 = vsub.f32 %v3289, %v449
        %v3322 = vsub.f32 %v3290, %v450
        %v3323 = vsub.f32 %v3291, %v451
        %v3324 = vsub.f32 %v3292, %v452
        %v3325 = vsub.f32 %v3293, %v453
        %v3326 = vsub.f32 %v3294, %v454
        %v3327 = vsub.f32 %v3295, %v455
        %v3328 = vsub.f32 %v3296, %v456
        %v3329 = vsub.f32 %v3297, %v457
        %v3330 = vsub.f32 %v3298, %v458
        %v3331 = vsub.f32 %v3299, %v459
        %v3332 = vsub.f32 %v3300, %v460
        %v3333 = vsub.f32 %v3301, %v461
        %v3334 = vsub.f32 %v3302, %v462
        %v3335 = vsub.f32 %v3303, %v463
        %v3336 = vsub.f32 %v3304, %v464
        %v3337 = vsub.f32 %v3305, %v465
        %v3338 = vsub.f32 %v3306, %v466
        %v3339 = vsub.f32 %v3307, %v467
        %v3340 = vsub.f32 %v3308, %v468
        %v3341 = vsub.f32 %v3309, %v469
        %v3342 = vsub.f32 %v3310, %v470
        %v3343 = vsub.f32 %v3311, %v471
        %v3344 = vsub.f32 %v3312, %v472
        %v3345 = vsub.f32 %v3313, %v473
        %v3346 = vsub.f32 %v3314, %v474
        %v3347 = vsub.f32 %v3315, %v475
        %v3348 = vsub.f32 %v3316, %v476
        %v3349 = vsub.f32 %v3317, %v477
        %v3350 = vmul.f32 %v2488, %v3318
        %v3351 = vmul.f32 %v2490, %v3319
        %v3352 = vmul.f32 %v2492, %v3320
        %v3353 = vmul.f32 %v2494, %v3321
        %v3354 = vmul.f32 %v2496, %v3322
        %v3355 = vmul.f32 %v2498, %v3323
        %v3356 = vmul.f32 %v2500, %v3324
        %v3357 = vmul.f32 %v2502, %v3325
        %v3358 = vmul.f32 %v2504, %v3326
        %v3359 = vmul.f32 %v2506, %v3327
        %v3360 = vmul.f32 %v2508, %v3328
        %v3361 = vmul.f32 %v2510, %v3329
        %v3362 = vmul.f32 %v2512, %v3330
        %v3363 = vmul.f32 %v2514, %v3331
        %v3364 = vmul.f32 %v2516, %v3332
        %v3365 = vmul.f32 %v2518, %v3333
        %v3366 = vmul.f32 %v2520, %v3334
        %v3367 = vmul.f32 %v2522, %v3335
        %v3368 = vmul.f32 %v2524, %v3336
        %v3369 = vmul.f32 %v2526, %v3337
        %v3370 = vmul.f32 %v2528, %v3338
        %v3371 = vmul.f32 %v2530, %v3339
        %v3372 = vmul.f32 %v2532, %v3340
        %v3373 = vmul.f32 %v2534, %v3341
        %v3374 = vmul.f32 %v2536, %v3342
        %v3375 = vmul.f32 %v2538, %v3343
        %v3376 = vmul.f32 %v2540, %v3344
        %v3377 = vmul.f32 %v2542, %v3345
        %v3378 = vmul.f32 %v2544, %v3346
        %v3379 = vmul.f32 %v2546, %v3347
        %v3380 = vmul.f32 %v2548, %v3348
        %v3381 = vmul.f32 %v2550, %v3349
        %v3382 = vadd.f32 %v446, %v3350
        %v3383 = vadd.f32 %v447, %v3351
        %v3384 = vadd.f32 %v448, %v3352
        %v3385 = vadd.f32 %v449, %v3353
        %v3386 = vadd.f32 %v450, %v3354
        %v3387 = vadd.f32 %v451, %v3355
        %v3388 = vadd.f32 %v452, %v3356
        %v3389 = vadd.f32 %v453, %v3357
        %v3390 = vadd.f32 %v454, %v3358
        %v3391 = vadd.f32 %v455, %v3359
        %v3392 = vadd.f32 %v456, %v3360
        %v3393 = vadd.f32 %v457, %v3361
        %v3394 = vadd.f32 %v458, %v3362
        %v3395 = vadd.f32 %v459, %v3363
        %v3396 = vadd.f32 %v460, %v3364
        %v3397 = vadd.f32 %v461, %v3365
        %v3398 = vadd.f32 %v462, %v3366
        %v3399 = vadd.f32 %v463, %v3367
        %v3400 = vadd.f32 %v464, %v3368
        %v3401 = vadd.f32 %v465, %v3369
        %v3402 = vadd.f32 %v466, %v3370
        %v3403 = vadd.f32 %v467, %v3371
        %v3404 = vadd.f32 %v468, %v3372
        %v3405 = vadd.f32 %v469, %v3373
        %v3406 = vadd.f32 %v470, %v3374
        %v3407 = vadd.f32 %v471, %v3375
        %v3408 = vadd.f32 %v472, %v3376
        %v3409 = vadd.f32 %v473, %v3377
        %v3410 = vadd.f32 %v474, %v3378
        %v3411 = vadd.f32 %v475, %v3379
        %v3412 = vadd.f32 %v476, %v3380
        %v3413 = vadd.f32 %v477, %v3381
        %3414 = vst [vmem:[%s435] sm:$0xff] %v3382
        %3415 = vst [vmem:[%s435 + $0x8] sm:$0xff] %v3383
        %3416 = vst [vmem:[%s435 + $0x10] sm:$0xff] %v3384
        %3417 = vst [vmem:[%s435 + $0x18] sm:$0xff] %v3385
        %3418 = vst [vmem:[%s435 + $0x20] sm:$0xff] %v3386
        %3419 = vst [vmem:[%s435 + $0x28] sm:$0xff] %v3387
        %3420 = vst [vmem:[%s435 + $0x30] sm:$0xff] %v3388
        %3421 = vst [vmem:[%s435 + $0x38] sm:$0xff] %v3389
        %3422 = vst [vmem:[%s435 + $0x40] sm:$0xff] %v3390
        %3423 = vst [vmem:[%s435 + $0x48] sm:$0xff] %v3391
        %3424 = vst [vmem:[%s435 + $0x50] sm:$0xff] %v3392
        %3425 = vst [vmem:[%s435 + $0x58] sm:$0xff] %v3393
        %3426 = vst [vmem:[%s435 + $0x60] sm:$0xff] %v3394
        %3427 = vst [vmem:[%s435 + $0x68] sm:$0xff] %v3395
        %3428 = vst [vmem:[%s435 + $0x70] sm:$0xff] %v3396
        %3429 = vst [vmem:[%s435 + $0x78] sm:$0xff] %v3397
        %3430 = vst [vmem:[%s435 + $0x80] sm:$0xff] %v3398
        %3431 = vst [vmem:[%s435 + $0x88] sm:$0xff] %v3399
        %3432 = vst [vmem:[%s435 + $0x90] sm:$0xff] %v3400
        %3433 = vst [vmem:[%s435 + $0x98] sm:$0xff] %v3401
        %3434 = vst [vmem:[%s435 + $0xa0] sm:$0xff] %v3402
        %3435 = vst [vmem:[%s435 + $0xa8] sm:$0xff] %v3403
        %3436 = vst [vmem:[%s435 + $0xb0] sm:$0xff] %v3404
        %3437 = vst [vmem:[%s435 + $0xb8] sm:$0xff] %v3405
        %3438 = vst [vmem:[%s435 + $0xc0] sm:$0xff] %v3406
        %3439 = vst [vmem:[%s435 + $0xc8] sm:$0xff] %v3407
        %3440 = vst [vmem:[%s435 + $0xd0] sm:$0xff] %v3408
        %3441 = vst [vmem:[%s435 + $0xd8] sm:$0xff] %v3409
        %3442 = vst [vmem:[%s435 + $0xe0] sm:$0xff] %v3410
        %3443 = vst [vmem:[%s435 + $0xe8] sm:$0xff] %v3411
        %3444 = vst [vmem:[%s435 + $0xf0] sm:$0xff] %v3412
        %3445 = vst [vmem:[%s435 + $0xf8] sm:$0xff] %v3413
        %s3446 = sand.u32 %s228, 1
        %s3447 = scalar_lea.sflag [#allocation4], %s3446
        %s3448 = sand.u32 %s228, 1
        %s3449 = smul.addr %s3448, 256
        %s3450 = scalar_lea.vmem [#allocation11], %s3449
        // Predicated region
        $region73: #{tpu_custom_call.1} parent=51 // pred_check
          %p3451 = pneg %p238
        $region74: #{tpu_custom_call.1} parent=51 // pred_check_branch
          %3453 = sbr.rel (%p3451) target = $region76
        $region75: #{tpu_custom_call.1} parent=51 // pred_region
          %s3455 = ssub.s32 4096, 4096
          %3456 = vsyncadd %s3447, %s3455
          %s3457 = smul.addr %s27, 128
          %s3458 = scalar_lea.hbm %s8, %s3457
          %s3459 = sshll.u32 %s3450, 4
          %s3460 = int_to_ptr.vmem [resolvable:$true] %s3459
          %3465 = dma.vmem_to_hbm [thread:$0]  %s3460, 4096, %s3458, %s3447, 128, 256, 8
        $region76: #{tpu_custom_call.1} parent=51 // pred_fallthru
          _
      $region52: #{tpu_custom_call.1} parent=5 // pred_fallthru
        _
      %p3466 = scmp.le.s32.totalorder 2, %s22
      // Predicated region
      $region77: #{tpu_custom_call.1} parent=5 // pred_check
        %p3467 = pneg %p3466
      $region78: #{tpu_custom_call.1} parent=5 // pred_check_branch
        %3469 = sbr.rel (%p3467) target = $region80
      $region79: #{tpu_custom_call.1} parent=5 // pred_region
        %s3470 = ssub.s32 %s22, 2
        // Predicated region
        $region81: #{tpu_custom_call.1} parent=79 // pred_check
          %p3471 = pneg %p244
        $region82: #{tpu_custom_call.1} parent=79 // pred_check_branch
          %3473 = sbr.rel (%p3471) target = $region84
        $region83: #{tpu_custom_call.1} parent=79 // pred_region
          %s3474 = sand.u32 %s229, 1
          %s3475 = scalar_lea.sflag [#allocation4], %s3474
          %s3476 = sand.u32 %s229, 1
          %s3477 = smul.addr %s3476, 256
          %s3478 = scalar_lea.vmem [#allocation11], %s3477
          %3479 = dma.done %s3475, 4096
        $region84: #{tpu_custom_call.1} parent=79 // pred_fallthru
          _
      $region80: #{tpu_custom_call.1} parent=5 // pred_fallthru
        _
    $region6: #{tpu_custom_call.1} parent=1 // loop_footer
      %s26 = sadd.s32 1, %s22
    $region7: #{tpu_custom_call.1} parent=1 // loop_footer_branch
      %21 = sbr.rel target = $region3
    $region8: #{tpu_custom_call.1} parent=1 // loop_exit
      _
    %3480 = vsyncpa [#allocation3], 1
    %s3481 = scalar_lea.sflag [#allocation3], 1
    %3482 = vsyncpa %s3481, 1
    %3483 = vsyncpa [#allocation6], 1
    %3484 = vsyncpa [#allocation9], 1
    %s3485 = scalar_lea.sflag [#allocation9], 1
    %3486 = vsyncpa %s3485, 1
    %3487 = vsyncpa [#allocation4], 1
    %s3488 = scalar_lea.sflag [#allocation4], 1
    %3489 = vsyncpa %s3488, 1

</llo_original>
